<compile_context>
chip_gen: v6e
topology: v6e:2x2x1
jax: 0.10.0
libtpu: 0.0.40
codegen_flags: <defaults>
</compile_context>

<pallas_src>
import functools

import jax
import jax.numpy as jnp
from jax.experimental import pallas as pl
from jax.experimental.pallas import tpu as pltpu

LANES = 128          # lane-pad every channel-like dim to a full vreg width
KH = KW = 3          # backbone conv kernel
B_TILE = 8           # images per grid step (sublane-dense output block)


# ---------------------------------------------------------------------------
# Fused kernel: B_TILE images per grid step.
#   x_ref : (B_TILE, H*W, K_pad)   bf16  im2col patches (taps folded into K)
#   cw_ref: (K_pad, 128)           bf16  conv weights, lane-padded
#   cb_ref: (1, 128)               f32   conv bias (lane-padded)
#   fw_ref: (128, 128)             bf16  backbone FC  (c_mid_pad x fc2_pad)
#   fb_ref: (1, 128)               f32
#   lw_ref: (128, 128)             bf16  last_layer   (fc2_pad x out_pad)
#   lb_ref: (1, 128)               f32
#   out_ref:(B_TILE, 128)          f32   lane-dense, sublane-dense head output
# ---------------------------------------------------------------------------
def fused_backbone_head_kernel(x_ref, cw_ref, cb_ref, fw_ref, fb_ref,
                               lw_ref, lb_ref, out_ref, *, HW, out_dim,
                               b_tile):
    inv_hw = 1.0 / float(HW)

    # conv3x3 (as ONE K=9*C matmul) -> bias+ReLU -> global average pool,
    # processed one image at a time so live f32 activation state stays at
    # (HW, 128) = 32 vregs instead of b_tile * 32.
    pooled_rows = []
    for b in range(b_tile):                      # static unroll, b_tile small
        act = jnp.dot(x_ref[b], cw_ref[...],
                      preferred_element_type=jnp.float32)      # (HW, 128) f32
        act = jnp.maximum(act + cb_ref[...], 0.0)              # bias + ReLU
        pooled_rows.append(jnp.sum(act, axis=0, keepdims=True) * inv_hw)
    pooled = jnp.concatenate(pooled_rows, axis=0)              # (b_tile, 128)

    # Backbone FC (c_mid -> fc2, lane-padded) + forward()'s ReLU, M = b_tile.
    base = jnp.dot(pooled.astype(jnp.bfloat16), fw_ref[...],
                   preferred_element_type=jnp.float32) + fb_ref[...]
    base = jnp.maximum(base, 0.0)

    # last_layer (fc2 -> out_dim, lane-padded), M = b_tile.
    out = jnp.dot(base.astype(jnp.bfloat16), lw_ref[...],
                  preferred_element_type=jnp.float32) + lb_ref[...]

    # tanh on lanes [0, out_dim-1), sigmoid on lane out_dim-1, 0 on pad lanes.
    # Computed once per tile on the (b_tile, 128) block.
    lane = jax.lax.broadcasted_iota(jnp.int32, out.shape, 1)
    act_out = jnp.where(lane < out_dim - 1, jnp.tanh(out),
                        jnp.where(lane == out_dim - 1,
                                  jax.nn.sigmoid(out), 0.0))
    out_ref[...] = act_out                       # unmasked, lane/sublane-dense


# ---------------------------------------------------------------------------
# Parameter packing (native PyTorch-layout f32 -> lane-dense kernel layout).
# Call ONCE and cache; do not re-run per forward call.
# ---------------------------------------------------------------------------
def pack_params_for_kernel(p):
    c_mid, c_in, kh, kw = p["conv_w"].shape
    fc2 = p["fc_w"].shape[1]
    out_dim = p["last_w"].shape[1]
    assert max(c_mid, fc2, out_dim) <= LANES, "stand-in backbone dims <= 128"

    K = kh * kw * c_in
    K_pad = ((K + 31) // 32) * 32
    # (Cout, Cin, KH, KW) -> (KH*KW*Cin, Cout): row order matches im2col taps.
    cw = p["conv_w"].transpose(2, 3, 1, 0).reshape(K, c_mid)
    return {
        "cw": jnp.pad(cw.astype(jnp.bfloat16),
                      ((0, K_pad - K), (0, LANES - c_mid))),        # (Kp,128)
        "cb": jnp.pad(p["conv_b"].astype(jnp.float32)[None, :],
                      ((0, 0), (0, LANES - c_mid))),                # (1,128)
        "fw": jnp.pad(p["fc_w"].astype(jnp.bfloat16),
                      ((0, LANES - c_mid), (0, LANES - fc2))),      # (128,128)
        "fb": jnp.pad(p["fc_b"].astype(jnp.float32)[None, :],
                      ((0, 0), (0, LANES - fc2))),                  # (1,128)
        "lw": jnp.pad(p["last_w"].astype(jnp.bfloat16),
                      ((0, LANES - fc2), (0, LANES - out_dim))),    # (128,128)
        "lb": jnp.pad(p["last_b"].astype(jnp.float32)[None, :],
                      ((0, 0), (0, LANES - out_dim))),              # (1,128)
    }


# ---------------------------------------------------------------------------
# Forward wrapper
# ---------------------------------------------------------------------------
@functools.partial(jax.jit,
                   static_argnames=("out_dim", "b_tile", "c_mid", "fc2"))
def gaze_static_multi_sincos_forward(x, packed, *, out_dim=6, b_tile=B_TILE,
                                     c_mid=8, fc2=32):
    """x: (N, C, H, W) f32 NCHW. Returns (angular (N, out_dim-1), var same)."""
    N, C, H, W = x.shape
    HW = H * W
    K = KH * KW * C
    K_pad = packed["cw"].shape[0]

    # Lane-dense bf16 im2col in the XLA wrapper: one contiguous DMA per tile,
    # no in-kernel window slicing.  Tap order (dh, dw, c) matches cw packing.
    xp = jnp.pad(x, ((0, 0), (0, 0), (1, 1), (1, 1))).transpose(0, 2, 3, 1)
    taps = [xp[:, dh:dh + H, dw:dw + W, :]
            for dh in range(KH) for dw in range(KW)]                # 9x NHWC
    patches = jnp.stack(taps, axis=3).reshape(N, HW, K).astype(jnp.bfloat16)
    patches = jnp.pad(patches, ((0, 0), (0, 0), (0, K_pad - K)))

    # Pad batch up to a multiple of b_tile (padded rows are sliced out later).
    N_pad = pl.cdiv(N, b_tile) * b_tile
    if N_pad != N:
        patches = jnp.pad(patches, ((0, N_pad - N), (0, 0), (0, 0)))

    conv_flops = 2 * HW * K * c_mid
    head_flops = 2 * (c_mid * fc2 + fc2 * out_dim)
    weight_bytes = sum(int(v.size) * v.dtype.itemsize for v in packed.values())
    cost = pl.CostEstimate(
        flops=N_pad * (conv_flops + head_flops),
        transcendentals=N_pad * out_dim,
        bytes_accessed=int(patches.size) * 2 + weight_bytes + N_pad * LANES * 4,
    )

    head = pl.pallas_call(
        functools.partial(fused_backbone_head_kernel,
                          HW=HW, out_dim=out_dim, b_tile=b_tile),
        out_shape=jax.ShapeDtypeStruct((N_pad, LANES), jnp.float32),
        grid=(N_pad // b_tile,),
        in_specs=[
            pl.BlockSpec((b_tile, HW, K_pad), lambda n: (n, 0, 0)),
            pl.BlockSpec((K_pad, LANES), lambda n: (0, 0)),
            pl.BlockSpec((1, LANES), lambda n: (0, 0)),
            pl.BlockSpec((LANES, LANES), lambda n: (0, 0)),
            pl.BlockSpec((1, LANES), lambda n: (0, 0)),
            pl.BlockSpec((LANES, LANES), lambda n: (0, 0)),
            pl.BlockSpec((1, LANES), lambda n: (0, 0)),
        ],
        out_specs=pl.BlockSpec((b_tile, LANES), lambda n: (n, 0)),
        compiler_params=pltpu.CompilerParams(
            dimension_semantics=("parallel",),
            vmem_limit_bytes=32 * 1024 * 1024),
        cost_estimate=cost,
    )(patches, packed["cw"], packed["cb"], packed["fw"], packed["fb"],
      packed["lw"], packed["lb"])

    head = head[:N]                                        # drop batch pad
    ang = head[:, : out_dim - 1]                           # tanh lanes
    var = jnp.broadcast_to(head[:, out_dim - 1: out_dim], ang.shape)
    return ang, var


# ---------------------------------------------------------------------------
# Params + pure-JAX f32 reference (for correctness check)
# ---------------------------------------------------------------------------
def init_params(key, *, c_in, c_mid, fc2, out_dim=6):
    k = jax.random.split(key, 6)
    return {
        "conv_w": 0.1 * jax.random.normal(k[0], (c_mid, c_in, KH, KW), jnp.float32),
        "conv_b": 0.1 * jax.random.normal(k[1], (c_mid,), jnp.float32),
        "fc_w":   0.1 * jax.random.normal(k[2], (c_mid, fc2), jnp.float32),
        "fc_b":   0.1 * jax.random.normal(k[3], (fc2,), jnp.float32),
        "last_w": 0.1 * jax.random.normal(k[4], (fc2, out_dim), jnp.float32),
        "last_b": 0.1 * jax.random.normal(k[5], (out_dim,), jnp.float32),
    }


def reference_forward(x, p, *, out_dim=6):
    y = jax.lax.conv_general_dilated(
        x, p["conv_w"], window_strides=(1, 1), padding=((1, 1), (1, 1)),
        dimension_numbers=("NCHW", "OIHW", "NCHW"))
    y = jnp.maximum(y + p["conv_b"][None, :, None, None], 0.0)
    pooled = jnp.mean(y, axis=(2, 3))
    base = jnp.maximum(pooled @ p["fc_w"] + p["fc_b"], 0.0)
    out = base @ p["last_w"] + p["last_b"]
    ang = jnp.tanh(out[:, : out_dim - 1])
    var = jax.nn.sigmoid(out[:, out_dim - 1: out_dim])
    return ang, jnp.broadcast_to(var, ang.shape)


if __name__ == "__main__":
    # Small shapes consistent with the module: RGB image input, small fc2.
    N, C, H, W = 2, 3, 16, 16
    C_MID, FC2, OUT_DIM = 8, 32, 6

    key = jax.random.PRNGKey(0)
    kx, kp = jax.random.split(key)
    x = jax.random.normal(kx, (N, C, H, W), jnp.float32)
    params = init_params(kp, c_in=C, c_mid=C_MID, fc2=FC2, out_dim=OUT_DIM)

    # Pack weights once (hoisted out of the per-call forward path).
    packed = jax.tree.map(jnp.asarray, pack_params_for_kernel(params))

    ang, var = gaze_static_multi_sincos_forward(
        x, packed, out_dim=OUT_DIM, b_tile=B_TILE, c_mid=C_MID, fc2=FC2)
    jax.block_until_ready(ang)
    jax.block_until_ready(var)

    ang_ref, var_ref = reference_forward(x, params, out_dim=OUT_DIM)

    assert ang.shape == (N, OUT_DIM - 1) and var.shape == (N, OUT_DIM - 1)
    assert bool(jnp.all(jnp.abs(ang) <= 1.0))                # tanh range
    assert bool(jnp.all((var > 0.0) & (var < 1.0)))          # sigmoid range
    assert bool(jnp.allclose(ang, ang_ref, atol=5e-2, rtol=5e-2))
    assert bool(jnp.allclose(var, var_ref, atol=5e-2, rtol=5e-2))
    print("KERNEL_OK")
</pallas_src>

<mosaic_0001>
module attributes {stable_mosaic.version = 11 : i64} {
  func.func @fused_backbone_head_kernel(%arg0: i32, %arg1: memref<8x256x32xbf16, #tpu.memory_space<vmem>>, %arg2: memref<32x128xbf16, #tpu.memory_space<vmem>>, %arg3: memref<1x128xf32, #tpu.memory_space<vmem>>, %arg4: memref<128x128xbf16, #tpu.memory_space<vmem>>, %arg5: memref<1x128xf32, #tpu.memory_space<vmem>>, %arg6: memref<128x128xbf16, #tpu.memory_space<vmem>>, %arg7: memref<1x128xf32, #tpu.memory_space<vmem>>, %arg8: memref<8x128xf32, #tpu.memory_space<vmem>>) attributes {dimension_semantics = [#tpu.dimension_semantics<parallel>], iteration_bounds = array<i64: 1>, scalar_prefetch = 0 : i64, scratch_operands = 0 : i64, tpu.core_type = #tpu.core_type<tc>, window_params = [{transform_indices = @transform_0, window_bounds = array<i64: 8, 256, 32>}, {pipeline_mode = #tpu.pipeline_mode<synchronous>, transform_indices = @transform_1, window_bounds = array<i64: 32, 128>}, {pipeline_mode = #tpu.pipeline_mode<synchronous>, transform_indices = @transform_2, window_bounds = array<i64: 1, 128>}, {pipeline_mode = #tpu.pipeline_mode<synchronous>, transform_indices = @transform_3, window_bounds = array<i64: 128, 128>}, {pipeline_mode = #tpu.pipeline_mode<synchronous>, transform_indices = @transform_4, window_bounds = array<i64: 1, 128>}, {pipeline_mode = #tpu.pipeline_mode<synchronous>, transform_indices = @transform_5, window_bounds = array<i64: 128, 128>}, {pipeline_mode = #tpu.pipeline_mode<synchronous>, transform_indices = @transform_6, window_bounds = array<i64: 1, 128>}, {transform_indices = @transform_7, window_bounds = array<i64: 8, 128>}]} {
    %c0 = arith.constant 0 : index
    %c0_0 = arith.constant 0 : index
    %c0_1 = arith.constant 0 : index
    %0 = vector.load %arg1[%c0, %c0_0, %c0_1] : memref<8x256x32xbf16, #tpu.memory_space<vmem>>, vector<1x256x32xbf16>
    %1 = vector.shape_cast %0 : vector<1x256x32xbf16> to vector<256x32xbf16>
    %c0_2 = arith.constant 0 : index
    %c0_3 = arith.constant 0 : index
    %2 = vector.load %arg2[%c0_2, %c0_3] : memref<32x128xbf16, #tpu.memory_space<vmem>>, vector<32x128xbf16>
    %cst = arith.constant dense<0.000000e+00> : vector<256x128xf32>
    %3 = tpu.matmul %1, %2, %cst {dimension_numbers = #tpu.dot_dimension_numbers<[1], [0], [0], [1], [0, 0, 1, 1], [], []>} : vector<256x32xbf16>, vector<32x128xbf16>, vector<256x128xf32> -> vector<256x128xf32>
    %c0_4 = arith.constant 0 : index
    %c0_5 = arith.constant 0 : index
    %4 = vector.load %arg3[%c0_4, %c0_5] : memref<1x128xf32, #tpu.memory_space<vmem>>, vector<1x128xf32>
    %5 = vector.broadcast %4 : vector<1x128xf32> to vector<256x128xf32>
    %6 = arith.addf %3, %5 : vector<256x128xf32>
    %cst_6 = arith.constant 0.000000e+00 : f32
    %7 = vector.broadcast %cst_6 : f32 to vector<256x128xf32>
    %8 = arith.maximumf %6, %7 : vector<256x128xf32>
    %cst_7 = arith.constant dense<0.000000e+00> : vector<128xf32>
    %9 = vector.multi_reduction <add>, %8, %cst_7 [0] : vector<256x128xf32> to vector<128xf32>
    %10 = vector.shape_cast %9 : vector<128xf32> to vector<1x128xf32>
    %cst_8 = arith.constant 3.906250e-03 : f32
    %11 = vector.broadcast %cst_8 : f32 to vector<1x128xf32>
    %12 = arith.mulf %10, %11 : vector<1x128xf32>
    %c1 = arith.constant 1 : index
    %c0_9 = arith.constant 0 : index
    %c0_10 = arith.constant 0 : index
    %13 = vector.load %arg1[%c1, %c0_9, %c0_10] : memref<8x256x32xbf16, #tpu.memory_space<vmem>>, vector<1x256x32xbf16>
    %14 = vector.shape_cast %13 : vector<1x256x32xbf16> to vector<256x32xbf16>
    %c0_11 = arith.constant 0 : index
    %c0_12 = arith.constant 0 : index
    %15 = vector.load %arg2[%c0_11, %c0_12] : memref<32x128xbf16, #tpu.memory_space<vmem>>, vector<32x128xbf16>
    %cst_13 = arith.constant dense<0.000000e+00> : vector<256x128xf32>
    %16 = tpu.matmul %14, %15, %cst_13 {dimension_numbers = #tpu.dot_dimension_numbers<[1], [0], [0], [1], [0, 0, 1, 1], [], []>} : vector<256x32xbf16>, vector<32x128xbf16>, vector<256x128xf32> -> vector<256x128xf32>
    %c0_14 = arith.constant 0 : index
    %c0_15 = arith.constant 0 : index
    %17 = vector.load %arg3[%c0_14, %c0_15] : memref<1x128xf32, #tpu.memory_space<vmem>>, vector<1x128xf32>
    %18 = vector.broadcast %17 : vector<1x128xf32> to vector<256x128xf32>
    %19 = arith.addf %16, %18 : vector<256x128xf32>
    %cst_16 = arith.constant 0.000000e+00 : f32
    %20 = vector.broadcast %cst_16 : f32 to vector<256x128xf32>
    %21 = arith.maximumf %19, %20 : vector<256x128xf32>
    %cst_17 = arith.constant dense<0.000000e+00> : vector<128xf32>
    %22 = vector.multi_reduction <add>, %21, %cst_17 [0] : vector<256x128xf32> to vector<128xf32>
    %23 = vector.shape_cast %22 : vector<128xf32> to vector<1x128xf32>
    %cst_18 = arith.constant 3.906250e-03 : f32
    %24 = vector.broadcast %cst_18 : f32 to vector<1x128xf32>
    %25 = arith.mulf %23, %24 : vector<1x128xf32>
    %c2 = arith.constant 2 : index
    %c0_19 = arith.constant 0 : index
    %c0_20 = arith.constant 0 : index
    %26 = vector.load %arg1[%c2, %c0_19, %c0_20] : memref<8x256x32xbf16, #tpu.memory_space<vmem>>, vector<1x256x32xbf16>
    %27 = vector.shape_cast %26 : vector<1x256x32xbf16> to vector<256x32xbf16>
    %c0_21 = arith.constant 0 : index
    %c0_22 = arith.constant 0 : index
    %28 = vector.load %arg2[%c0_21, %c0_22] : memref<32x128xbf16, #tpu.memory_space<vmem>>, vector<32x128xbf16>
    %cst_23 = arith.constant dense<0.000000e+00> : vector<256x128xf32>
    %29 = tpu.matmul %27, %28, %cst_23 {dimension_numbers = #tpu.dot_dimension_numbers<[1], [0], [0], [1], [0, 0, 1, 1], [], []>} : vector<256x32xbf16>, vector<32x128xbf16>, vector<256x128xf32> -> vector<256x128xf32>
    %c0_24 = arith.constant 0 : index
    %c0_25 = arith.constant 0 : index
    %30 = vector.load %arg3[%c0_24, %c0_25] : memref<1x128xf32, #tpu.memory_space<vmem>>, vector<1x128xf32>
    %31 = vector.broadcast %30 : vector<1x128xf32> to vector<256x128xf32>
    %32 = arith.addf %29, %31 : vector<256x128xf32>
    %cst_26 = arith.constant 0.000000e+00 : f32
    %33 = vector.broadcast %cst_26 : f32 to vector<256x128xf32>
    %34 = arith.maximumf %32, %33 : vector<256x128xf32>
    %cst_27 = arith.constant dense<0.000000e+00> : vector<128xf32>
    %35 = vector.multi_reduction <add>, %34, %cst_27 [0] : vector<256x128xf32> to vector<128xf32>
    %36 = vector.shape_cast %35 : vector<128xf32> to vector<1x128xf32>
    %cst_28 = arith.constant 3.906250e-03 : f32
    %37 = vector.broadcast %cst_28 : f32 to vector<1x128xf32>
    %38 = arith.mulf %36, %37 : vector<1x128xf32>
    %c3 = arith.constant 3 : index
    %c0_29 = arith.constant 0 : index
    %c0_30 = arith.constant 0 : index
    %39 = vector.load %arg1[%c3, %c0_29, %c0_30] : memref<8x256x32xbf16, #tpu.memory_space<vmem>>, vector<1x256x32xbf16>
    %40 = vector.shape_cast %39 : vector<1x256x32xbf16> to vector<256x32xbf16>
    %c0_31 = arith.constant 0 : index
    %c0_32 = arith.constant 0 : index
    %41 = vector.load %arg2[%c0_31, %c0_32] : memref<32x128xbf16, #tpu.memory_space<vmem>>, vector<32x128xbf16>
    %cst_33 = arith.constant dense<0.000000e+00> : vector<256x128xf32>
    %42 = tpu.matmul %40, %41, %cst_33 {dimension_numbers = #tpu.dot_dimension_numbers<[1], [0], [0], [1], [0, 0, 1, 1], [], []>} : vector<256x32xbf16>, vector<32x128xbf16>, vector<256x128xf32> -> vector<256x128xf32>
    %c0_34 = arith.constant 0 : index
    %c0_35 = arith.constant 0 : index
    %43 = vector.load %arg3[%c0_34, %c0_35] : memref<1x128xf32, #tpu.memory_space<vmem>>, vector<1x128xf32>
    %44 = vector.broadcast %43 : vector<1x128xf32> to vector<256x128xf32>
    %45 = arith.addf %42, %44 : vector<256x128xf32>
    %cst_36 = arith.constant 0.000000e+00 : f32
    %46 = vector.broadcast %cst_36 : f32 to vector<256x128xf32>
    %47 = arith.maximumf %45, %46 : vector<256x128xf32>
    %cst_37 = arith.constant dense<0.000000e+00> : vector<128xf32>
    %48 = vector.multi_reduction <add>, %47, %cst_37 [0] : vector<256x128xf32> to vector<128xf32>
    %49 = vector.shape_cast %48 : vector<128xf32> to vector<1x128xf32>
    %cst_38 = arith.constant 3.906250e-03 : f32
    %50 = vector.broadcast %cst_38 : f32 to vector<1x128xf32>
    %51 = arith.mulf %49, %50 : vector<1x128xf32>
    %c4 = arith.constant 4 : index
    %c0_39 = arith.constant 0 : index
    %c0_40 = arith.constant 0 : index
    %52 = vector.load %arg1[%c4, %c0_39, %c0_40] : memref<8x256x32xbf16, #tpu.memory_space<vmem>>, vector<1x256x32xbf16>
    %53 = vector.shape_cast %52 : vector<1x256x32xbf16> to vector<256x32xbf16>
    %c0_41 = arith.constant 0 : index
    %c0_42 = arith.constant 0 : index
    %54 = vector.load %arg2[%c0_41, %c0_42] : memref<32x128xbf16, #tpu.memory_space<vmem>>, vector<32x128xbf16>
    %cst_43 = arith.constant dense<0.000000e+00> : vector<256x128xf32>
    %55 = tpu.matmul %53, %54, %cst_43 {dimension_numbers = #tpu.dot_dimension_numbers<[1], [0], [0], [1], [0, 0, 1, 1], [], []>} : vector<256x32xbf16>, vector<32x128xbf16>, vector<256x128xf32> -> vector<256x128xf32>
    %c0_44 = arith.constant 0 : index
    %c0_45 = arith.constant 0 : index
    %56 = vector.load %arg3[%c0_44, %c0_45] : memref<1x128xf32, #tpu.memory_space<vmem>>, vector<1x128xf32>
    %57 = vector.broadcast %56 : vector<1x128xf32> to vector<256x128xf32>
    %58 = arith.addf %55, %57 : vector<256x128xf32>
    %cst_46 = arith.constant 0.000000e+00 : f32
    %59 = vector.broadcast %cst_46 : f32 to vector<256x128xf32>
    %60 = arith.maximumf %58, %59 : vector<256x128xf32>
    %cst_47 = arith.constant dense<0.000000e+00> : vector<128xf32>
    %61 = vector.multi_reduction <add>, %60, %cst_47 [0] : vector<256x128xf32> to vector<128xf32>
    %62 = vector.shape_cast %61 : vector<128xf32> to vector<1x128xf32>
    %cst_48 = arith.constant 3.906250e-03 : f32
    %63 = vector.broadcast %cst_48 : f32 to vector<1x128xf32>
    %64 = arith.mulf %62, %63 : vector<1x128xf32>
    %c5 = arith.constant 5 : index
    %c0_49 = arith.constant 0 : index
    %c0_50 = arith.constant 0 : index
    %65 = vector.load %arg1[%c5, %c0_49, %c0_50] : memref<8x256x32xbf16, #tpu.memory_space<vmem>>, vector<1x256x32xbf16>
    %66 = vector.shape_cast %65 : vector<1x256x32xbf16> to vector<256x32xbf16>
    %c0_51 = arith.constant 0 : index
    %c0_52 = arith.constant 0 : index
    %67 = vector.load %arg2[%c0_51, %c0_52] : memref<32x128xbf16, #tpu.memory_space<vmem>>, vector<32x128xbf16>
    %cst_53 = arith.constant dense<0.000000e+00> : vector<256x128xf32>
    %68 = tpu.matmul %66, %67, %cst_53 {dimension_numbers = #tpu.dot_dimension_numbers<[1], [0], [0], [1], [0, 0, 1, 1], [], []>} : vector<256x32xbf16>, vector<32x128xbf16>, vector<256x128xf32> -> vector<256x128xf32>
    %c0_54 = arith.constant 0 : index
    %c0_55 = arith.constant 0 : index
    %69 = vector.load %arg3[%c0_54, %c0_55] : memref<1x128xf32, #tpu.memory_space<vmem>>, vector<1x128xf32>
    %70 = vector.broadcast %69 : vector<1x128xf32> to vector<256x128xf32>
    %71 = arith.addf %68, %70 : vector<256x128xf32>
    %cst_56 = arith.constant 0.000000e+00 : f32
    %72 = vector.broadcast %cst_56 : f32 to vector<256x128xf32>
    %73 = arith.maximumf %71, %72 : vector<256x128xf32>
    %cst_57 = arith.constant dense<0.000000e+00> : vector<128xf32>
    %74 = vector.multi_reduction <add>, %73, %cst_57 [0] : vector<256x128xf32> to vector<128xf32>
    %75 = vector.shape_cast %74 : vector<128xf32> to vector<1x128xf32>
    %cst_58 = arith.constant 3.906250e-03 : f32
    %76 = vector.broadcast %cst_58 : f32 to vector<1x128xf32>
    %77 = arith.mulf %75, %76 : vector<1x128xf32>
    %c6 = arith.constant 6 : index
    %c0_59 = arith.constant 0 : index
    %c0_60 = arith.constant 0 : index
    %78 = vector.load %arg1[%c6, %c0_59, %c0_60] : memref<8x256x32xbf16, #tpu.memory_space<vmem>>, vector<1x256x32xbf16>
    %79 = vector.shape_cast %78 : vector<1x256x32xbf16> to vector<256x32xbf16>
    %c0_61 = arith.constant 0 : index
    %c0_62 = arith.constant 0 : index
    %80 = vector.load %arg2[%c0_61, %c0_62] : memref<32x128xbf16, #tpu.memory_space<vmem>>, vector<32x128xbf16>
    %cst_63 = arith.constant dense<0.000000e+00> : vector<256x128xf32>
    %81 = tpu.matmul %79, %80, %cst_63 {dimension_numbers = #tpu.dot_dimension_numbers<[1], [0], [0], [1], [0, 0, 1, 1], [], []>} : vector<256x32xbf16>, vector<32x128xbf16>, vector<256x128xf32> -> vector<256x128xf32>
    %c0_64 = arith.constant 0 : index
    %c0_65 = arith.constant 0 : index
    %82 = vector.load %arg3[%c0_64, %c0_65] : memref<1x128xf32, #tpu.memory_space<vmem>>, vector<1x128xf32>
    %83 = vector.broadcast %82 : vector<1x128xf32> to vector<256x128xf32>
    %84 = arith.addf %81, %83 : vector<256x128xf32>
    %cst_66 = arith.constant 0.000000e+00 : f32
    %85 = vector.broadcast %cst_66 : f32 to vector<256x128xf32>
    %86 = arith.maximumf %84, %85 : vector<256x128xf32>
    %cst_67 = arith.constant dense<0.000000e+00> : vector<128xf32>
    %87 = vector.multi_reduction <add>, %86, %cst_67 [0] : vector<256x128xf32> to vector<128xf32>
    %88 = vector.shape_cast %87 : vector<128xf32> to vector<1x128xf32>
    %cst_68 = arith.constant 3.906250e-03 : f32
    %89 = vector.broadcast %cst_68 : f32 to vector<1x128xf32>
    %90 = arith.mulf %88, %89 : vector<1x128xf32>
    %c7 = arith.constant 7 : index
    %c0_69 = arith.constant 0 : index
    %c0_70 = arith.constant 0 : index
    %91 = vector.load %arg1[%c7, %c0_69, %c0_70] : memref<8x256x32xbf16, #tpu.memory_space<vmem>>, vector<1x256x32xbf16>
    %92 = vector.shape_cast %91 : vector<1x256x32xbf16> to vector<256x32xbf16>
    %c0_71 = arith.constant 0 : index
    %c0_72 = arith.constant 0 : index
    %93 = vector.load %arg2[%c0_71, %c0_72] : memref<32x128xbf16, #tpu.memory_space<vmem>>, vector<32x128xbf16>
    %cst_73 = arith.constant dense<0.000000e+00> : vector<256x128xf32>
    %94 = tpu.matmul %92, %93, %cst_73 {dimension_numbers = #tpu.dot_dimension_numbers<[1], [0], [0], [1], [0, 0, 1, 1], [], []>} : vector<256x32xbf16>, vector<32x128xbf16>, vector<256x128xf32> -> vector<256x128xf32>
    %c0_74 = arith.constant 0 : index
    %c0_75 = arith.constant 0 : index
    %95 = vector.load %arg3[%c0_74, %c0_75] : memref<1x128xf32, #tpu.memory_space<vmem>>, vector<1x128xf32>
    %96 = vector.broadcast %95 : vector<1x128xf32> to vector<256x128xf32>
    %97 = arith.addf %94, %96 : vector<256x128xf32>
    %cst_76 = arith.constant 0.000000e+00 : f32
    %98 = vector.broadcast %cst_76 : f32 to vector<256x128xf32>
    %99 = arith.maximumf %97, %98 : vector<256x128xf32>
    %cst_77 = arith.constant dense<0.000000e+00> : vector<128xf32>
    %100 = vector.multi_reduction <add>, %99, %cst_77 [0] : vector<256x128xf32> to vector<128xf32>
    %101 = vector.shape_cast %100 : vector<128xf32> to vector<1x128xf32>
    %cst_78 = arith.constant 3.906250e-03 : f32
    %102 = vector.broadcast %cst_78 : f32 to vector<1x128xf32>
    %103 = arith.mulf %101, %102 : vector<1x128xf32>
    %104 = tpu.concatenate %12, %25, %38, %51, %64, %77, %90, %103 in 0 : vector<1x128xf32>, vector<1x128xf32>, vector<1x128xf32>, vector<1x128xf32>, vector<1x128xf32>, vector<1x128xf32>, vector<1x128xf32>, vector<1x128xf32> -> vector<8x128xf32>
    %105 = arith.truncf %104 : vector<8x128xf32> to vector<8x128xbf16>
    %c0_79 = arith.constant 0 : index
    %c0_80 = arith.constant 0 : index
    %106 = vector.load %arg4[%c0_79, %c0_80] : memref<128x128xbf16, #tpu.memory_space<vmem>>, vector<128x128xbf16>
    %cst_81 = arith.constant dense<0.000000e+00> : vector<8x128xf32>
    %107 = tpu.matmul %105, %106, %cst_81 {dimension_numbers = #tpu.dot_dimension_numbers<[1], [0], [0], [1], [0, 0, 1, 1], [], []>} : vector<8x128xbf16>, vector<128x128xbf16>, vector<8x128xf32> -> vector<8x128xf32>
    %c0_82 = arith.constant 0 : index
    %c0_83 = arith.constant 0 : index
    %108 = vector.load %arg5[%c0_82, %c0_83] : memref<1x128xf32, #tpu.memory_space<vmem>>, vector<1x128xf32>
    %109 = vector.broadcast %108 : vector<1x128xf32> to vector<8x128xf32>
    %110 = arith.addf %107, %109 : vector<8x128xf32>
    %cst_84 = arith.constant 0.000000e+00 : f32
    %111 = vector.broadcast %cst_84 : f32 to vector<8x128xf32>
    %112 = arith.maximumf %110, %111 : vector<8x128xf32>
    %113 = arith.truncf %112 : vector<8x128xf32> to vector<8x128xbf16>
    %c0_85 = arith.constant 0 : index
    %c0_86 = arith.constant 0 : index
    %114 = vector.load %arg6[%c0_85, %c0_86] : memref<128x128xbf16, #tpu.memory_space<vmem>>, vector<128x128xbf16>
    %cst_87 = arith.constant dense<0.000000e+00> : vector<8x128xf32>
    %115 = tpu.matmul %113, %114, %cst_87 {dimension_numbers = #tpu.dot_dimension_numbers<[1], [0], [0], [1], [0, 0, 1, 1], [], []>} : vector<8x128xbf16>, vector<128x128xbf16>, vector<8x128xf32> -> vector<8x128xf32>
    %c0_88 = arith.constant 0 : index
    %c0_89 = arith.constant 0 : index
    %116 = vector.load %arg7[%c0_88, %c0_89] : memref<1x128xf32, #tpu.memory_space<vmem>>, vector<1x128xf32>
    %117 = vector.broadcast %116 : vector<1x128xf32> to vector<8x128xf32>
    %118 = arith.addf %115, %117 : vector<8x128xf32>
    %119 = tpu.iota {dimensions = array<i32: 1>} : vector<8x128xi32>
    %c5_i32 = arith.constant 5 : i32
    %120 = vector.broadcast %c5_i32 : i32 to vector<8x128xi32>
    %121 = arith.cmpi slt, %119, %120 : vector<8x128xi32>
    %122 = math.tanh %118 : vector<8x128xf32>
    %c5_i32_90 = arith.constant 5 : i32
    %123 = vector.broadcast %c5_i32_90 : i32 to vector<8x128xi32>
    %124 = arith.cmpi eq, %119, %123 : vector<8x128xi32>
    %125 = arith.negf %118 : vector<8x128xf32>
    %126 = math.exp %125 : vector<8x128xf32>
    %cst_91 = arith.constant 1.000000e+00 : f32
    %127 = vector.broadcast %cst_91 : f32 to vector<8x128xf32>
    %128 = arith.addf %127, %126 : vector<8x128xf32>
    %129 = arith.divf %127, %128 : vector<8x128xf32>
    %cst_92 = arith.constant 0.000000e+00 : f32
    %130 = vector.broadcast %cst_92 : f32 to vector<8x128xf32>
    %131 = arith.select %124, %129, %130 : vector<8x128xi1>, vector<8x128xf32>
    %132 = arith.select %121, %122, %131 : vector<8x128xi1>, vector<8x128xf32>
    %c0_93 = arith.constant 0 : index
    %c0_94 = arith.constant 0 : index
    %133 = vector.load %arg8[%c0_93, %c0_94] : memref<8x128xf32, #tpu.memory_space<vmem>>, vector<8x128xf32>
    tpu.vector_store %arg8[%c0_93, %c0_94], %132 {strides = array<i32>} : memref<8x128xf32, #tpu.memory_space<vmem>>, vector<8x128xf32>,
    return
  }
  func.func @transform_0(%arg0: i32) -> (i32, i32, i32) {
    %c0_i32 = arith.constant 0 : i32
    %c0_i32_0 = arith.constant 0 : i32
    %c0_i32_1 = arith.constant 0 : i32
    return %arg0, %c0_i32, %c0_i32_0 : i32, i32, i32
  }
  func.func @transform_1(%arg0: i32) -> (i32, i32) {
    %c0_i32 = arith.constant 0 : i32
    %c0_i32_0 = arith.constant 0 : i32
    %c0_i32_1 = arith.constant 0 : i32
    return %c0_i32, %c0_i32_0 : i32, i32
  }
  func.func @transform_2(%arg0: i32) -> (i32, i32) {
    %c0_i32 = arith.constant 0 : i32
    %c0_i32_0 = arith.constant 0 : i32
    %c0_i32_1 = arith.constant 0 : i32
    return %c0_i32, %c0_i32_0 : i32, i32
  }
  func.func @transform_3(%arg0: i32) -> (i32, i32) {
    %c0_i32 = arith.constant 0 : i32
    %c0_i32_0 = arith.constant 0 : i32
    %c0_i32_1 = arith.constant 0 : i32
    return %c0_i32, %c0_i32_0 : i32, i32
  }
  func.func @transform_4(%arg0: i32) -> (i32, i32) {
    %c0_i32 = arith.constant 0 : i32
    %c0_i32_0 = arith.constant 0 : i32
    %c0_i32_1 = arith.constant 0 : i32
    return %c0_i32, %c0_i32_0 : i32, i32
  }
  func.func @transform_5(%arg0: i32) -> (i32, i32) {
    %c0_i32 = arith.constant 0 : i32
    %c0_i32_0 = arith.constant 0 : i32
    %c0_i32_1 = arith.constant 0 : i32
    return %c0_i32, %c0_i32_0 : i32, i32
  }
  func.func @transform_6(%arg0: i32) -> (i32, i32) {
    %c0_i32 = arith.constant 0 : i32
    %c0_i32_0 = arith.constant 0 : i32
    %c0_i32_1 = arith.constant 0 : i32
    return %c0_i32, %c0_i32_0 : i32, i32
  }
  func.func @transform_7(%arg0: i32) -> (i32, i32) {
    %c0_i32 = arith.constant 0 : i32
    %c0_i32_0 = arith.constant 0 : i32
    return %arg0, %c0_i32 : i32, i32
  }
}

</mosaic_0001>

<llo_original>
// kernel: gaze_static_multi_sincos_forward.1
$region0: #{gaze_static_multi_sincos_forward.1}
  #allocation0 [shape = 'u32[]', space=smem, size = 0x4, offset = 0x4, fixed_abs, tag = 'smem constant byte address 0x4 - core index']
  #allocation1 [shape = 'u32[144,128]{1,0:T(1,128)}', space=vmem, size = 0x12000, scoped, tag = 'internal scratch']
  %s0 = inlined_call_operand.vmem [shape: bf16[8,256,32], index: 0, kind: input, shape index: {}]
  %s1 = inlined_call_operand.vmem [shape: bf16[32,128], index: 1, kind: input, shape index: {}]
  %s2 = inlined_call_operand.vmem [shape: f32[1,128], index: 2, kind: input, shape index: {}]
  %s3 = inlined_call_operand.vmem [shape: bf16[128,128], index: 3, kind: input, shape index: {}]
  %s4 = inlined_call_operand.vmem [shape: f32[1,128], index: 4, kind: input, shape index: {}]
  %s5 = inlined_call_operand.vmem [shape: bf16[128,128], index: 5, kind: input, shape index: {}]
  %s6 = inlined_call_operand.vmem [shape: f32[1,128], index: 6, kind: input, shape index: {}]
  %s7 = inlined_call_operand.vmem [shape: f32[8,128], index: 7, kind: output, shape index: {}]
  %s8 = sld [smem:[#allocation0]]
  $region38: #{gaze_static_multi_sincos_forward.1} parent=0
    _
  %s10 = ssub.s32 1, %s8
  %s11 = scalar_select 0, %s10, %s8
  // Predicated region
  $region2: #{gaze_static_multi_sincos_forward.1} parent=0 // pred_check
    _
  $region3: #{gaze_static_multi_sincos_forward.1} parent=0 // pred_check_branch
    %13 = sbr.rel (0) target = $region5
  $region4: #{gaze_static_multi_sincos_forward.1} parent=0 // pred_region
    _
  $region5: #{gaze_static_multi_sincos_forward.1} parent=0 // pred_fallthru
    _
  // Predicated region
  $region6: #{gaze_static_multi_sincos_forward.1} parent=0 // pred_check
    _
  $region7: #{gaze_static_multi_sincos_forward.1} parent=0 // pred_check_branch
    %15 = sbr.rel (0) target = $region9
  $region8: #{gaze_static_multi_sincos_forward.1} parent=0 // pred_region
    _
  $region9: #{gaze_static_multi_sincos_forward.1} parent=0 // pred_fallthru
    _
  // Predicated region
  $region10: #{gaze_static_multi_sincos_forward.1} parent=0 // pred_check
    _
  $region11: #{gaze_static_multi_sincos_forward.1} parent=0 // pred_check_branch
    %17 = sbr.rel (0) target = $region13
  $region12: #{gaze_static_multi_sincos_forward.1} parent=0 // pred_region
    _
  $region13: #{gaze_static_multi_sincos_forward.1} parent=0 // pred_fallthru
    _
  // Predicated region
  $region14: #{gaze_static_multi_sincos_forward.1} parent=0 // pred_check
    _
  $region15: #{gaze_static_multi_sincos_forward.1} parent=0 // pred_check_branch
    %19 = sbr.rel (0) target = $region17
  $region16: #{gaze_static_multi_sincos_forward.1} parent=0 // pred_region
    _
  $region17: #{gaze_static_multi_sincos_forward.1} parent=0 // pred_fallthru
    _
  // Predicated region
  $region18: #{gaze_static_multi_sincos_forward.1} parent=0 // pred_check
    _
  $region19: #{gaze_static_multi_sincos_forward.1} parent=0 // pred_check_branch
    %21 = sbr.rel (0) target = $region21
  $region20: #{gaze_static_multi_sincos_forward.1} parent=0 // pred_region
    _
  $region21: #{gaze_static_multi_sincos_forward.1} parent=0 // pred_fallthru
    _
  // Predicated region
  $region22: #{gaze_static_multi_sincos_forward.1} parent=0 // pred_check
    _
  $region23: #{gaze_static_multi_sincos_forward.1} parent=0 // pred_check_branch
    %23 = sbr.rel (0) target = $region25
  $region24: #{gaze_static_multi_sincos_forward.1} parent=0 // pred_region
    _
  $region25: #{gaze_static_multi_sincos_forward.1} parent=0 // pred_fallthru
    _
  // Predicated region
  $region26: #{gaze_static_multi_sincos_forward.1} parent=0 // pred_check
    _
  $region27: #{gaze_static_multi_sincos_forward.1} parent=0 // pred_check_branch
    %25 = sbr.rel (0) target = $region29
  $region28: #{gaze_static_multi_sincos_forward.1} parent=0 // pred_region
    _
  $region29: #{gaze_static_multi_sincos_forward.1} parent=0 // pred_fallthru
    _
  %v27 = vld [vmem:[%s0] sm:$0xf]
  %v28 = vld [vmem:[%s0 + $0x4] sm:$0xf]
  %v29 = vld [vmem:[%s0 + $0x8] sm:$0xf]
  %v30 = vld [vmem:[%s0 + $0xc] sm:$0xf]
  %v31 = vld [vmem:[%s0 + $0x10] sm:$0xf]
  %v32 = vld [vmem:[%s0 + $0x14] sm:$0xf]
  %v33 = vld [vmem:[%s0 + $0x18] sm:$0xf]
  %v34 = vld [vmem:[%s0 + $0x1c] sm:$0xf]
  %v35 = vld [vmem:[%s0 + $0x20] sm:$0xf]
  %v36 = vld [vmem:[%s0 + $0x24] sm:$0xf]
  %v37 = vld [vmem:[%s0 + $0x28] sm:$0xf]
  %v38 = vld [vmem:[%s0 + $0x2c] sm:$0xf]
  %v39 = vld [vmem:[%s0 + $0x30] sm:$0xf]
  %v40 = vld [vmem:[%s0 + $0x34] sm:$0xf]
  %v41 = vld [vmem:[%s0 + $0x38] sm:$0xf]
  %v42 = vld [vmem:[%s0 + $0x3c] sm:$0xf]
  %v43 = vld [vmem:[%s0 + $0x40] sm:$0xf]
  %v44 = vld [vmem:[%s0 + $0x44] sm:$0xf]
  %v45 = vld [vmem:[%s0 + $0x48] sm:$0xf]
  %v46 = vld [vmem:[%s0 + $0x4c] sm:$0xf]
  %v47 = vld [vmem:[%s0 + $0x50] sm:$0xf]
  %v48 = vld [vmem:[%s0 + $0x54] sm:$0xf]
  %v49 = vld [vmem:[%s0 + $0x58] sm:$0xf]
  %v50 = vld [vmem:[%s0 + $0x5c] sm:$0xf]
  %v51 = vld [vmem:[%s0 + $0x60] sm:$0xf]
  %v52 = vld [vmem:[%s0 + $0x64] sm:$0xf]
  %v53 = vld [vmem:[%s0 + $0x68] sm:$0xf]
  %v54 = vld [vmem:[%s0 + $0x6c] sm:$0xf]
  %v55 = vld [vmem:[%s0 + $0x70] sm:$0xf]
  %v56 = vld [vmem:[%s0 + $0x74] sm:$0xf]
  %v57 = vld [vmem:[%s0 + $0x78] sm:$0xf]
  %v58 = vld [vmem:[%s0 + $0x7c] sm:$0xf]
  %v59 = vld [vmem:[%s1] sm:$0xf]
  %v60 = vld [vmem:[%s1 + $0x4] sm:$0xf]
  %v61 = vld [vmem:[%s1 + $0x8] sm:$0xf]
  %v62 = vld [vmem:[%s1 + $0xc] sm:$0xf]
  %v63 = vld [vmem:[%s2] sm:$0x1]
  %v65 = vlaneseq
  %v66 = vshrl.u32 %v65, 7
  %v67 = vsub.s32 0, %v66
  %v68 = vrot.slane %v63, %v67
  %v102 = vunpack.c.l.b16 %v27
  %v103 = vunpack.c.l.b16 %v28
  %v104 = vunpack.c.l.b16 %v29
  %v105 = vunpack.c.l.b16 %v30
  %v106 = vunpack.c.l.b16 %v31
  %v107 = vunpack.c.l.b16 %v32
  %v108 = vunpack.c.l.b16 %v33
  %v109 = vunpack.c.l.b16 %v34
  %v110 = vunpack.c.l.b16 %v35
  %v111 = vunpack.c.l.b16 %v36
  %v112 = vunpack.c.l.b16 %v37
  %v113 = vunpack.c.l.b16 %v38
  %v114 = vunpack.c.l.b16 %v39
  %v115 = vunpack.c.l.b16 %v40
  %v116 = vunpack.c.l.b16 %v41
  %v117 = vunpack.c.l.b16 %v42
  %v118 = vunpack.c.l.b16 %v43
  %v119 = vunpack.c.l.b16 %v44
  %v120 = vunpack.c.l.b16 %v45
  %v121 = vunpack.c.l.b16 %v46
  %v122 = vunpack.c.l.b16 %v47
  %v123 = vunpack.c.l.b16 %v48
  %v124 = vunpack.c.l.b16 %v49
  %v125 = vunpack.c.l.b16 %v50
  %v126 = vunpack.c.l.b16 %v51
  %v127 = vunpack.c.l.b16 %v52
  %v128 = vunpack.c.l.b16 %v53
  %v129 = vunpack.c.l.b16 %v54
  %v130 = vunpack.c.l.b16 %v55
  %v131 = vunpack.c.l.b16 %v56
  %v132 = vunpack.c.l.b16 %v57
  %v133 = vunpack.c.l.b16 %v58
  %v134 = vpack.c.b16 %v103, %v102
  %v135 = vpack.c.b16 %v105, %v104
  %v136 = vpack.c.b16 %v107, %v106
  %v137 = vpack.c.b16 %v109, %v108
  %v138 = vpack.c.b16 %v111, %v110
  %v139 = vpack.c.b16 %v113, %v112
  %v140 = vpack.c.b16 %v115, %v114
  %v141 = vpack.c.b16 %v117, %v116
  %v142 = vpack.c.b16 %v119, %v118
  %v143 = vpack.c.b16 %v121, %v120
  %v144 = vpack.c.b16 %v123, %v122
  %v145 = vpack.c.b16 %v125, %v124
  %v146 = vpack.c.b16 %v127, %v126
  %v147 = vpack.c.b16 %v129, %v128
  %v148 = vpack.c.b16 %v131, %v130
  %v149 = vpack.c.b16 %v133, %v132
  %v154 = vunpack.c.l.b16 %v59
  %v155 = vunpack.c.l.b16 %v60
  %v156 = vunpack.c.l.b16 %v61
  %v157 = vunpack.c.l.b16 %v62
  %v158 = vpack.c.b16 %v155, %v154
  %v159 = vpack.c.b16 %v157, %v156
  %vm162 = vcmask 261120
  %v164 = vsel %vm162, %v134, 0
  %v167 = vsel %vm162, %v135, 0
  %v170 = vsel %vm162, %v136, 0
  %v173 = vsel %vm162, %v137, 0
  %v176 = vsel %vm162, %v138, 0
  %v179 = vsel %vm162, %v139, 0
  %v182 = vsel %vm162, %v140, 0
  %v185 = vsel %vm162, %v141, 0
  %v188 = vsel %vm162, %v142, 0
  %v191 = vsel %vm162, %v143, 0
  %v194 = vsel %vm162, %v144, 0
  %v197 = vsel %vm162, %v145, 0
  %v200 = vsel %vm162, %v146, 0
  %v203 = vsel %vm162, %v147, 0
  %v206 = vsel %vm162, %v148, 0
  %v209 = vsel %vm162, %v149, 0
  %211 = vmatprep.subr.bf16.mxu0 0
  %212 = vmatpush1.bf16.msra.mxu0 0
  %213 = vmatprep.subr.bf16.mxu0 0
  %214 = vmatpush1.bf16.msra.mxu0 0
  %215 = vmatprep.subr.bf16.mxu0 0
  %216 = vmatpush1.bf16.msra.mxu0 0
  %217 = vmatprep.subr.bf16.mxu0 0
  %218 = vmatpush1.bf16.msra.mxu0 0
  %219 = vmatprep.subr.bf16.mxu0 0
  %220 = vmatpush1.bf16.msra.mxu0 0
  %221 = vmatprep.subr.bf16.mxu0 0
  %222 = vmatpush1.bf16.msra.mxu0 0
  %223 = vmatprep.subr.bf16.mxu0 0
  %224 = vmatpush1.bf16.msra.mxu0 %v159
  %225 = vmatprep.subr.bf16.mxu0 0
  %226 = vmatpush1.bf16.msra.mxu0 %v158
  %227 = vmatprep.subr.bf16.mxu0 0
  %228 = vmatpush2.bf16.msra.mxu0 0
  %229 = vmatprep.subr.bf16.mxu0 0
  %230 = vmatpush2.bf16.msra.mxu0 0
  %231 = vmatprep.subr.bf16.mxu0 0
  %232 = vmatpush2.bf16.msra.mxu0 0
  %233 = vmatprep.subr.bf16.mxu0 0
  %234 = vmatpush2.bf16.msra.mxu0 0
  %235 = vmatprep.subr.bf16.mxu0 0
  %236 = vmatpush2.bf16.msra.mxu0 0
  %237 = vmatprep.subr.bf16.mxu0 0
  %238 = vmatpush2.bf16.msra.mxu0 0
  %239 = vmatprep.subr.bf16.mxu0 0
  %240 = vmatpush2.bf16.msra.mxu0 0
  %241 = vmatprep.subr.bf16.mxu0 0
  %242 = vmatpush2.bf16.msra.mxu0 0
  %243 = vmatprep.mubr.bf16.mxu0 0
  %244 = vmatmul.mubr.bf16.gmra.mxu0 %v164
  %v245 = vpop.f32.mrf.mxu0
  %v246 = vadd.f32 %v68, %v245
  %v247 = vpop.f32.mrf.mxu0
  %v248 = vpop.f32.mrf.mxu0
  %v249 = vadd.f32 %v68, %v248
  %v250 = vpop.f32.mrf.mxu0
  %251 = vmatprep.mubr.bf16.mxu0 0
  %252 = vmatmul.mubr.bf16.gmra.mxu0 %v167
  %v253 = vpop.f32.mrf.mxu0
  %v254 = vadd.f32 %v68, %v253
  %v255 = vpop.f32.mrf.mxu0
  %v256 = vpop.f32.mrf.mxu0
  %v257 = vadd.f32 %v68, %v256
  %v258 = vpop.f32.mrf.mxu0
  %259 = vmatprep.mubr.bf16.mxu0 0
  %260 = vmatmul.mubr.bf16.gmra.mxu0 %v170
  %v261 = vpop.f32.mrf.mxu0
  %v262 = vadd.f32 %v68, %v261
  %v263 = vpop.f32.mrf.mxu0
  %v264 = vpop.f32.mrf.mxu0
  %v265 = vadd.f32 %v68, %v264
  %v266 = vpop.f32.mrf.mxu0
  %267 = vmatprep.mubr.bf16.mxu0 0
  %268 = vmatmul.mubr.bf16.gmra.mxu0 %v173
  %v269 = vpop.f32.mrf.mxu0
  %v270 = vadd.f32 %v68, %v269
  %v271 = vpop.f32.mrf.mxu0
  %v272 = vpop.f32.mrf.mxu0
  %v273 = vadd.f32 %v68, %v272
  %v274 = vpop.f32.mrf.mxu0
  %275 = vmatprep.mubr.bf16.mxu0 0
  %276 = vmatmul.mubr.bf16.gmra.mxu0 %v176
  %v277 = vpop.f32.mrf.mxu0
  %v278 = vadd.f32 %v68, %v277
  %v279 = vpop.f32.mrf.mxu0
  %v280 = vpop.f32.mrf.mxu0
  %v281 = vadd.f32 %v68, %v280
  %v282 = vpop.f32.mrf.mxu0
  %283 = vmatprep.mubr.bf16.mxu0 0
  %284 = vmatmul.mubr.bf16.gmra.mxu0 %v179
  %v285 = vpop.f32.mrf.mxu0
  %v286 = vadd.f32 %v68, %v285
  %v287 = vpop.f32.mrf.mxu0
  %v288 = vpop.f32.mrf.mxu0
  %v289 = vadd.f32 %v68, %v288
  %v290 = vpop.f32.mrf.mxu0
  %291 = vmatprep.mubr.bf16.mxu0 0
  %292 = vmatmul.mubr.bf16.gmra.mxu0 %v182
  %v293 = vpop.f32.mrf.mxu0
  %v294 = vadd.f32 %v68, %v293
  %v295 = vpop.f32.mrf.mxu0
  %v296 = vpop.f32.mrf.mxu0
  %v297 = vadd.f32 %v68, %v296
  %v298 = vpop.f32.mrf.mxu0
  %299 = vmatprep.mubr.bf16.mxu0 0
  %300 = vmatmul.mubr.bf16.gmra.mxu0 %v185
  %v301 = vpop.f32.mrf.mxu0
  %v302 = vadd.f32 %v68, %v301
  %v303 = vpop.f32.mrf.mxu0
  %v304 = vpop.f32.mrf.mxu0
  %v305 = vadd.f32 %v68, %v304
  %v306 = vpop.f32.mrf.mxu0
  %307 = vmatprep.mubr.bf16.mxu0 0
  %308 = vmatmul.mubr.bf16.gmra.mxu0 %v188
  %v309 = vpop.f32.mrf.mxu0
  %v310 = vadd.f32 %v68, %v309
  %v311 = vpop.f32.mrf.mxu0
  %v312 = vpop.f32.mrf.mxu0
  %v313 = vadd.f32 %v68, %v312
  %v314 = vpop.f32.mrf.mxu0
  %315 = vmatprep.mubr.bf16.mxu0 0
  %316 = vmatmul.mubr.bf16.gmra.mxu0 %v191
  %v317 = vpop.f32.mrf.mxu0
  %v318 = vadd.f32 %v68, %v317
  %v319 = vpop.f32.mrf.mxu0
  %v320 = vpop.f32.mrf.mxu0
  %v321 = vadd.f32 %v68, %v320
  %v322 = vpop.f32.mrf.mxu0
  %323 = vmatprep.mubr.bf16.mxu0 0
  %324 = vmatmul.mubr.bf16.gmra.mxu0 %v194
  %v325 = vpop.f32.mrf.mxu0
  %v326 = vadd.f32 %v68, %v325
  %v327 = vpop.f32.mrf.mxu0
  %v328 = vpop.f32.mrf.mxu0
  %v329 = vadd.f32 %v68, %v328
  %v330 = vpop.f32.mrf.mxu0
  %331 = vmatprep.mubr.bf16.mxu0 0
  %332 = vmatmul.mubr.bf16.gmra.mxu0 %v197
  %v333 = vpop.f32.mrf.mxu0
  %v334 = vadd.f32 %v68, %v333
  %v335 = vpop.f32.mrf.mxu0
  %v336 = vpop.f32.mrf.mxu0
  %v337 = vadd.f32 %v68, %v336
  %v338 = vpop.f32.mrf.mxu0
  %339 = vmatprep.mubr.bf16.mxu0 0
  %340 = vmatmul.mubr.bf16.gmra.mxu0 %v200
  %v341 = vpop.f32.mrf.mxu0
  %v342 = vadd.f32 %v68, %v341
  %v343 = vpop.f32.mrf.mxu0
  %v344 = vpop.f32.mrf.mxu0
  %v345 = vadd.f32 %v68, %v344
  %v346 = vpop.f32.mrf.mxu0
  %347 = vmatprep.mubr.bf16.mxu0 0
  %348 = vmatmul.mubr.bf16.gmra.mxu0 %v203
  %v349 = vpop.f32.mrf.mxu0
  %v350 = vadd.f32 %v68, %v349
  %v351 = vpop.f32.mrf.mxu0
  %v352 = vpop.f32.mrf.mxu0
  %v353 = vadd.f32 %v68, %v352
  %v354 = vpop.f32.mrf.mxu0
  %355 = vmatprep.mubr.bf16.mxu0 0
  %356 = vmatmul.mubr.bf16.gmra.mxu0 %v206
  %v357 = vpop.f32.mrf.mxu0
  %v358 = vadd.f32 %v68, %v357
  %v359 = vpop.f32.mrf.mxu0
  %v360 = vpop.f32.mrf.mxu0
  %v361 = vadd.f32 %v68, %v360
  %v362 = vpop.f32.mrf.mxu0
  %363 = vmatprep.mubr.bf16.mxu0 0
  %364 = vmatmul.mubr.bf16.gmra.mxu0 %v209
  %v365 = vpop.f32.mrf.mxu0
  %v366 = vadd.f32 %v68, %v365
  %v367 = vpop.f32.mrf.mxu0
  %v368 = vpop.f32.mrf.mxu0
  %v369 = vadd.f32 %v68, %v368
  %v370 = vpop.f32.mrf.mxu0
  %371 = vdwg.mxu0
  %v372 = vmax.f32 %v246, 0.0
  %v373 = vmax.f32 %v249, 0.0
  %v374 = vmax.f32 %v254, 0.0
  %v375 = vmax.f32 %v257, 0.0
  %v376 = vmax.f32 %v262, 0.0
  %v377 = vmax.f32 %v265, 0.0
  %v378 = vmax.f32 %v270, 0.0
  %v379 = vmax.f32 %v273, 0.0
  %v380 = vmax.f32 %v278, 0.0
  %v381 = vmax.f32 %v281, 0.0
  %v382 = vmax.f32 %v286, 0.0
  %v383 = vmax.f32 %v289, 0.0
  %v384 = vmax.f32 %v294, 0.0
  %v385 = vmax.f32 %v297, 0.0
  %v386 = vmax.f32 %v302, 0.0
  %v387 = vmax.f32 %v305, 0.0
  %v388 = vmax.f32 %v310, 0.0
  %v389 = vmax.f32 %v313, 0.0
  %v390 = vmax.f32 %v318, 0.0
  %v391 = vmax.f32 %v321, 0.0
  %v392 = vmax.f32 %v326, 0.0
  %v393 = vmax.f32 %v329, 0.0
  %v394 = vmax.f32 %v334, 0.0
  %v395 = vmax.f32 %v337, 0.0
  %v396 = vmax.f32 %v342, 0.0
  %v397 = vmax.f32 %v345, 0.0
  %v398 = vmax.f32 %v350, 0.0
  %v399 = vmax.f32 %v353, 0.0
  %v400 = vmax.f32 %v358, 0.0
  %v401 = vmax.f32 %v361, 0.0
  %v402 = vmax.f32 %v366, 0.0
  %v403 = vmax.f32 %v369, 0.0
  %v404 = vadd.f32 %v372, %v373
  %v405 = vadd.f32 %v404, %v374
  %v406 = vadd.f32 %v405, %v375
  %v407 = vadd.f32 %v406, %v376
  %v408 = vadd.f32 %v407, %v377
  %v409 = vadd.f32 %v408, %v378
  %v410 = vadd.f32 %v409, %v379
  %v411 = vadd.f32 %v410, %v380
  %v412 = vadd.f32 %v411, %v381
  %v413 = vadd.f32 %v412, %v382
  %v414 = vadd.f32 %v413, %v383
  %v415 = vadd.f32 %v414, %v384
  %v416 = vadd.f32 %v415, %v385
  %v417 = vadd.f32 %v416, %v386
  %v418 = vadd.f32 %v417, %v387
  %v419 = vadd.f32 %v418, %v388
  %v420 = vadd.f32 %v419, %v389
  %v421 = vadd.f32 %v420, %v390
  %v422 = vadd.f32 %v421, %v391
  %v423 = vadd.f32 %v422, %v392
  %v424 = vadd.f32 %v423, %v393
  %v425 = vadd.f32 %v424, %v394
  %v426 = vadd.f32 %v425, %v395
  %v427 = vadd.f32 %v426, %v396
  %v428 = vadd.f32 %v427, %v397
  %v429 = vadd.f32 %v428, %v398
  %v430 = vadd.f32 %v429, %v399
  %v431 = vadd.f32 %v430, %v400
  %v432 = vadd.f32 %v431, %v401
  %v433 = vadd.f32 %v432, %v402
  %v434 = vadd.f32 %v433, %v403
  %v435 = vrot.slane %v434, 4
  %v436 = vadd.f32 %v434, %v435
  %v437 = vrot.slane %v436, 2
  %v438 = vadd.f32 %v436, %v437
  %v439 = vrot.slane %v438, 1
  %v440 = vadd.f32 %v438, %v439
  %v441 = vmul.f32 %v440, 0.00390625
  %s442 = scalar_lea.vmem %s0, 128
  %v443 = vld [vmem:[%s442] sm:$0xf]
  %v444 = vld [vmem:[%s442 + $0x4] sm:$0xf]
  %v445 = vld [vmem:[%s442 + $0x8] sm:$0xf]
  %v446 = vld [vmem:[%s442 + $0xc] sm:$0xf]
  %v447 = vld [vmem:[%s442 + $0x10] sm:$0xf]
  %v448 = vld [vmem:[%s442 + $0x14] sm:$0xf]
  %v449 = vld [vmem:[%s442 + $0x18] sm:$0xf]
  %v450 = vld [vmem:[%s442 + $0x1c] sm:$0xf]
  %v451 = vld [vmem:[%s442 + $0x20] sm:$0xf]
  %v452 = vld [vmem:[%s442 + $0x24] sm:$0xf]
  %v453 = vld [vmem:[%s442 + $0x28] sm:$0xf]
  %v454 = vld [vmem:[%s442 + $0x2c] sm:$0xf]
  %v455 = vld [vmem:[%s442 + $0x30] sm:$0xf]
  %v456 = vld [vmem:[%s442 + $0x34] sm:$0xf]
  %v457 = vld [vmem:[%s442 + $0x38] sm:$0xf]
  %v458 = vld [vmem:[%s442 + $0x3c] sm:$0xf]
  %v459 = vld [vmem:[%s442 + $0x40] sm:$0xf]
  %v460 = vld [vmem:[%s442 + $0x44] sm:$0xf]
  %v461 = vld [vmem:[%s442 + $0x48] sm:$0xf]
  %v462 = vld [vmem:[%s442 + $0x4c] sm:$0xf]
  %v463 = vld [vmem:[%s442 + $0x50] sm:$0xf]
  %v464 = vld [vmem:[%s442 + $0x54] sm:$0xf]
  %v465 = vld [vmem:[%s442 + $0x58] sm:$0xf]
  %v466 = vld [vmem:[%s442 + $0x5c] sm:$0xf]
  %v467 = vld [vmem:[%s442 + $0x60] sm:$0xf]
  %v468 = vld [vmem:[%s442 + $0x64] sm:$0xf]
  %v469 = vld [vmem:[%s442 + $0x68] sm:$0xf]
  %v470 = vld [vmem:[%s442 + $0x6c] sm:$0xf]
  %v471 = vld [vmem:[%s442 + $0x70] sm:$0xf]
  %v472 = vld [vmem:[%s442 + $0x74] sm:$0xf]
  %v473 = vld [vmem:[%s442 + $0x78] sm:$0xf]
  %v474 = vld [vmem:[%s442 + $0x7c] sm:$0xf]
  %v507 = vunpack.c.l.b16 %v443
  %v508 = vunpack.c.l.b16 %v444
  %v509 = vunpack.c.l.b16 %v445
  %v510 = vunpack.c.l.b16 %v446
  %v511 = vunpack.c.l.b16 %v447
  %v512 = vunpack.c.l.b16 %v448
  %v513 = vunpack.c.l.b16 %v449
  %v514 = vunpack.c.l.b16 %v450
  %v515 = vunpack.c.l.b16 %v451
  %v516 = vunpack.c.l.b16 %v452
  %v517 = vunpack.c.l.b16 %v453
  %v518 = vunpack.c.l.b16 %v454
  %v519 = vunpack.c.l.b16 %v455
  %v520 = vunpack.c.l.b16 %v456
  %v521 = vunpack.c.l.b16 %v457
  %v522 = vunpack.c.l.b16 %v458
  %v523 = vunpack.c.l.b16 %v459
  %v524 = vunpack.c.l.b16 %v460
  %v525 = vunpack.c.l.b16 %v461
  %v526 = vunpack.c.l.b16 %v462
  %v527 = vunpack.c.l.b16 %v463
  %v528 = vunpack.c.l.b16 %v464
  %v529 = vunpack.c.l.b16 %v465
  %v530 = vunpack.c.l.b16 %v466
  %v531 = vunpack.c.l.b16 %v467
  %v532 = vunpack.c.l.b16 %v468
  %v533 = vunpack.c.l.b16 %v469
  %v534 = vunpack.c.l.b16 %v470
  %v535 = vunpack.c.l.b16 %v471
  %v536 = vunpack.c.l.b16 %v472
  %v537 = vunpack.c.l.b16 %v473
  %v538 = vunpack.c.l.b16 %v474
  %v539 = vpack.c.b16 %v508, %v507
  %v540 = vpack.c.b16 %v510, %v509
  %v541 = vpack.c.b16 %v512, %v511
  %v542 = vpack.c.b16 %v514, %v513
  %v543 = vpack.c.b16 %v516, %v515
  %v544 = vpack.c.b16 %v518, %v517
  %v545 = vpack.c.b16 %v520, %v519
  %v546 = vpack.c.b16 %v522, %v521
  %v547 = vpack.c.b16 %v524, %v523
  %v548 = vpack.c.b16 %v526, %v525
  %v549 = vpack.c.b16 %v528, %v527
  %v550 = vpack.c.b16 %v530, %v529
  %v551 = vpack.c.b16 %v532, %v531
  %v552 = vpack.c.b16 %v534, %v533
  %v553 = vpack.c.b16 %v536, %v535
  %v554 = vpack.c.b16 %v538, %v537
  %v556 = vsel %vm162, %v539, 0
  %v559 = vsel %vm162, %v540, 0
  %v562 = vsel %vm162, %v541, 0
  %v565 = vsel %vm162, %v542, 0
  %v568 = vsel %vm162, %v543, 0
  %v571 = vsel %vm162, %v544, 0
  %v574 = vsel %vm162, %v545, 0
  %v577 = vsel %vm162, %v546, 0
  %v580 = vsel %vm162, %v547, 0
  %v583 = vsel %vm162, %v548, 0
  %v586 = vsel %vm162, %v549, 0
  %v589 = vsel %vm162, %v550, 0
  %v592 = vsel %vm162, %v551, 0
  %v595 = vsel %vm162, %v552, 0
  %v598 = vsel %vm162, %v553, 0
  %v601 = vsel %vm162, %v554, 0
  %603 = vmatprep.subr.bf16.mxu0 0
  %604 = vmatpush1.bf16.msra.mxu0 0
  %605 = vmatprep.subr.bf16.mxu0 0
  %606 = vmatpush1.bf16.msra.mxu0 0
  %607 = vmatprep.subr.bf16.mxu0 0
  %608 = vmatpush1.bf16.msra.mxu0 0
  %609 = vmatprep.subr.bf16.mxu0 0
  %610 = vmatpush1.bf16.msra.mxu0 0
  %611 = vmatprep.subr.bf16.mxu0 0
  %612 = vmatpush1.bf16.msra.mxu0 0
  %613 = vmatprep.subr.bf16.mxu0 0
  %614 = vmatpush1.bf16.msra.mxu0 0
  %615 = vmatprep.subr.bf16.mxu0 0
  %616 = vmatpush1.bf16.msra.mxu0 %v159
  %617 = vmatprep.subr.bf16.mxu0 0
  %618 = vmatpush1.bf16.msra.mxu0 %v158
  %619 = vmatprep.subr.bf16.mxu0 0
  %620 = vmatpush2.bf16.msra.mxu0 0
  %621 = vmatprep.subr.bf16.mxu0 0
  %622 = vmatpush2.bf16.msra.mxu0 0
  %623 = vmatprep.subr.bf16.mxu0 0
  %624 = vmatpush2.bf16.msra.mxu0 0
  %625 = vmatprep.subr.bf16.mxu0 0
  %626 = vmatpush2.bf16.msra.mxu0 0
  %627 = vmatprep.subr.bf16.mxu0 0
  %628 = vmatpush2.bf16.msra.mxu0 0
  %629 = vmatprep.subr.bf16.mxu0 0
  %630 = vmatpush2.bf16.msra.mxu0 0
  %631 = vmatprep.subr.bf16.mxu0 0
  %632 = vmatpush2.bf16.msra.mxu0 0
  %633 = vmatprep.subr.bf16.mxu0 0
  %634 = vmatpush2.bf16.msra.mxu0 0
  %635 = vmatprep.mubr.bf16.mxu0 0
  %636 = vmatmul.mubr.bf16.gmra.mxu0 %v556
  %v637 = vpop.f32.mrf.mxu0
  %v638 = vadd.f32 %v68, %v637
  %v639 = vpop.f32.mrf.mxu0
  %v640 = vpop.f32.mrf.mxu0
  %v641 = vadd.f32 %v68, %v640
  %v642 = vpop.f32.mrf.mxu0
  %643 = vmatprep.mubr.bf16.mxu0 0
  %644 = vmatmul.mubr.bf16.gmra.mxu0 %v559
  %v645 = vpop.f32.mrf.mxu0
  %v646 = vadd.f32 %v68, %v645
  %v647 = vpop.f32.mrf.mxu0
  %v648 = vpop.f32.mrf.mxu0
  %v649 = vadd.f32 %v68, %v648
  %v650 = vpop.f32.mrf.mxu0
  %651 = vmatprep.mubr.bf16.mxu0 0
  %652 = vmatmul.mubr.bf16.gmra.mxu0 %v562
  %v653 = vpop.f32.mrf.mxu0
  %v654 = vadd.f32 %v68, %v653
  %v655 = vpop.f32.mrf.mxu0
  %v656 = vpop.f32.mrf.mxu0
  %v657 = vadd.f32 %v68, %v656
  %v658 = vpop.f32.mrf.mxu0
  %659 = vmatprep.mubr.bf16.mxu0 0
  %660 = vmatmul.mubr.bf16.gmra.mxu0 %v565
  %v661 = vpop.f32.mrf.mxu0
  %v662 = vadd.f32 %v68, %v661
  %v663 = vpop.f32.mrf.mxu0
  %v664 = vpop.f32.mrf.mxu0
  %v665 = vadd.f32 %v68, %v664
  %v666 = vpop.f32.mrf.mxu0
  %667 = vmatprep.mubr.bf16.mxu0 0
  %668 = vmatmul.mubr.bf16.gmra.mxu0 %v568
  %v669 = vpop.f32.mrf.mxu0
  %v670 = vadd.f32 %v68, %v669
  %v671 = vpop.f32.mrf.mxu0
  %v672 = vpop.f32.mrf.mxu0
  %v673 = vadd.f32 %v68, %v672
  %v674 = vpop.f32.mrf.mxu0
  %675 = vmatprep.mubr.bf16.mxu0 0
  %676 = vmatmul.mubr.bf16.gmra.mxu0 %v571
  %v677 = vpop.f32.mrf.mxu0
  %v678 = vadd.f32 %v68, %v677
  %v679 = vpop.f32.mrf.mxu0
  %v680 = vpop.f32.mrf.mxu0
  %v681 = vadd.f32 %v68, %v680
  %v682 = vpop.f32.mrf.mxu0
  %683 = vmatprep.mubr.bf16.mxu0 0
  %684 = vmatmul.mubr.bf16.gmra.mxu0 %v574
  %v685 = vpop.f32.mrf.mxu0
  %v686 = vadd.f32 %v68, %v685
  %v687 = vpop.f32.mrf.mxu0
  %v688 = vpop.f32.mrf.mxu0
  %v689 = vadd.f32 %v68, %v688
  %v690 = vpop.f32.mrf.mxu0
  %691 = vmatprep.mubr.bf16.mxu0 0
  %692 = vmatmul.mubr.bf16.gmra.mxu0 %v577
  %v693 = vpop.f32.mrf.mxu0
  %v694 = vadd.f32 %v68, %v693
  %v695 = vpop.f32.mrf.mxu0
  %v696 = vpop.f32.mrf.mxu0
  %v697 = vadd.f32 %v68, %v696
  %v698 = vpop.f32.mrf.mxu0
  %699 = vmatprep.mubr.bf16.mxu0 0
  %700 = vmatmul.mubr.bf16.gmra.mxu0 %v580
  %v701 = vpop.f32.mrf.mxu0
  %v702 = vadd.f32 %v68, %v701
  %v703 = vpop.f32.mrf.mxu0
  %v704 = vpop.f32.mrf.mxu0
  %v705 = vadd.f32 %v68, %v704
  %v706 = vpop.f32.mrf.mxu0
  %707 = vmatprep.mubr.bf16.mxu0 0
  %708 = vmatmul.mubr.bf16.gmra.mxu0 %v583
  %v709 = vpop.f32.mrf.mxu0
  %v710 = vadd.f32 %v68, %v709
  %v711 = vpop.f32.mrf.mxu0
  %v712 = vpop.f32.mrf.mxu0
  %v713 = vadd.f32 %v68, %v712
  %v714 = vpop.f32.mrf.mxu0
  %715 = vmatprep.mubr.bf16.mxu0 0
  %716 = vmatmul.mubr.bf16.gmra.mxu0 %v586
  %v717 = vpop.f32.mrf.mxu0
  %v718 = vadd.f32 %v68, %v717
  %v719 = vpop.f32.mrf.mxu0
  %v720 = vpop.f32.mrf.mxu0
  %v721 = vadd.f32 %v68, %v720
  %v722 = vpop.f32.mrf.mxu0
  %723 = vmatprep.mubr.bf16.mxu0 0
  %724 = vmatmul.mubr.bf16.gmra.mxu0 %v589
  %v725 = vpop.f32.mrf.mxu0
  %v726 = vadd.f32 %v68, %v725
  %v727 = vpop.f32.mrf.mxu0
  %v728 = vpop.f32.mrf.mxu0
  %v729 = vadd.f32 %v68, %v728
  %v730 = vpop.f32.mrf.mxu0
  %731 = vmatprep.mubr.bf16.mxu0 0
  %732 = vmatmul.mubr.bf16.gmra.mxu0 %v592
  %v733 = vpop.f32.mrf.mxu0
  %v734 = vadd.f32 %v68, %v733
  %v735 = vpop.f32.mrf.mxu0
  %v736 = vpop.f32.mrf.mxu0
  %v737 = vadd.f32 %v68, %v736
  %v738 = vpop.f32.mrf.mxu0
  %739 = vmatprep.mubr.bf16.mxu0 0
  %740 = vmatmul.mubr.bf16.gmra.mxu0 %v595
  %v741 = vpop.f32.mrf.mxu0
  %v742 = vadd.f32 %v68, %v741
  %v743 = vpop.f32.mrf.mxu0
  %v744 = vpop.f32.mrf.mxu0
  %v745 = vadd.f32 %v68, %v744
  %v746 = vpop.f32.mrf.mxu0
  %747 = vmatprep.mubr.bf16.mxu0 0
  %748 = vmatmul.mubr.bf16.gmra.mxu0 %v598
  %v749 = vpop.f32.mrf.mxu0
  %v750 = vadd.f32 %v68, %v749
  %v751 = vpop.f32.mrf.mxu0
  %v752 = vpop.f32.mrf.mxu0
  %v753 = vadd.f32 %v68, %v752
  %v754 = vpop.f32.mrf.mxu0
  %755 = vmatprep.mubr.bf16.mxu0 0
  %756 = vmatmul.mubr.bf16.gmra.mxu0 %v601
  %v757 = vpop.f32.mrf.mxu0
  %v758 = vadd.f32 %v68, %v757
  %v759 = vpop.f32.mrf.mxu0
  %v760 = vpop.f32.mrf.mxu0
  %v761 = vadd.f32 %v68, %v760
  %v762 = vpop.f32.mrf.mxu0
  %763 = vdwg.mxu0
  %v764 = vmax.f32 %v638, 0.0
  %v765 = vmax.f32 %v641, 0.0
  %v766 = vmax.f32 %v646, 0.0
  %v767 = vmax.f32 %v649, 0.0
  %v768 = vmax.f32 %v654, 0.0
  %v769 = vmax.f32 %v657, 0.0
  %v770 = vmax.f32 %v662, 0.0
  %v771 = vmax.f32 %v665, 0.0
  %v772 = vmax.f32 %v670, 0.0
  %v773 = vmax.f32 %v673, 0.0
  %v774 = vmax.f32 %v678, 0.0
  %v775 = vmax.f32 %v681, 0.0
  %v776 = vmax.f32 %v686, 0.0
  %v777 = vmax.f32 %v689, 0.0
  %v778 = vmax.f32 %v694, 0.0
  %v779 = vmax.f32 %v697, 0.0
  %v780 = vmax.f32 %v702, 0.0
  %v781 = vmax.f32 %v705, 0.0
  %v782 = vmax.f32 %v710, 0.0
  %v783 = vmax.f32 %v713, 0.0
  %v784 = vmax.f32 %v718, 0.0
  %v785 = vmax.f32 %v721, 0.0
  %v786 = vmax.f32 %v726, 0.0
  %v787 = vmax.f32 %v729, 0.0
  %v788 = vmax.f32 %v734, 0.0
  %v789 = vmax.f32 %v737, 0.0
  %v790 = vmax.f32 %v742, 0.0
  %v791 = vmax.f32 %v745, 0.0
  %v792 = vmax.f32 %v750, 0.0
  %v793 = vmax.f32 %v753, 0.0
  %v794 = vmax.f32 %v758, 0.0
  %v795 = vmax.f32 %v761, 0.0
  %v796 = vadd.f32 %v764, %v765
  %v797 = vadd.f32 %v796, %v766
  %v798 = vadd.f32 %v797, %v767
  %v799 = vadd.f32 %v798, %v768
  %v800 = vadd.f32 %v799, %v769
  %v801 = vadd.f32 %v800, %v770
  %v802 = vadd.f32 %v801, %v771
  %v803 = vadd.f32 %v802, %v772
  %v804 = vadd.f32 %v803, %v773
  %v805 = vadd.f32 %v804, %v774
  %v806 = vadd.f32 %v805, %v775
  %v807 = vadd.f32 %v806, %v776
  %v808 = vadd.f32 %v807, %v777
  %v809 = vadd.f32 %v808, %v778
  %v810 = vadd.f32 %v809, %v779
  %v811 = vadd.f32 %v810, %v780
  %v812 = vadd.f32 %v811, %v781
  %v813 = vadd.f32 %v812, %v782
  %v814 = vadd.f32 %v813, %v783
  %v815 = vadd.f32 %v814, %v784
  %v816 = vadd.f32 %v815, %v785
  %v817 = vadd.f32 %v816, %v786
  %v818 = vadd.f32 %v817, %v787
  %v819 = vadd.f32 %v818, %v788
  %v820 = vadd.f32 %v819, %v789
  %v821 = vadd.f32 %v820, %v790
  %v822 = vadd.f32 %v821, %v791
  %v823 = vadd.f32 %v822, %v792
  %v824 = vadd.f32 %v823, %v793
  %v825 = vadd.f32 %v824, %v794
  %v826 = vadd.f32 %v825, %v795
  %v827 = vrot.slane %v826, 4
  %v828 = vadd.f32 %v826, %v827
  %v829 = vrot.slane %v828, 2
  %v830 = vadd.f32 %v828, %v829
  %v831 = vrot.slane %v830, 1
  %v832 = vadd.f32 %v830, %v831
  %v833 = vmul.f32 %v832, 0.00390625
  %s834 = scalar_lea.vmem %s0, 256
  %v835 = vld [vmem:[%s834] sm:$0xf]
  %v836 = vld [vmem:[%s834 + $0x4] sm:$0xf]
  %v837 = vld [vmem:[%s834 + $0x8] sm:$0xf]
  %v838 = vld [vmem:[%s834 + $0xc] sm:$0xf]
  %v839 = vld [vmem:[%s834 + $0x10] sm:$0xf]
  %v840 = vld [vmem:[%s834 + $0x14] sm:$0xf]
  %v841 = vld [vmem:[%s834 + $0x18] sm:$0xf]
  %v842 = vld [vmem:[%s834 + $0x1c] sm:$0xf]
  %v843 = vld [vmem:[%s834 + $0x20] sm:$0xf]
  %v844 = vld [vmem:[%s834 + $0x24] sm:$0xf]
  %v845 = vld [vmem:[%s834 + $0x28] sm:$0xf]
  %v846 = vld [vmem:[%s834 + $0x2c] sm:$0xf]
  %v847 = vld [vmem:[%s834 + $0x30] sm:$0xf]
  %v848 = vld [vmem:[%s834 + $0x34] sm:$0xf]
  %v849 = vld [vmem:[%s834 + $0x38] sm:$0xf]
  %v850 = vld [vmem:[%s834 + $0x3c] sm:$0xf]
  %v851 = vld [vmem:[%s834 + $0x40] sm:$0xf]
  %v852 = vld [vmem:[%s834 + $0x44] sm:$0xf]
  %v853 = vld [vmem:[%s834 + $0x48] sm:$0xf]
  %v854 = vld [vmem:[%s834 + $0x4c] sm:$0xf]
  %v855 = vld [vmem:[%s834 + $0x50] sm:$0xf]
  %v856 = vld [vmem:[%s834 + $0x54] sm:$0xf]
  %v857 = vld [vmem:[%s834 + $0x58] sm:$0xf]
  %v858 = vld [vmem:[%s834 + $0x5c] sm:$0xf]
  %v859 = vld [vmem:[%s834 + $0x60] sm:$0xf]
  %v860 = vld [vmem:[%s834 + $0x64] sm:$0xf]
  %v861 = vld [vmem:[%s834 + $0x68] sm:$0xf]
  %v862 = vld [vmem:[%s834 + $0x6c] sm:$0xf]
  %v863 = vld [vmem:[%s834 + $0x70] sm:$0xf]
  %v864 = vld [vmem:[%s834 + $0x74] sm:$0xf]
  %v865 = vld [vmem:[%s834 + $0x78] sm:$0xf]
  %v866 = vld [vmem:[%s834 + $0x7c] sm:$0xf]
  %v899 = vunpack.c.l.b16 %v835
  %v900 = vunpack.c.l.b16 %v836
  %v901 = vunpack.c.l.b16 %v837
  %v902 = vunpack.c.l.b16 %v838
  %v903 = vunpack.c.l.b16 %v839
  %v904 = vunpack.c.l.b16 %v840
  %v905 = vunpack.c.l.b16 %v841
  %v906 = vunpack.c.l.b16 %v842
  %v907 = vunpack.c.l.b16 %v843
  %v908 = vunpack.c.l.b16 %v844
  %v909 = vunpack.c.l.b16 %v845
  %v910 = vunpack.c.l.b16 %v846
  %v911 = vunpack.c.l.b16 %v847
  %v912 = vunpack.c.l.b16 %v848
  %v913 = vunpack.c.l.b16 %v849
  %v914 = vunpack.c.l.b16 %v850
  %v915 = vunpack.c.l.b16 %v851
  %v916 = vunpack.c.l.b16 %v852
  %v917 = vunpack.c.l.b16 %v853
  %v918 = vunpack.c.l.b16 %v854
  %v919 = vunpack.c.l.b16 %v855
  %v920 = vunpack.c.l.b16 %v856
  %v921 = vunpack.c.l.b16 %v857
  %v922 = vunpack.c.l.b16 %v858
  %v923 = vunpack.c.l.b16 %v859
  %v924 = vunpack.c.l.b16 %v860
  %v925 = vunpack.c.l.b16 %v861
  %v926 = vunpack.c.l.b16 %v862
  %v927 = vunpack.c.l.b16 %v863
  %v928 = vunpack.c.l.b16 %v864
  %v929 = vunpack.c.l.b16 %v865
  %v930 = vunpack.c.l.b16 %v866
  %v931 = vpack.c.b16 %v900, %v899
  %v932 = vpack.c.b16 %v902, %v901
  %v933 = vpack.c.b16 %v904, %v903
  %v934 = vpack.c.b16 %v906, %v905
  %v935 = vpack.c.b16 %v908, %v907
  %v936 = vpack.c.b16 %v910, %v909
  %v937 = vpack.c.b16 %v912, %v911
  %v938 = vpack.c.b16 %v914, %v913
  %v939 = vpack.c.b16 %v916, %v915
  %v940 = vpack.c.b16 %v918, %v917
  %v941 = vpack.c.b16 %v920, %v919
  %v942 = vpack.c.b16 %v922, %v921
  %v943 = vpack.c.b16 %v924, %v923
  %v944 = vpack.c.b16 %v926, %v925
  %v945 = vpack.c.b16 %v928, %v927
  %v946 = vpack.c.b16 %v930, %v929
  %v948 = vsel %vm162, %v931, 0
  %v951 = vsel %vm162, %v932, 0
  %v954 = vsel %vm162, %v933, 0
  %v957 = vsel %vm162, %v934, 0
  %v960 = vsel %vm162, %v935, 0
  %v963 = vsel %vm162, %v936, 0
  %v966 = vsel %vm162, %v937, 0
  %v969 = vsel %vm162, %v938, 0
  %v972 = vsel %vm162, %v939, 0
  %v975 = vsel %vm162, %v940, 0
  %v978 = vsel %vm162, %v941, 0
  %v981 = vsel %vm162, %v942, 0
  %v984 = vsel %vm162, %v943, 0
  %v987 = vsel %vm162, %v944, 0
  %v990 = vsel %vm162, %v945, 0
  %v993 = vsel %vm162, %v946, 0
  %995 = vmatprep.subr.bf16.mxu0 0
  %996 = vmatpush1.bf16.msra.mxu0 0
  %997 = vmatprep.subr.bf16.mxu0 0
  %998 = vmatpush1.bf16.msra.mxu0 0
  %999 = vmatprep.subr.bf16.mxu0 0
  %1000 = vmatpush1.bf16.msra.mxu0 0
  %1001 = vmatprep.subr.bf16.mxu0 0
  %1002 = vmatpush1.bf16.msra.mxu0 0
  %1003 = vmatprep.subr.bf16.mxu0 0
  %1004 = vmatpush1.bf16.msra.mxu0 0
  %1005 = vmatprep.subr.bf16.mxu0 0
  %1006 = vmatpush1.bf16.msra.mxu0 0
  %1007 = vmatprep.subr.bf16.mxu0 0
  %1008 = vmatpush1.bf16.msra.mxu0 %v159
  %1009 = vmatprep.subr.bf16.mxu0 0
  %1010 = vmatpush1.bf16.msra.mxu0 %v158
  %1011 = vmatprep.subr.bf16.mxu0 0
  %1012 = vmatpush2.bf16.msra.mxu0 0
  %1013 = vmatprep.subr.bf16.mxu0 0
  %1014 = vmatpush2.bf16.msra.mxu0 0
  %1015 = vmatprep.subr.bf16.mxu0 0
  %1016 = vmatpush2.bf16.msra.mxu0 0
  %1017 = vmatprep.subr.bf16.mxu0 0
  %1018 = vmatpush2.bf16.msra.mxu0 0
  %1019 = vmatprep.subr.bf16.mxu0 0
  %1020 = vmatpush2.bf16.msra.mxu0 0
  %1021 = vmatprep.subr.bf16.mxu0 0
  %1022 = vmatpush2.bf16.msra.mxu0 0
  %1023 = vmatprep.subr.bf16.mxu0 0
  %1024 = vmatpush2.bf16.msra.mxu0 0
  %1025 = vmatprep.subr.bf16.mxu0 0
  %1026 = vmatpush2.bf16.msra.mxu0 0
  %1027 = vmatprep.mubr.bf16.mxu0 0
  %1028 = vmatmul.mubr.bf16.gmra.mxu0 %v948
  %v1029 = vpop.f32.mrf.mxu0
  %v1030 = vadd.f32 %v68, %v1029
  %v1031 = vpop.f32.mrf.mxu0
  %v1032 = vpop.f32.mrf.mxu0
  %v1033 = vadd.f32 %v68, %v1032
  %v1034 = vpop.f32.mrf.mxu0
  %1035 = vmatprep.mubr.bf16.mxu0 0
  %1036 = vmatmul.mubr.bf16.gmra.mxu0 %v951
  %v1037 = vpop.f32.mrf.mxu0
  %v1038 = vadd.f32 %v68, %v1037
  %v1039 = vpop.f32.mrf.mxu0
  %v1040 = vpop.f32.mrf.mxu0
  %v1041 = vadd.f32 %v68, %v1040
  %v1042 = vpop.f32.mrf.mxu0
  %1043 = vmatprep.mubr.bf16.mxu0 0
  %1044 = vmatmul.mubr.bf16.gmra.mxu0 %v954
  %v1045 = vpop.f32.mrf.mxu0
  %v1046 = vadd.f32 %v68, %v1045
  %v1047 = vpop.f32.mrf.mxu0
  %v1048 = vpop.f32.mrf.mxu0
  %v1049 = vadd.f32 %v68, %v1048
  %v1050 = vpop.f32.mrf.mxu0
  %1051 = vmatprep.mubr.bf16.mxu0 0
  %1052 = vmatmul.mubr.bf16.gmra.mxu0 %v957
  %v1053 = vpop.f32.mrf.mxu0
  %v1054 = vadd.f32 %v68, %v1053
  %v1055 = vpop.f32.mrf.mxu0
  %v1056 = vpop.f32.mrf.mxu0
  %v1057 = vadd.f32 %v68, %v1056
  %v1058 = vpop.f32.mrf.mxu0
  %1059 = vmatprep.mubr.bf16.mxu0 0
  %1060 = vmatmul.mubr.bf16.gmra.mxu0 %v960
  %v1061 = vpop.f32.mrf.mxu0
  %v1062 = vadd.f32 %v68, %v1061
  %v1063 = vpop.f32.mrf.mxu0
  %v1064 = vpop.f32.mrf.mxu0
  %v1065 = vadd.f32 %v68, %v1064
  %v1066 = vpop.f32.mrf.mxu0
  %1067 = vmatprep.mubr.bf16.mxu0 0
  %1068 = vmatmul.mubr.bf16.gmra.mxu0 %v963
  %v1069 = vpop.f32.mrf.mxu0
  %v1070 = vadd.f32 %v68, %v1069
  %v1071 = vpop.f32.mrf.mxu0
  %v1072 = vpop.f32.mrf.mxu0
  %v1073 = vadd.f32 %v68, %v1072
  %v1074 = vpop.f32.mrf.mxu0
  %1075 = vmatprep.mubr.bf16.mxu0 0
  %1076 = vmatmul.mubr.bf16.gmra.mxu0 %v966
  %v1077 = vpop.f32.mrf.mxu0
  %v1078 = vadd.f32 %v68, %v1077
  %v1079 = vpop.f32.mrf.mxu0
  %v1080 = vpop.f32.mrf.mxu0
  %v1081 = vadd.f32 %v68, %v1080
  %v1082 = vpop.f32.mrf.mxu0
  %1083 = vmatprep.mubr.bf16.mxu0 0
  %1084 = vmatmul.mubr.bf16.gmra.mxu0 %v969
  %v1085 = vpop.f32.mrf.mxu0
  %v1086 = vadd.f32 %v68, %v1085
  %v1087 = vpop.f32.mrf.mxu0
  %v1088 = vpop.f32.mrf.mxu0
  %v1089 = vadd.f32 %v68, %v1088
  %v1090 = vpop.f32.mrf.mxu0
  %1091 = vmatprep.mubr.bf16.mxu0 0
  %1092 = vmatmul.mubr.bf16.gmra.mxu0 %v972
  %v1093 = vpop.f32.mrf.mxu0
  %v1094 = vadd.f32 %v68, %v1093
  %v1095 = vpop.f32.mrf.mxu0
  %v1096 = vpop.f32.mrf.mxu0
  %v1097 = vadd.f32 %v68, %v1096
  %v1098 = vpop.f32.mrf.mxu0
  %1099 = vmatprep.mubr.bf16.mxu0 0
  %1100 = vmatmul.mubr.bf16.gmra.mxu0 %v975
  %v1101 = vpop.f32.mrf.mxu0
  %v1102 = vadd.f32 %v68, %v1101
  %v1103 = vpop.f32.mrf.mxu0
  %v1104 = vpop.f32.mrf.mxu0
  %v1105 = vadd.f32 %v68, %v1104
  %v1106 = vpop.f32.mrf.mxu0
  %1107 = vmatprep.mubr.bf16.mxu0 0
  %1108 = vmatmul.mubr.bf16.gmra.mxu0 %v978
  %v1109 = vpop.f32.mrf.mxu0
  %v1110 = vadd.f32 %v68, %v1109
  %v1111 = vpop.f32.mrf.mxu0
  %v1112 = vpop.f32.mrf.mxu0
  %v1113 = vadd.f32 %v68, %v1112
  %v1114 = vpop.f32.mrf.mxu0
  %1115 = vmatprep.mubr.bf16.mxu0 0
  %1116 = vmatmul.mubr.bf16.gmra.mxu0 %v981
  %v1117 = vpop.f32.mrf.mxu0
  %v1118 = vadd.f32 %v68, %v1117
  %v1119 = vpop.f32.mrf.mxu0
  %v1120 = vpop.f32.mrf.mxu0
  %v1121 = vadd.f32 %v68, %v1120
  %v1122 = vpop.f32.mrf.mxu0
  %1123 = vmatprep.mubr.bf16.mxu0 0
  %1124 = vmatmul.mubr.bf16.gmra.mxu0 %v984
  %v1125 = vpop.f32.mrf.mxu0
  %v1126 = vadd.f32 %v68, %v1125
  %v1127 = vpop.f32.mrf.mxu0
  %v1128 = vpop.f32.mrf.mxu0
  %v1129 = vadd.f32 %v68, %v1128
  %v1130 = vpop.f32.mrf.mxu0
  %1131 = vmatprep.mubr.bf16.mxu0 0
  %1132 = vmatmul.mubr.bf16.gmra.mxu0 %v987
  %v1133 = vpop.f32.mrf.mxu0
  %v1134 = vadd.f32 %v68, %v1133
  %v1135 = vpop.f32.mrf.mxu0
  %v1136 = vpop.f32.mrf.mxu0
  %v1137 = vadd.f32 %v68, %v1136
  %v1138 = vpop.f32.mrf.mxu0
  %1139 = vmatprep.mubr.bf16.mxu0 0
  %1140 = vmatmul.mubr.bf16.gmra.mxu0 %v990
  %v1141 = vpop.f32.mrf.mxu0
  %v1142 = vadd.f32 %v68, %v1141
  %v1143 = vpop.f32.mrf.mxu0
  %v1144 = vpop.f32.mrf.mxu0
  %v1145 = vadd.f32 %v68, %v1144
  %v1146 = vpop.f32.mrf.mxu0
  %1147 = vmatprep.mubr.bf16.mxu0 0
  %1148 = vmatmul.mubr.bf16.gmra.mxu0 %v993
  %v1149 = vpop.f32.mrf.mxu0
  %v1150 = vadd.f32 %v68, %v1149
  %v1151 = vpop.f32.mrf.mxu0
  %v1152 = vpop.f32.mrf.mxu0
  %v1153 = vadd.f32 %v68, %v1152
  %v1154 = vpop.f32.mrf.mxu0
  %1155 = vdwg.mxu0
  %v1156 = vmax.f32 %v1030, 0.0
  %v1157 = vmax.f32 %v1033, 0.0
  %v1158 = vmax.f32 %v1038, 0.0
  %v1159 = vmax.f32 %v1041, 0.0
  %v1160 = vmax.f32 %v1046, 0.0
  %v1161 = vmax.f32 %v1049, 0.0
  %v1162 = vmax.f32 %v1054, 0.0
  %v1163 = vmax.f32 %v1057, 0.0
  %v1164 = vmax.f32 %v1062, 0.0
  %v1165 = vmax.f32 %v1065, 0.0
  %v1166 = vmax.f32 %v1070, 0.0
  %v1167 = vmax.f32 %v1073, 0.0
  %v1168 = vmax.f32 %v1078, 0.0
  %v1169 = vmax.f32 %v1081, 0.0
  %v1170 = vmax.f32 %v1086, 0.0
  %v1171 = vmax.f32 %v1089, 0.0
  %v1172 = vmax.f32 %v1094, 0.0
  %v1173 = vmax.f32 %v1097, 0.0
  %v1174 = vmax.f32 %v1102, 0.0
  %v1175 = vmax.f32 %v1105, 0.0
  %v1176 = vmax.f32 %v1110, 0.0
  %v1177 = vmax.f32 %v1113, 0.0
  %v1178 = vmax.f32 %v1118, 0.0
  %v1179 = vmax.f32 %v1121, 0.0
  %v1180 = vmax.f32 %v1126, 0.0
  %v1181 = vmax.f32 %v1129, 0.0
  %v1182 = vmax.f32 %v1134, 0.0
  %v1183 = vmax.f32 %v1137, 0.0
  %v1184 = vmax.f32 %v1142, 0.0
  %v1185 = vmax.f32 %v1145, 0.0
  %v1186 = vmax.f32 %v1150, 0.0
  %v1187 = vmax.f32 %v1153, 0.0
  %v1188 = vadd.f32 %v1156, %v1157
  %v1189 = vadd.f32 %v1188, %v1158
  %v1190 = vadd.f32 %v1189, %v1159
  %v1191 = vadd.f32 %v1190, %v1160
  %v1192 = vadd.f32 %v1191, %v1161
  %v1193 = vadd.f32 %v1192, %v1162
  %v1194 = vadd.f32 %v1193, %v1163
  %v1195 = vadd.f32 %v1194, %v1164
  %v1196 = vadd.f32 %v1195, %v1165
  %v1197 = vadd.f32 %v1196, %v1166
  %v1198 = vadd.f32 %v1197, %v1167
  %v1199 = vadd.f32 %v1198, %v1168
  %v1200 = vadd.f32 %v1199, %v1169
  %v1201 = vadd.f32 %v1200, %v1170
  %v1202 = vadd.f32 %v1201, %v1171
  %v1203 = vadd.f32 %v1202, %v1172
  %v1204 = vadd.f32 %v1203, %v1173
  %v1205 = vadd.f32 %v1204, %v1174
  %v1206 = vadd.f32 %v1205, %v1175
  %v1207 = vadd.f32 %v1206, %v1176
  %v1208 = vadd.f32 %v1207, %v1177
  %v1209 = vadd.f32 %v1208, %v1178
  %v1210 = vadd.f32 %v1209, %v1179
  %v1211 = vadd.f32 %v1210, %v1180
  %v1212 = vadd.f32 %v1211, %v1181
  %v1213 = vadd.f32 %v1212, %v1182
  %v1214 = vadd.f32 %v1213, %v1183
  %v1215 = vadd.f32 %v1214, %v1184
  %v1216 = vadd.f32 %v1215, %v1185
  %v1217 = vadd.f32 %v1216, %v1186
  %v1218 = vadd.f32 %v1217, %v1187
  %v1219 = vrot.slane %v1218, 4
  %v1220 = vadd.f32 %v1218, %v1219
  %v1221 = vrot.slane %v1220, 2
  %v1222 = vadd.f32 %v1220, %v1221
  %v1223 = vrot.slane %v1222, 1
  %v1224 = vadd.f32 %v1222, %v1223
  %v1225 = vmul.f32 %v1224, 0.00390625
  %s1226 = scalar_lea.vmem %s0, 384
  %v1227 = vld [vmem:[%s1226] sm:$0xf]
  %v1228 = vld [vmem:[%s1226 + $0x4] sm:$0xf]
  %v1229 = vld [vmem:[%s1226 + $0x8] sm:$0xf]
  %v1230 = vld [vmem:[%s1226 + $0xc] sm:$0xf]
  %v1231 = vld [vmem:[%s1226 + $0x10] sm:$0xf]
  %v1232 = vld [vmem:[%s1226 + $0x14] sm:$0xf]
  %v1233 = vld [vmem:[%s1226 + $0x18] sm:$0xf]
  %v1234 = vld [vmem:[%s1226 + $0x1c] sm:$0xf]
  %v1235 = vld [vmem:[%s1226 + $0x20] sm:$0xf]
  %v1236 = vld [vmem:[%s1226 + $0x24] sm:$0xf]
  %v1237 = vld [vmem:[%s1226 + $0x28] sm:$0xf]
  %v1238 = vld [vmem:[%s1226 + $0x2c] sm:$0xf]
  %v1239 = vld [vmem:[%s1226 + $0x30] sm:$0xf]
  %v1240 = vld [vmem:[%s1226 + $0x34] sm:$0xf]
  %v1241 = vld [vmem:[%s1226 + $0x38] sm:$0xf]
  %v1242 = vld [vmem:[%s1226 + $0x3c] sm:$0xf]
  %v1243 = vld [vmem:[%s1226 + $0x40] sm:$0xf]
  %v1244 = vld [vmem:[%s1226 + $0x44] sm:$0xf]
  %v1245 = vld [vmem:[%s1226 + $0x48] sm:$0xf]
  %v1246 = vld [vmem:[%s1226 + $0x4c] sm:$0xf]
  %v1247 = vld [vmem:[%s1226 + $0x50] sm:$0xf]
  %v1248 = vld [vmem:[%s1226 + $0x54] sm:$0xf]
  %v1249 = vld [vmem:[%s1226 + $0x58] sm:$0xf]
  %v1250 = vld [vmem:[%s1226 + $0x5c] sm:$0xf]
  %v1251 = vld [vmem:[%s1226 + $0x60] sm:$0xf]
  %v1252 = vld [vmem:[%s1226 + $0x64] sm:$0xf]
  %v1253 = vld [vmem:[%s1226 + $0x68] sm:$0xf]
  %v1254 = vld [vmem:[%s1226 + $0x6c] sm:$0xf]
  %v1255 = vld [vmem:[%s1226 + $0x70] sm:$0xf]
  %v1256 = vld [vmem:[%s1226 + $0x74] sm:$0xf]
  %v1257 = vld [vmem:[%s1226 + $0x78] sm:$0xf]
  %v1258 = vld [vmem:[%s1226 + $0x7c] sm:$0xf]
  %v1291 = vunpack.c.l.b16 %v1227
  %v1292 = vunpack.c.l.b16 %v1228
  %v1293 = vunpack.c.l.b16 %v1229
  %v1294 = vunpack.c.l.b16 %v1230
  %v1295 = vunpack.c.l.b16 %v1231
  %v1296 = vunpack.c.l.b16 %v1232
  %v1297 = vunpack.c.l.b16 %v1233
  %v1298 = vunpack.c.l.b16 %v1234
  %v1299 = vunpack.c.l.b16 %v1235
  %v1300 = vunpack.c.l.b16 %v1236
  %v1301 = vunpack.c.l.b16 %v1237
  %v1302 = vunpack.c.l.b16 %v1238
  %v1303 = vunpack.c.l.b16 %v1239
  %v1304 = vunpack.c.l.b16 %v1240
  %v1305 = vunpack.c.l.b16 %v1241
  %v1306 = vunpack.c.l.b16 %v1242
  %v1307 = vunpack.c.l.b16 %v1243
  %v1308 = vunpack.c.l.b16 %v1244
  %v1309 = vunpack.c.l.b16 %v1245
  %v1310 = vunpack.c.l.b16 %v1246
  %v1311 = vunpack.c.l.b16 %v1247
  %v1312 = vunpack.c.l.b16 %v1248
  %v1313 = vunpack.c.l.b16 %v1249
  %v1314 = vunpack.c.l.b16 %v1250
  %v1315 = vunpack.c.l.b16 %v1251
  %v1316 = vunpack.c.l.b16 %v1252
  %v1317 = vunpack.c.l.b16 %v1253
  %v1318 = vunpack.c.l.b16 %v1254
  %v1319 = vunpack.c.l.b16 %v1255
  %v1320 = vunpack.c.l.b16 %v1256
  %v1321 = vunpack.c.l.b16 %v1257
  %v1322 = vunpack.c.l.b16 %v1258
  %v1323 = vpack.c.b16 %v1292, %v1291
  %v1324 = vpack.c.b16 %v1294, %v1293
  %v1325 = vpack.c.b16 %v1296, %v1295
  %v1326 = vpack.c.b16 %v1298, %v1297
  %v1327 = vpack.c.b16 %v1300, %v1299
  %v1328 = vpack.c.b16 %v1302, %v1301
  %v1329 = vpack.c.b16 %v1304, %v1303
  %v1330 = vpack.c.b16 %v1306, %v1305
  %v1331 = vpack.c.b16 %v1308, %v1307
  %v1332 = vpack.c.b16 %v1310, %v1309
  %v1333 = vpack.c.b16 %v1312, %v1311
  %v1334 = vpack.c.b16 %v1314, %v1313
  %v1335 = vpack.c.b16 %v1316, %v1315
  %v1336 = vpack.c.b16 %v1318, %v1317
  %v1337 = vpack.c.b16 %v1320, %v1319
  %v1338 = vpack.c.b16 %v1322, %v1321
  %v1340 = vsel %vm162, %v1323, 0
  %v1343 = vsel %vm162, %v1324, 0
  %v1346 = vsel %vm162, %v1325, 0
  %v1349 = vsel %vm162, %v1326, 0
  %v1352 = vsel %vm162, %v1327, 0
  %v1355 = vsel %vm162, %v1328, 0
  %v1358 = vsel %vm162, %v1329, 0
  %v1361 = vsel %vm162, %v1330, 0
  %v1364 = vsel %vm162, %v1331, 0
  %v1367 = vsel %vm162, %v1332, 0
  %v1370 = vsel %vm162, %v1333, 0
  %v1373 = vsel %vm162, %v1334, 0
  %v1376 = vsel %vm162, %v1335, 0
  %v1379 = vsel %vm162, %v1336, 0
  %v1382 = vsel %vm162, %v1337, 0
  %v1385 = vsel %vm162, %v1338, 0
  %1387 = vmatprep.subr.bf16.mxu0 0
  %1388 = vmatpush1.bf16.msra.mxu0 0
  %1389 = vmatprep.subr.bf16.mxu0 0
  %1390 = vmatpush1.bf16.msra.mxu0 0
  %1391 = vmatprep.subr.bf16.mxu0 0
  %1392 = vmatpush1.bf16.msra.mxu0 0
  %1393 = vmatprep.subr.bf16.mxu0 0
  %1394 = vmatpush1.bf16.msra.mxu0 0
  %1395 = vmatprep.subr.bf16.mxu0 0
  %1396 = vmatpush1.bf16.msra.mxu0 0
  %1397 = vmatprep.subr.bf16.mxu0 0
  %1398 = vmatpush1.bf16.msra.mxu0 0
  %1399 = vmatprep.subr.bf16.mxu0 0
  %1400 = vmatpush1.bf16.msra.mxu0 %v159
  %1401 = vmatprep.subr.bf16.mxu0 0
  %1402 = vmatpush1.bf16.msra.mxu0 %v158
  %1403 = vmatprep.subr.bf16.mxu0 0
  %1404 = vmatpush2.bf16.msra.mxu0 0
  %1405 = vmatprep.subr.bf16.mxu0 0
  %1406 = vmatpush2.bf16.msra.mxu0 0
  %1407 = vmatprep.subr.bf16.mxu0 0
  %1408 = vmatpush2.bf16.msra.mxu0 0
  %1409 = vmatprep.subr.bf16.mxu0 0
  %1410 = vmatpush2.bf16.msra.mxu0 0
  %1411 = vmatprep.subr.bf16.mxu0 0
  %1412 = vmatpush2.bf16.msra.mxu0 0
  %1413 = vmatprep.subr.bf16.mxu0 0
  %1414 = vmatpush2.bf16.msra.mxu0 0
  %1415 = vmatprep.subr.bf16.mxu0 0
  %1416 = vmatpush2.bf16.msra.mxu0 0
  %1417 = vmatprep.subr.bf16.mxu0 0
  %1418 = vmatpush2.bf16.msra.mxu0 0
  %1419 = vmatprep.mubr.bf16.mxu0 0
  %1420 = vmatmul.mubr.bf16.gmra.mxu0 %v1340
  %v1421 = vpop.f32.mrf.mxu0
  %v1422 = vadd.f32 %v68, %v1421
  %v1423 = vpop.f32.mrf.mxu0
  %v1424 = vpop.f32.mrf.mxu0
  %v1425 = vadd.f32 %v68, %v1424
  %v1426 = vpop.f32.mrf.mxu0
  %1427 = vmatprep.mubr.bf16.mxu0 0
  %1428 = vmatmul.mubr.bf16.gmra.mxu0 %v1343
  %v1429 = vpop.f32.mrf.mxu0
  %v1430 = vadd.f32 %v68, %v1429
  %v1431 = vpop.f32.mrf.mxu0
  %v1432 = vpop.f32.mrf.mxu0
  %v1433 = vadd.f32 %v68, %v1432
  %v1434 = vpop.f32.mrf.mxu0
  %1435 = vmatprep.mubr.bf16.mxu0 0
  %1436 = vmatmul.mubr.bf16.gmra.mxu0 %v1346
  %v1437 = vpop.f32.mrf.mxu0
  %v1438 = vadd.f32 %v68, %v1437
  %v1439 = vpop.f32.mrf.mxu0
  %v1440 = vpop.f32.mrf.mxu0
  %v1441 = vadd.f32 %v68, %v1440
  %v1442 = vpop.f32.mrf.mxu0
  %1443 = vmatprep.mubr.bf16.mxu0 0
  %1444 = vmatmul.mubr.bf16.gmra.mxu0 %v1349
  %v1445 = vpop.f32.mrf.mxu0
  %v1446 = vadd.f32 %v68, %v1445
  %v1447 = vpop.f32.mrf.mxu0
  %v1448 = vpop.f32.mrf.mxu0
  %v1449 = vadd.f32 %v68, %v1448
  %v1450 = vpop.f32.mrf.mxu0
  %1451 = vmatprep.mubr.bf16.mxu0 0
  %1452 = vmatmul.mubr.bf16.gmra.mxu0 %v1352
  %v1453 = vpop.f32.mrf.mxu0
  %v1454 = vadd.f32 %v68, %v1453
  %v1455 = vpop.f32.mrf.mxu0
  %v1456 = vpop.f32.mrf.mxu0
  %v1457 = vadd.f32 %v68, %v1456
  %v1458 = vpop.f32.mrf.mxu0
  %1459 = vmatprep.mubr.bf16.mxu0 0
  %1460 = vmatmul.mubr.bf16.gmra.mxu0 %v1355
  %v1461 = vpop.f32.mrf.mxu0
  %v1462 = vadd.f32 %v68, %v1461
  %v1463 = vpop.f32.mrf.mxu0
  %v1464 = vpop.f32.mrf.mxu0
  %v1465 = vadd.f32 %v68, %v1464
  %v1466 = vpop.f32.mrf.mxu0
  %1467 = vmatprep.mubr.bf16.mxu0 0
  %1468 = vmatmul.mubr.bf16.gmra.mxu0 %v1358
  %v1469 = vpop.f32.mrf.mxu0
  %v1470 = vadd.f32 %v68, %v1469
  %v1471 = vpop.f32.mrf.mxu0
  %v1472 = vpop.f32.mrf.mxu0
  %v1473 = vadd.f32 %v68, %v1472
  %v1474 = vpop.f32.mrf.mxu0
  %1475 = vmatprep.mubr.bf16.mxu0 0
  %1476 = vmatmul.mubr.bf16.gmra.mxu0 %v1361
  %v1477 = vpop.f32.mrf.mxu0
  %v1478 = vadd.f32 %v68, %v1477
  %v1479 = vpop.f32.mrf.mxu0
  %v1480 = vpop.f32.mrf.mxu0
  %v1481 = vadd.f32 %v68, %v1480
  %v1482 = vpop.f32.mrf.mxu0
  %1483 = vmatprep.mubr.bf16.mxu0 0
  %1484 = vmatmul.mubr.bf16.gmra.mxu0 %v1364
  %v1485 = vpop.f32.mrf.mxu0
  %v1486 = vadd.f32 %v68, %v1485
  %v1487 = vpop.f32.mrf.mxu0
  %v1488 = vpop.f32.mrf.mxu0
  %v1489 = vadd.f32 %v68, %v1488
  %v1490 = vpop.f32.mrf.mxu0
  %1491 = vmatprep.mubr.bf16.mxu0 0
  %1492 = vmatmul.mubr.bf16.gmra.mxu0 %v1367
  %v1493 = vpop.f32.mrf.mxu0
  %v1494 = vadd.f32 %v68, %v1493
  %v1495 = vpop.f32.mrf.mxu0
  %v1496 = vpop.f32.mrf.mxu0
  %v1497 = vadd.f32 %v68, %v1496
  %v1498 = vpop.f32.mrf.mxu0
  %1499 = vmatprep.mubr.bf16.mxu0 0
  %1500 = vmatmul.mubr.bf16.gmra.mxu0 %v1370
  %v1501 = vpop.f32.mrf.mxu0
  %v1502 = vadd.f32 %v68, %v1501
  %v1503 = vpop.f32.mrf.mxu0
  %v1504 = vpop.f32.mrf.mxu0
  %v1505 = vadd.f32 %v68, %v1504
  %v1506 = vpop.f32.mrf.mxu0
  %1507 = vmatprep.mubr.bf16.mxu0 0
  %1508 = vmatmul.mubr.bf16.gmra.mxu0 %v1373
  %v1509 = vpop.f32.mrf.mxu0
  %v1510 = vadd.f32 %v68, %v1509
  %v1511 = vpop.f32.mrf.mxu0
  %v1512 = vpop.f32.mrf.mxu0
  %v1513 = vadd.f32 %v68, %v1512
  %v1514 = vpop.f32.mrf.mxu0
  %1515 = vmatprep.mubr.bf16.mxu0 0
  %1516 = vmatmul.mubr.bf16.gmra.mxu0 %v1376
  %v1517 = vpop.f32.mrf.mxu0
  %v1518 = vadd.f32 %v68, %v1517
  %v1519 = vpop.f32.mrf.mxu0
  %v1520 = vpop.f32.mrf.mxu0
  %v1521 = vadd.f32 %v68, %v1520
  %v1522 = vpop.f32.mrf.mxu0
  %1523 = vmatprep.mubr.bf16.mxu0 0
  %1524 = vmatmul.mubr.bf16.gmra.mxu0 %v1379
  %v1525 = vpop.f32.mrf.mxu0
  %v1526 = vadd.f32 %v68, %v1525
  %v1527 = vpop.f32.mrf.mxu0
  %v1528 = vpop.f32.mrf.mxu0
  %v1529 = vadd.f32 %v68, %v1528
  %v1530 = vpop.f32.mrf.mxu0
  %1531 = vmatprep.mubr.bf16.mxu0 0
  %1532 = vmatmul.mubr.bf16.gmra.mxu0 %v1382
  %v1533 = vpop.f32.mrf.mxu0
  %v1534 = vadd.f32 %v68, %v1533
  %v1535 = vpop.f32.mrf.mxu0
  %v1536 = vpop.f32.mrf.mxu0
  %v1537 = vadd.f32 %v68, %v1536
  %v1538 = vpop.f32.mrf.mxu0
  %1539 = vmatprep.mubr.bf16.mxu0 0
  %1540 = vmatmul.mubr.bf16.gmra.mxu0 %v1385
  %v1541 = vpop.f32.mrf.mxu0
  %v1542 = vadd.f32 %v68, %v1541
  %v1543 = vpop.f32.mrf.mxu0
  %v1544 = vpop.f32.mrf.mxu0
  %v1545 = vadd.f32 %v68, %v1544
  %v1546 = vpop.f32.mrf.mxu0
  %1547 = vdwg.mxu0
  %v1548 = vmax.f32 %v1422, 0.0
  %v1549 = vmax.f32 %v1425, 0.0
  %v1550 = vmax.f32 %v1430, 0.0
  %v1551 = vmax.f32 %v1433, 0.0
  %v1552 = vmax.f32 %v1438, 0.0
  %v1553 = vmax.f32 %v1441, 0.0
  %v1554 = vmax.f32 %v1446, 0.0
  %v1555 = vmax.f32 %v1449, 0.0
  %v1556 = vmax.f32 %v1454, 0.0
  %v1557 = vmax.f32 %v1457, 0.0
  %v1558 = vmax.f32 %v1462, 0.0
  %v1559 = vmax.f32 %v1465, 0.0
  %v1560 = vmax.f32 %v1470, 0.0
  %v1561 = vmax.f32 %v1473, 0.0
  %v1562 = vmax.f32 %v1478, 0.0
  %v1563 = vmax.f32 %v1481, 0.0
  %v1564 = vmax.f32 %v1486, 0.0
  %v1565 = vmax.f32 %v1489, 0.0
  %v1566 = vmax.f32 %v1494, 0.0
  %v1567 = vmax.f32 %v1497, 0.0
  %v1568 = vmax.f32 %v1502, 0.0
  %v1569 = vmax.f32 %v1505, 0.0
  %v1570 = vmax.f32 %v1510, 0.0
  %v1571 = vmax.f32 %v1513, 0.0
  %v1572 = vmax.f32 %v1518, 0.0
  %v1573 = vmax.f32 %v1521, 0.0
  %v1574 = vmax.f32 %v1526, 0.0
  %v1575 = vmax.f32 %v1529, 0.0
  %v1576 = vmax.f32 %v1534, 0.0
  %v1577 = vmax.f32 %v1537, 0.0
  %v1578 = vmax.f32 %v1542, 0.0
  %v1579 = vmax.f32 %v1545, 0.0
  %v1580 = vadd.f32 %v1548, %v1549
  %v1581 = vadd.f32 %v1580, %v1550
  %v1582 = vadd.f32 %v1581, %v1551
  %v1583 = vadd.f32 %v1582, %v1552
  %v1584 = vadd.f32 %v1583, %v1553
  %v1585 = vadd.f32 %v1584, %v1554
  %v1586 = vadd.f32 %v1585, %v1555
  %v1587 = vadd.f32 %v1586, %v1556
  %v1588 = vadd.f32 %v1587, %v1557
  %v1589 = vadd.f32 %v1588, %v1558
  %v1590 = vadd.f32 %v1589, %v1559
  %v1591 = vadd.f32 %v1590, %v1560
  %v1592 = vadd.f32 %v1591, %v1561
  %v1593 = vadd.f32 %v1592, %v1562
  %v1594 = vadd.f32 %v1593, %v1563
  %v1595 = vadd.f32 %v1594, %v1564
  %v1596 = vadd.f32 %v1595, %v1565
  %v1597 = vadd.f32 %v1596, %v1566
  %v1598 = vadd.f32 %v1597, %v1567
  %v1599 = vadd.f32 %v1598, %v1568
  %v1600 = vadd.f32 %v1599, %v1569
  %v1601 = vadd.f32 %v1600, %v1570
  %v1602 = vadd.f32 %v1601, %v1571
  %v1603 = vadd.f32 %v1602, %v1572
  %v1604 = vadd.f32 %v1603, %v1573
  %v1605 = vadd.f32 %v1604, %v1574
  %v1606 = vadd.f32 %v1605, %v1575
  %v1607 = vadd.f32 %v1606, %v1576
  %v1608 = vadd.f32 %v1607, %v1577
  %v1609 = vadd.f32 %v1608, %v1578
  %v1610 = vadd.f32 %v1609, %v1579
  %v1611 = vrot.slane %v1610, 4
  %v1612 = vadd.f32 %v1610, %v1611
  %v1613 = vrot.slane %v1612, 2
  %v1614 = vadd.f32 %v1612, %v1613
  %v1615 = vrot.slane %v1614, 1
  %v1616 = vadd.f32 %v1614, %v1615
  %v1617 = vmul.f32 %v1616, 0.00390625
  %s1618 = scalar_lea.vmem %s0, 512
  %v1619 = vld [vmem:[%s1618] sm:$0xf]
  %v1620 = vld [vmem:[%s1618 + $0x4] sm:$0xf]
  %v1621 = vld [vmem:[%s1618 + $0x8] sm:$0xf]
  %v1622 = vld [vmem:[%s1618 + $0xc] sm:$0xf]
  %v1623 = vld [vmem:[%s1618 + $0x10] sm:$0xf]
  %v1624 = vld [vmem:[%s1618 + $0x14] sm:$0xf]
  %v1625 = vld [vmem:[%s1618 + $0x18] sm:$0xf]
  %v1626 = vld [vmem:[%s1618 + $0x1c] sm:$0xf]
  %v1627 = vld [vmem:[%s1618 + $0x20] sm:$0xf]
  %v1628 = vld [vmem:[%s1618 + $0x24] sm:$0xf]
  %v1629 = vld [vmem:[%s1618 + $0x28] sm:$0xf]
  %v1630 = vld [vmem:[%s1618 + $0x2c] sm:$0xf]
  %v1631 = vld [vmem:[%s1618 + $0x30] sm:$0xf]
  %v1632 = vld [vmem:[%s1618 + $0x34] sm:$0xf]
  %v1633 = vld [vmem:[%s1618 + $0x38] sm:$0xf]
  %v1634 = vld [vmem:[%s1618 + $0x3c] sm:$0xf]
  %v1635 = vld [vmem:[%s1618 + $0x40] sm:$0xf]
  %v1636 = vld [vmem:[%s1618 + $0x44] sm:$0xf]
  %v1637 = vld [vmem:[%s1618 + $0x48] sm:$0xf]
  %v1638 = vld [vmem:[%s1618 + $0x4c] sm:$0xf]
  %v1639 = vld [vmem:[%s1618 + $0x50] sm:$0xf]
  %v1640 = vld [vmem:[%s1618 + $0x54] sm:$0xf]
  %v1641 = vld [vmem:[%s1618 + $0x58] sm:$0xf]
  %v1642 = vld [vmem:[%s1618 + $0x5c] sm:$0xf]
  %v1643 = vld [vmem:[%s1618 + $0x60] sm:$0xf]
  %v1644 = vld [vmem:[%s1618 + $0x64] sm:$0xf]
  %v1645 = vld [vmem:[%s1618 + $0x68] sm:$0xf]
  %v1646 = vld [vmem:[%s1618 + $0x6c] sm:$0xf]
  %v1647 = vld [vmem:[%s1618 + $0x70] sm:$0xf]
  %v1648 = vld [vmem:[%s1618 + $0x74] sm:$0xf]
  %v1649 = vld [vmem:[%s1618 + $0x78] sm:$0xf]
  %v1650 = vld [vmem:[%s1618 + $0x7c] sm:$0xf]
  %v1683 = vunpack.c.l.b16 %v1619
  %v1684 = vunpack.c.l.b16 %v1620
  %v1685 = vunpack.c.l.b16 %v1621
  %v1686 = vunpack.c.l.b16 %v1622
  %v1687 = vunpack.c.l.b16 %v1623
  %v1688 = vunpack.c.l.b16 %v1624
  %v1689 = vunpack.c.l.b16 %v1625
  %v1690 = vunpack.c.l.b16 %v1626
  %v1691 = vunpack.c.l.b16 %v1627
  %v1692 = vunpack.c.l.b16 %v1628
  %v1693 = vunpack.c.l.b16 %v1629
  %v1694 = vunpack.c.l.b16 %v1630
  %v1695 = vunpack.c.l.b16 %v1631
  %v1696 = vunpack.c.l.b16 %v1632
  %v1697 = vunpack.c.l.b16 %v1633
  %v1698 = vunpack.c.l.b16 %v1634
  %v1699 = vunpack.c.l.b16 %v1635
  %v1700 = vunpack.c.l.b16 %v1636
  %v1701 = vunpack.c.l.b16 %v1637
  %v1702 = vunpack.c.l.b16 %v1638
  %v1703 = vunpack.c.l.b16 %v1639
  %v1704 = vunpack.c.l.b16 %v1640
  %v1705 = vunpack.c.l.b16 %v1641
  %v1706 = vunpack.c.l.b16 %v1642
  %v1707 = vunpack.c.l.b16 %v1643
  %v1708 = vunpack.c.l.b16 %v1644
  %v1709 = vunpack.c.l.b16 %v1645
  %v1710 = vunpack.c.l.b16 %v1646
  %v1711 = vunpack.c.l.b16 %v1647
  %v1712 = vunpack.c.l.b16 %v1648
  %v1713 = vunpack.c.l.b16 %v1649
  %v1714 = vunpack.c.l.b16 %v1650
  %v1715 = vpack.c.b16 %v1684, %v1683
  %v1716 = vpack.c.b16 %v1686, %v1685
  %v1717 = vpack.c.b16 %v1688, %v1687
  %v1718 = vpack.c.b16 %v1690, %v1689
  %v1719 = vpack.c.b16 %v1692, %v1691
  %v1720 = vpack.c.b16 %v1694, %v1693
  %v1721 = vpack.c.b16 %v1696, %v1695
  %v1722 = vpack.c.b16 %v1698, %v1697
  %v1723 = vpack.c.b16 %v1700, %v1699
  %v1724 = vpack.c.b16 %v1702, %v1701
  %v1725 = vpack.c.b16 %v1704, %v1703
  %v1726 = vpack.c.b16 %v1706, %v1705
  %v1727 = vpack.c.b16 %v1708, %v1707
  %v1728 = vpack.c.b16 %v1710, %v1709
  %v1729 = vpack.c.b16 %v1712, %v1711
  %v1730 = vpack.c.b16 %v1714, %v1713
  %v1732 = vsel %vm162, %v1715, 0
  %v1735 = vsel %vm162, %v1716, 0
  %v1738 = vsel %vm162, %v1717, 0
  %v1741 = vsel %vm162, %v1718, 0
  %v1744 = vsel %vm162, %v1719, 0
  %v1747 = vsel %vm162, %v1720, 0
  %v1750 = vsel %vm162, %v1721, 0
  %v1753 = vsel %vm162, %v1722, 0
  %v1756 = vsel %vm162, %v1723, 0
  %v1759 = vsel %vm162, %v1724, 0
  %v1762 = vsel %vm162, %v1725, 0
  %v1765 = vsel %vm162, %v1726, 0
  %v1768 = vsel %vm162, %v1727, 0
  %v1771 = vsel %vm162, %v1728, 0
  %v1774 = vsel %vm162, %v1729, 0
  %v1777 = vsel %vm162, %v1730, 0
  %1779 = vmatprep.subr.bf16.mxu0 0
  %1780 = vmatpush1.bf16.msra.mxu0 0
  %1781 = vmatprep.subr.bf16.mxu0 0
  %1782 = vmatpush1.bf16.msra.mxu0 0
  %1783 = vmatprep.subr.bf16.mxu0 0
  %1784 = vmatpush1.bf16.msra.mxu0 0
  %1785 = vmatprep.subr.bf16.mxu0 0
  %1786 = vmatpush1.bf16.msra.mxu0 0
  %1787 = vmatprep.subr.bf16.mxu0 0
  %1788 = vmatpush1.bf16.msra.mxu0 0
  %1789 = vmatprep.subr.bf16.mxu0 0
  %1790 = vmatpush1.bf16.msra.mxu0 0
  %1791 = vmatprep.subr.bf16.mxu0 0
  %1792 = vmatpush1.bf16.msra.mxu0 %v159
  %1793 = vmatprep.subr.bf16.mxu0 0
  %1794 = vmatpush1.bf16.msra.mxu0 %v158
  %1795 = vmatprep.subr.bf16.mxu0 0
  %1796 = vmatpush2.bf16.msra.mxu0 0
  %1797 = vmatprep.subr.bf16.mxu0 0
  %1798 = vmatpush2.bf16.msra.mxu0 0
  %1799 = vmatprep.subr.bf16.mxu0 0
  %1800 = vmatpush2.bf16.msra.mxu0 0
  %1801 = vmatprep.subr.bf16.mxu0 0
  %1802 = vmatpush2.bf16.msra.mxu0 0
  %1803 = vmatprep.subr.bf16.mxu0 0
  %1804 = vmatpush2.bf16.msra.mxu0 0
  %1805 = vmatprep.subr.bf16.mxu0 0
  %1806 = vmatpush2.bf16.msra.mxu0 0
  %1807 = vmatprep.subr.bf16.mxu0 0
  %1808 = vmatpush2.bf16.msra.mxu0 0
  %1809 = vmatprep.subr.bf16.mxu0 0
  %1810 = vmatpush2.bf16.msra.mxu0 0
  %1811 = vmatprep.mubr.bf16.mxu0 0
  %1812 = vmatmul.mubr.bf16.gmra.mxu0 %v1732
  %v1813 = vpop.f32.mrf.mxu0
  %v1814 = vadd.f32 %v68, %v1813
  %v1815 = vpop.f32.mrf.mxu0
  %v1816 = vpop.f32.mrf.mxu0
  %v1817 = vadd.f32 %v68, %v1816
  %v1818 = vpop.f32.mrf.mxu0
  %1819 = vmatprep.mubr.bf16.mxu0 0
  %1820 = vmatmul.mubr.bf16.gmra.mxu0 %v1735
  %v1821 = vpop.f32.mrf.mxu0
  %v1822 = vadd.f32 %v68, %v1821
  %v1823 = vpop.f32.mrf.mxu0
  %v1824 = vpop.f32.mrf.mxu0
  %v1825 = vadd.f32 %v68, %v1824
  %v1826 = vpop.f32.mrf.mxu0
  %1827 = vmatprep.mubr.bf16.mxu0 0
  %1828 = vmatmul.mubr.bf16.gmra.mxu0 %v1738
  %v1829 = vpop.f32.mrf.mxu0
  %v1830 = vadd.f32 %v68, %v1829
  %v1831 = vpop.f32.mrf.mxu0
  %v1832 = vpop.f32.mrf.mxu0
  %v1833 = vadd.f32 %v68, %v1832
  %v1834 = vpop.f32.mrf.mxu0
  %1835 = vmatprep.mubr.bf16.mxu0 0
  %1836 = vmatmul.mubr.bf16.gmra.mxu0 %v1741
  %v1837 = vpop.f32.mrf.mxu0
  %v1838 = vadd.f32 %v68, %v1837
  %v1839 = vpop.f32.mrf.mxu0
  %v1840 = vpop.f32.mrf.mxu0
  %v1841 = vadd.f32 %v68, %v1840
  %v1842 = vpop.f32.mrf.mxu0
  %1843 = vmatprep.mubr.bf16.mxu0 0
  %1844 = vmatmul.mubr.bf16.gmra.mxu0 %v1744
  %v1845 = vpop.f32.mrf.mxu0
  %v1846 = vadd.f32 %v68, %v1845
  %v1847 = vpop.f32.mrf.mxu0
  %v1848 = vpop.f32.mrf.mxu0
  %v1849 = vadd.f32 %v68, %v1848
  %v1850 = vpop.f32.mrf.mxu0
  %1851 = vmatprep.mubr.bf16.mxu0 0
  %1852 = vmatmul.mubr.bf16.gmra.mxu0 %v1747
  %v1853 = vpop.f32.mrf.mxu0
  %v1854 = vadd.f32 %v68, %v1853
  %v1855 = vpop.f32.mrf.mxu0
  %v1856 = vpop.f32.mrf.mxu0
  %v1857 = vadd.f32 %v68, %v1856
  %v1858 = vpop.f32.mrf.mxu0
  %1859 = vmatprep.mubr.bf16.mxu0 0
  %1860 = vmatmul.mubr.bf16.gmra.mxu0 %v1750
  %v1861 = vpop.f32.mrf.mxu0
  %v1862 = vadd.f32 %v68, %v1861
  %v1863 = vpop.f32.mrf.mxu0
  %v1864 = vpop.f32.mrf.mxu0
  %v1865 = vadd.f32 %v68, %v1864
  %v1866 = vpop.f32.mrf.mxu0
  %1867 = vmatprep.mubr.bf16.mxu0 0
  %1868 = vmatmul.mubr.bf16.gmra.mxu0 %v1753
  %v1869 = vpop.f32.mrf.mxu0
  %v1870 = vadd.f32 %v68, %v1869
  %v1871 = vpop.f32.mrf.mxu0
  %v1872 = vpop.f32.mrf.mxu0
  %v1873 = vadd.f32 %v68, %v1872
  %v1874 = vpop.f32.mrf.mxu0
  %1875 = vmatprep.mubr.bf16.mxu0 0
  %1876 = vmatmul.mubr.bf16.gmra.mxu0 %v1756
  %v1877 = vpop.f32.mrf.mxu0
  %v1878 = vadd.f32 %v68, %v1877
  %v1879 = vpop.f32.mrf.mxu0
  %v1880 = vpop.f32.mrf.mxu0
  %v1881 = vadd.f32 %v68, %v1880
  %v1882 = vpop.f32.mrf.mxu0
  %1883 = vmatprep.mubr.bf16.mxu0 0
  %1884 = vmatmul.mubr.bf16.gmra.mxu0 %v1759
  %v1885 = vpop.f32.mrf.mxu0
  %v1886 = vadd.f32 %v68, %v1885
  %v1887 = vpop.f32.mrf.mxu0
  %v1888 = vpop.f32.mrf.mxu0
  %v1889 = vadd.f32 %v68, %v1888
  %v1890 = vpop.f32.mrf.mxu0
  %1891 = vmatprep.mubr.bf16.mxu0 0
  %1892 = vmatmul.mubr.bf16.gmra.mxu0 %v1762
  %v1893 = vpop.f32.mrf.mxu0
  %v1894 = vadd.f32 %v68, %v1893
  %v1895 = vpop.f32.mrf.mxu0
  %v1896 = vpop.f32.mrf.mxu0
  %v1897 = vadd.f32 %v68, %v1896
  %v1898 = vpop.f32.mrf.mxu0
  %1899 = vmatprep.mubr.bf16.mxu0 0
  %1900 = vmatmul.mubr.bf16.gmra.mxu0 %v1765
  %v1901 = vpop.f32.mrf.mxu0
  %v1902 = vadd.f32 %v68, %v1901
  %v1903 = vpop.f32.mrf.mxu0
  %v1904 = vpop.f32.mrf.mxu0
  %v1905 = vadd.f32 %v68, %v1904
  %v1906 = vpop.f32.mrf.mxu0
  %1907 = vmatprep.mubr.bf16.mxu0 0
  %1908 = vmatmul.mubr.bf16.gmra.mxu0 %v1768
  %v1909 = vpop.f32.mrf.mxu0
  %v1910 = vadd.f32 %v68, %v1909
  %v1911 = vpop.f32.mrf.mxu0
  %v1912 = vpop.f32.mrf.mxu0
  %v1913 = vadd.f32 %v68, %v1912
  %v1914 = vpop.f32.mrf.mxu0
  %1915 = vmatprep.mubr.bf16.mxu0 0
  %1916 = vmatmul.mubr.bf16.gmra.mxu0 %v1771
  %v1917 = vpop.f32.mrf.mxu0
  %v1918 = vadd.f32 %v68, %v1917
  %v1919 = vpop.f32.mrf.mxu0
  %v1920 = vpop.f32.mrf.mxu0
  %v1921 = vadd.f32 %v68, %v1920
  %v1922 = vpop.f32.mrf.mxu0
  %1923 = vmatprep.mubr.bf16.mxu0 0
  %1924 = vmatmul.mubr.bf16.gmra.mxu0 %v1774
  %v1925 = vpop.f32.mrf.mxu0
  %v1926 = vadd.f32 %v68, %v1925
  %v1927 = vpop.f32.mrf.mxu0
  %v1928 = vpop.f32.mrf.mxu0
  %v1929 = vadd.f32 %v68, %v1928
  %v1930 = vpop.f32.mrf.mxu0
  %1931 = vmatprep.mubr.bf16.mxu0 0
  %1932 = vmatmul.mubr.bf16.gmra.mxu0 %v1777
  %v1933 = vpop.f32.mrf.mxu0
  %v1934 = vadd.f32 %v68, %v1933
  %v1935 = vpop.f32.mrf.mxu0
  %v1936 = vpop.f32.mrf.mxu0
  %v1937 = vadd.f32 %v68, %v1936
  %v1938 = vpop.f32.mrf.mxu0
  %1939 = vdwg.mxu0
  %v1940 = vmax.f32 %v1814, 0.0
  %v1941 = vmax.f32 %v1817, 0.0
  %v1942 = vmax.f32 %v1822, 0.0
  %v1943 = vmax.f32 %v1825, 0.0
  %v1944 = vmax.f32 %v1830, 0.0
  %v1945 = vmax.f32 %v1833, 0.0
  %v1946 = vmax.f32 %v1838, 0.0
  %v1947 = vmax.f32 %v1841, 0.0
  %v1948 = vmax.f32 %v1846, 0.0
  %v1949 = vmax.f32 %v1849, 0.0
  %v1950 = vmax.f32 %v1854, 0.0
  %v1951 = vmax.f32 %v1857, 0.0
  %v1952 = vmax.f32 %v1862, 0.0
  %v1953 = vmax.f32 %v1865, 0.0
  %v1954 = vmax.f32 %v1870, 0.0
  %v1955 = vmax.f32 %v1873, 0.0
  %v1956 = vmax.f32 %v1878, 0.0
  %v1957 = vmax.f32 %v1881, 0.0
  %v1958 = vmax.f32 %v1886, 0.0
  %v1959 = vmax.f32 %v1889, 0.0
  %v1960 = vmax.f32 %v1894, 0.0
  %v1961 = vmax.f32 %v1897, 0.0
  %v1962 = vmax.f32 %v1902, 0.0
  %v1963 = vmax.f32 %v1905, 0.0
  %v1964 = vmax.f32 %v1910, 0.0
  %v1965 = vmax.f32 %v1913, 0.0
  %v1966 = vmax.f32 %v1918, 0.0
  %v1967 = vmax.f32 %v1921, 0.0
  %v1968 = vmax.f32 %v1926, 0.0
  %v1969 = vmax.f32 %v1929, 0.0
  %v1970 = vmax.f32 %v1934, 0.0
  %v1971 = vmax.f32 %v1937, 0.0
  %v1972 = vadd.f32 %v1940, %v1941
  %v1973 = vadd.f32 %v1972, %v1942
  %v1974 = vadd.f32 %v1973, %v1943
  %v1975 = vadd.f32 %v1974, %v1944
  %v1976 = vadd.f32 %v1975, %v1945
  %v1977 = vadd.f32 %v1976, %v1946
  %v1978 = vadd.f32 %v1977, %v1947
  %v1979 = vadd.f32 %v1978, %v1948
  %v1980 = vadd.f32 %v1979, %v1949
  %v1981 = vadd.f32 %v1980, %v1950
  %v1982 = vadd.f32 %v1981, %v1951
  %v1983 = vadd.f32 %v1982, %v1952
  %v1984 = vadd.f32 %v1983, %v1953
  %v1985 = vadd.f32 %v1984, %v1954
  %v1986 = vadd.f32 %v1985, %v1955
  %v1987 = vadd.f32 %v1986, %v1956
  %v1988 = vadd.f32 %v1987, %v1957
  %v1989 = vadd.f32 %v1988, %v1958
  %v1990 = vadd.f32 %v1989, %v1959
  %v1991 = vadd.f32 %v1990, %v1960
  %v1992 = vadd.f32 %v1991, %v1961
  %v1993 = vadd.f32 %v1992, %v1962
  %v1994 = vadd.f32 %v1993, %v1963
  %v1995 = vadd.f32 %v1994, %v1964
  %v1996 = vadd.f32 %v1995, %v1965
  %v1997 = vadd.f32 %v1996, %v1966
  %v1998 = vadd.f32 %v1997, %v1967
  %v1999 = vadd.f32 %v1998, %v1968
  %v2000 = vadd.f32 %v1999, %v1969
  %v2001 = vadd.f32 %v2000, %v1970
  %v2002 = vadd.f32 %v2001, %v1971
  %v2003 = vrot.slane %v2002, 4
  %v2004 = vadd.f32 %v2002, %v2003
  %v2005 = vrot.slane %v2004, 2
  %v2006 = vadd.f32 %v2004, %v2005
  %v2007 = vrot.slane %v2006, 1
  %v2008 = vadd.f32 %v2006, %v2007
  %v2009 = vmul.f32 %v2008, 0.00390625
  %s2010 = scalar_lea.vmem %s0, 640
  %v2011 = vld [vmem:[%s2010] sm:$0xf]
  %v2012 = vld [vmem:[%s2010 + $0x4] sm:$0xf]
  %v2013 = vld [vmem:[%s2010 + $0x8] sm:$0xf]
  %v2014 = vld [vmem:[%s2010 + $0xc] sm:$0xf]
  %v2015 = vld [vmem:[%s2010 + $0x10] sm:$0xf]
  %v2016 = vld [vmem:[%s2010 + $0x14] sm:$0xf]
  %v2017 = vld [vmem:[%s2010 + $0x18] sm:$0xf]
  %v2018 = vld [vmem:[%s2010 + $0x1c] sm:$0xf]
  %v2019 = vld [vmem:[%s2010 + $0x20] sm:$0xf]
  %v2020 = vld [vmem:[%s2010 + $0x24] sm:$0xf]
  %v2021 = vld [vmem:[%s2010 + $0x28] sm:$0xf]
  %v2022 = vld [vmem:[%s2010 + $0x2c] sm:$0xf]
  %v2023 = vld [vmem:[%s2010 + $0x30] sm:$0xf]
  %v2024 = vld [vmem:[%s2010 + $0x34] sm:$0xf]
  %v2025 = vld [vmem:[%s2010 + $0x38] sm:$0xf]
  %v2026 = vld [vmem:[%s2010 + $0x3c] sm:$0xf]
  %v2027 = vld [vmem:[%s2010 + $0x40] sm:$0xf]
  %v2028 = vld [vmem:[%s2010 + $0x44] sm:$0xf]
  %v2029 = vld [vmem:[%s2010 + $0x48] sm:$0xf]
  %v2030 = vld [vmem:[%s2010 + $0x4c] sm:$0xf]
  %v2031 = vld [vmem:[%s2010 + $0x50] sm:$0xf]
  %v2032 = vld [vmem:[%s2010 + $0x54] sm:$0xf]
  %v2033 = vld [vmem:[%s2010 + $0x58] sm:$0xf]
  %v2034 = vld [vmem:[%s2010 + $0x5c] sm:$0xf]
  %v2035 = vld [vmem:[%s2010 + $0x60] sm:$0xf]
  %v2036 = vld [vmem:[%s2010 + $0x64] sm:$0xf]
  %v2037 = vld [vmem:[%s2010 + $0x68] sm:$0xf]
  %v2038 = vld [vmem:[%s2010 + $0x6c] sm:$0xf]
  %v2039 = vld [vmem:[%s2010 + $0x70] sm:$0xf]
  %v2040 = vld [vmem:[%s2010 + $0x74] sm:$0xf]
  %v2041 = vld [vmem:[%s2010 + $0x78] sm:$0xf]
  %v2042 = vld [vmem:[%s2010 + $0x7c] sm:$0xf]
  %v2075 = vunpack.c.l.b16 %v2011
  %v2076 = vunpack.c.l.b16 %v2012
  %v2077 = vunpack.c.l.b16 %v2013
  %v2078 = vunpack.c.l.b16 %v2014
  %v2079 = vunpack.c.l.b16 %v2015
  %v2080 = vunpack.c.l.b16 %v2016
  %v2081 = vunpack.c.l.b16 %v2017
  %v2082 = vunpack.c.l.b16 %v2018
  %v2083 = vunpack.c.l.b16 %v2019
  %v2084 = vunpack.c.l.b16 %v2020
  %v2085 = vunpack.c.l.b16 %v2021
  %v2086 = vunpack.c.l.b16 %v2022
  %v2087 = vunpack.c.l.b16 %v2023
  %v2088 = vunpack.c.l.b16 %v2024
  %v2089 = vunpack.c.l.b16 %v2025
  %v2090 = vunpack.c.l.b16 %v2026
  %v2091 = vunpack.c.l.b16 %v2027
  %v2092 = vunpack.c.l.b16 %v2028
  %v2093 = vunpack.c.l.b16 %v2029
  %v2094 = vunpack.c.l.b16 %v2030
  %v2095 = vunpack.c.l.b16 %v2031
  %v2096 = vunpack.c.l.b16 %v2032
  %v2097 = vunpack.c.l.b16 %v2033
  %v2098 = vunpack.c.l.b16 %v2034
  %v2099 = vunpack.c.l.b16 %v2035
  %v2100 = vunpack.c.l.b16 %v2036
  %v2101 = vunpack.c.l.b16 %v2037
  %v2102 = vunpack.c.l.b16 %v2038
  %v2103 = vunpack.c.l.b16 %v2039
  %v2104 = vunpack.c.l.b16 %v2040
  %v2105 = vunpack.c.l.b16 %v2041
  %v2106 = vunpack.c.l.b16 %v2042
  %v2107 = vpack.c.b16 %v2076, %v2075
  %v2108 = vpack.c.b16 %v2078, %v2077
  %v2109 = vpack.c.b16 %v2080, %v2079
  %v2110 = vpack.c.b16 %v2082, %v2081
  %v2111 = vpack.c.b16 %v2084, %v2083
  %v2112 = vpack.c.b16 %v2086, %v2085
  %v2113 = vpack.c.b16 %v2088, %v2087
  %v2114 = vpack.c.b16 %v2090, %v2089
  %v2115 = vpack.c.b16 %v2092, %v2091
  %v2116 = vpack.c.b16 %v2094, %v2093
  %v2117 = vpack.c.b16 %v2096, %v2095
  %v2118 = vpack.c.b16 %v2098, %v2097
  %v2119 = vpack.c.b16 %v2100, %v2099
  %v2120 = vpack.c.b16 %v2102, %v2101
  %v2121 = vpack.c.b16 %v2104, %v2103
  %v2122 = vpack.c.b16 %v2106, %v2105
  %v2124 = vsel %vm162, %v2107, 0
  %v2127 = vsel %vm162, %v2108, 0
  %v2130 = vsel %vm162, %v2109, 0
  %v2133 = vsel %vm162, %v2110, 0
  %v2136 = vsel %vm162, %v2111, 0
  %v2139 = vsel %vm162, %v2112, 0
  %v2142 = vsel %vm162, %v2113, 0
  %v2145 = vsel %vm162, %v2114, 0
  %v2148 = vsel %vm162, %v2115, 0
  %v2151 = vsel %vm162, %v2116, 0
  %v2154 = vsel %vm162, %v2117, 0
  %v2157 = vsel %vm162, %v2118, 0
  %v2160 = vsel %vm162, %v2119, 0
  %v2163 = vsel %vm162, %v2120, 0
  %v2166 = vsel %vm162, %v2121, 0
  %v2169 = vsel %vm162, %v2122, 0
  %2171 = vmatprep.subr.bf16.mxu0 0
  %2172 = vmatpush1.bf16.msra.mxu0 0
  %2173 = vmatprep.subr.bf16.mxu0 0
  %2174 = vmatpush1.bf16.msra.mxu0 0
  %2175 = vmatprep.subr.bf16.mxu0 0
  %2176 = vmatpush1.bf16.msra.mxu0 0
  %2177 = vmatprep.subr.bf16.mxu0 0
  %2178 = vmatpush1.bf16.msra.mxu0 0
  %2179 = vmatprep.subr.bf16.mxu0 0
  %2180 = vmatpush1.bf16.msra.mxu0 0
  %2181 = vmatprep.subr.bf16.mxu0 0
  %2182 = vmatpush1.bf16.msra.mxu0 0
  %2183 = vmatprep.subr.bf16.mxu0 0
  %2184 = vmatpush1.bf16.msra.mxu0 %v159
  %2185 = vmatprep.subr.bf16.mxu0 0
  %2186 = vmatpush1.bf16.msra.mxu0 %v158
  %2187 = vmatprep.subr.bf16.mxu0 0
  %2188 = vmatpush2.bf16.msra.mxu0 0
  %2189 = vmatprep.subr.bf16.mxu0 0
  %2190 = vmatpush2.bf16.msra.mxu0 0
  %2191 = vmatprep.subr.bf16.mxu0 0
  %2192 = vmatpush2.bf16.msra.mxu0 0
  %2193 = vmatprep.subr.bf16.mxu0 0
  %2194 = vmatpush2.bf16.msra.mxu0 0
  %2195 = vmatprep.subr.bf16.mxu0 0
  %2196 = vmatpush2.bf16.msra.mxu0 0
  %2197 = vmatprep.subr.bf16.mxu0 0
  %2198 = vmatpush2.bf16.msra.mxu0 0
  %2199 = vmatprep.subr.bf16.mxu0 0
  %2200 = vmatpush2.bf16.msra.mxu0 0
  %2201 = vmatprep.subr.bf16.mxu0 0
  %2202 = vmatpush2.bf16.msra.mxu0 0
  %2203 = vmatprep.mubr.bf16.mxu0 0
  %2204 = vmatmul.mubr.bf16.gmra.mxu0 %v2124
  %v2205 = vpop.f32.mrf.mxu0
  %v2206 = vadd.f32 %v68, %v2205
  %v2207 = vpop.f32.mrf.mxu0
  %v2208 = vpop.f32.mrf.mxu0
  %v2209 = vadd.f32 %v68, %v2208
  %v2210 = vpop.f32.mrf.mxu0
  %2211 = vmatprep.mubr.bf16.mxu0 0
  %2212 = vmatmul.mubr.bf16.gmra.mxu0 %v2127
  %v2213 = vpop.f32.mrf.mxu0
  %v2214 = vadd.f32 %v68, %v2213
  %v2215 = vpop.f32.mrf.mxu0
  %v2216 = vpop.f32.mrf.mxu0
  %v2217 = vadd.f32 %v68, %v2216
  %v2218 = vpop.f32.mrf.mxu0
  %2219 = vmatprep.mubr.bf16.mxu0 0
  %2220 = vmatmul.mubr.bf16.gmra.mxu0 %v2130
  %v2221 = vpop.f32.mrf.mxu0
  %v2222 = vadd.f32 %v68, %v2221
  %v2223 = vpop.f32.mrf.mxu0
  %v2224 = vpop.f32.mrf.mxu0
  %v2225 = vadd.f32 %v68, %v2224
  %v2226 = vpop.f32.mrf.mxu0
  %2227 = vmatprep.mubr.bf16.mxu0 0
  %2228 = vmatmul.mubr.bf16.gmra.mxu0 %v2133
  %v2229 = vpop.f32.mrf.mxu0
  %v2230 = vadd.f32 %v68, %v2229
  %v2231 = vpop.f32.mrf.mxu0
  %v2232 = vpop.f32.mrf.mxu0
  %v2233 = vadd.f32 %v68, %v2232
  %v2234 = vpop.f32.mrf.mxu0
  %2235 = vmatprep.mubr.bf16.mxu0 0
  %2236 = vmatmul.mubr.bf16.gmra.mxu0 %v2136
  %v2237 = vpop.f32.mrf.mxu0
  %v2238 = vadd.f32 %v68, %v2237
  %v2239 = vpop.f32.mrf.mxu0
  %v2240 = vpop.f32.mrf.mxu0
  %v2241 = vadd.f32 %v68, %v2240
  %v2242 = vpop.f32.mrf.mxu0
  %2243 = vmatprep.mubr.bf16.mxu0 0
  %2244 = vmatmul.mubr.bf16.gmra.mxu0 %v2139
  %v2245 = vpop.f32.mrf.mxu0
  %v2246 = vadd.f32 %v68, %v2245
  %v2247 = vpop.f32.mrf.mxu0
  %v2248 = vpop.f32.mrf.mxu0
  %v2249 = vadd.f32 %v68, %v2248
  %v2250 = vpop.f32.mrf.mxu0
  %2251 = vmatprep.mubr.bf16.mxu0 0
  %2252 = vmatmul.mubr.bf16.gmra.mxu0 %v2142
  %v2253 = vpop.f32.mrf.mxu0
  %v2254 = vadd.f32 %v68, %v2253
  %v2255 = vpop.f32.mrf.mxu0
  %v2256 = vpop.f32.mrf.mxu0
  %v2257 = vadd.f32 %v68, %v2256
  %v2258 = vpop.f32.mrf.mxu0
  %2259 = vmatprep.mubr.bf16.mxu0 0
  %2260 = vmatmul.mubr.bf16.gmra.mxu0 %v2145
  %v2261 = vpop.f32.mrf.mxu0
  %v2262 = vadd.f32 %v68, %v2261
  %v2263 = vpop.f32.mrf.mxu0
  %v2264 = vpop.f32.mrf.mxu0
  %v2265 = vadd.f32 %v68, %v2264
  %v2266 = vpop.f32.mrf.mxu0
  %2267 = vmatprep.mubr.bf16.mxu0 0
  %2268 = vmatmul.mubr.bf16.gmra.mxu0 %v2148
  %v2269 = vpop.f32.mrf.mxu0
  %v2270 = vadd.f32 %v68, %v2269
  %v2271 = vpop.f32.mrf.mxu0
  %v2272 = vpop.f32.mrf.mxu0
  %v2273 = vadd.f32 %v68, %v2272
  %v2274 = vpop.f32.mrf.mxu0
  %2275 = vmatprep.mubr.bf16.mxu0 0
  %2276 = vmatmul.mubr.bf16.gmra.mxu0 %v2151
  %v2277 = vpop.f32.mrf.mxu0
  %v2278 = vadd.f32 %v68, %v2277
  %v2279 = vpop.f32.mrf.mxu0
  %v2280 = vpop.f32.mrf.mxu0
  %v2281 = vadd.f32 %v68, %v2280
  %v2282 = vpop.f32.mrf.mxu0
  %2283 = vmatprep.mubr.bf16.mxu0 0
  %2284 = vmatmul.mubr.bf16.gmra.mxu0 %v2154
  %v2285 = vpop.f32.mrf.mxu0
  %v2286 = vadd.f32 %v68, %v2285
  %v2287 = vpop.f32.mrf.mxu0
  %v2288 = vpop.f32.mrf.mxu0
  %v2289 = vadd.f32 %v68, %v2288
  %v2290 = vpop.f32.mrf.mxu0
  %2291 = vmatprep.mubr.bf16.mxu0 0
  %2292 = vmatmul.mubr.bf16.gmra.mxu0 %v2157
  %v2293 = vpop.f32.mrf.mxu0
  %v2294 = vadd.f32 %v68, %v2293
  %v2295 = vpop.f32.mrf.mxu0
  %v2296 = vpop.f32.mrf.mxu0
  %v2297 = vadd.f32 %v68, %v2296
  %v2298 = vpop.f32.mrf.mxu0
  %2299 = vmatprep.mubr.bf16.mxu0 0
  %2300 = vmatmul.mubr.bf16.gmra.mxu0 %v2160
  %v2301 = vpop.f32.mrf.mxu0
  %v2302 = vadd.f32 %v68, %v2301
  %v2303 = vpop.f32.mrf.mxu0
  %v2304 = vpop.f32.mrf.mxu0
  %v2305 = vadd.f32 %v68, %v2304
  %v2306 = vpop.f32.mrf.mxu0
  %2307 = vmatprep.mubr.bf16.mxu0 0
  %2308 = vmatmul.mubr.bf16.gmra.mxu0 %v2163
  %v2309 = vpop.f32.mrf.mxu0
  %v2310 = vadd.f32 %v68, %v2309
  %v2311 = vpop.f32.mrf.mxu0
  %v2312 = vpop.f32.mrf.mxu0
  %v2313 = vadd.f32 %v68, %v2312
  %v2314 = vpop.f32.mrf.mxu0
  %2315 = vmatprep.mubr.bf16.mxu0 0
  %2316 = vmatmul.mubr.bf16.gmra.mxu0 %v2166
  %v2317 = vpop.f32.mrf.mxu0
  %v2318 = vadd.f32 %v68, %v2317
  %v2319 = vpop.f32.mrf.mxu0
  %v2320 = vpop.f32.mrf.mxu0
  %v2321 = vadd.f32 %v68, %v2320
  %v2322 = vpop.f32.mrf.mxu0
  %2323 = vmatprep.mubr.bf16.mxu0 0
  %2324 = vmatmul.mubr.bf16.gmra.mxu0 %v2169
  %v2325 = vpop.f32.mrf.mxu0
  %v2326 = vadd.f32 %v68, %v2325
  %v2327 = vpop.f32.mrf.mxu0
  %v2328 = vpop.f32.mrf.mxu0
  %v2329 = vadd.f32 %v68, %v2328
  %v2330 = vpop.f32.mrf.mxu0
  %2331 = vdwg.mxu0
  %v2332 = vmax.f32 %v2206, 0.0
  %v2333 = vmax.f32 %v2209, 0.0
  %v2334 = vmax.f32 %v2214, 0.0
  %v2335 = vmax.f32 %v2217, 0.0
  %v2336 = vmax.f32 %v2222, 0.0
  %v2337 = vmax.f32 %v2225, 0.0
  %v2338 = vmax.f32 %v2230, 0.0
  %v2339 = vmax.f32 %v2233, 0.0
  %v2340 = vmax.f32 %v2238, 0.0
  %v2341 = vmax.f32 %v2241, 0.0
  %v2342 = vmax.f32 %v2246, 0.0
  %v2343 = vmax.f32 %v2249, 0.0
  %v2344 = vmax.f32 %v2254, 0.0
  %v2345 = vmax.f32 %v2257, 0.0
  %v2346 = vmax.f32 %v2262, 0.0
  %v2347 = vmax.f32 %v2265, 0.0
  %v2348 = vmax.f32 %v2270, 0.0
  %v2349 = vmax.f32 %v2273, 0.0
  %v2350 = vmax.f32 %v2278, 0.0
  %v2351 = vmax.f32 %v2281, 0.0
  %v2352 = vmax.f32 %v2286, 0.0
  %v2353 = vmax.f32 %v2289, 0.0
  %v2354 = vmax.f32 %v2294, 0.0
  %v2355 = vmax.f32 %v2297, 0.0
  %v2356 = vmax.f32 %v2302, 0.0
  %v2357 = vmax.f32 %v2305, 0.0
  %v2358 = vmax.f32 %v2310, 0.0
  %v2359 = vmax.f32 %v2313, 0.0
  %v2360 = vmax.f32 %v2318, 0.0
  %v2361 = vmax.f32 %v2321, 0.0
  %v2362 = vmax.f32 %v2326, 0.0
  %v2363 = vmax.f32 %v2329, 0.0
  %v2364 = vadd.f32 %v2332, %v2333
  %v2365 = vadd.f32 %v2364, %v2334
  %v2366 = vadd.f32 %v2365, %v2335
  %v2367 = vadd.f32 %v2366, %v2336
  %v2368 = vadd.f32 %v2367, %v2337
  %v2369 = vadd.f32 %v2368, %v2338
  %v2370 = vadd.f32 %v2369, %v2339
  %v2371 = vadd.f32 %v2370, %v2340
  %v2372 = vadd.f32 %v2371, %v2341
  %v2373 = vadd.f32 %v2372, %v2342
  %v2374 = vadd.f32 %v2373, %v2343
  %v2375 = vadd.f32 %v2374, %v2344
  %v2376 = vadd.f32 %v2375, %v2345
  %v2377 = vadd.f32 %v2376, %v2346
  %v2378 = vadd.f32 %v2377, %v2347
  %v2379 = vadd.f32 %v2378, %v2348
  %v2380 = vadd.f32 %v2379, %v2349
  %v2381 = vadd.f32 %v2380, %v2350
  %v2382 = vadd.f32 %v2381, %v2351
  %v2383 = vadd.f32 %v2382, %v2352
  %v2384 = vadd.f32 %v2383, %v2353
  %v2385 = vadd.f32 %v2384, %v2354
  %v2386 = vadd.f32 %v2385, %v2355
  %v2387 = vadd.f32 %v2386, %v2356
  %v2388 = vadd.f32 %v2387, %v2357
  %v2389 = vadd.f32 %v2388, %v2358
  %v2390 = vadd.f32 %v2389, %v2359
  %v2391 = vadd.f32 %v2390, %v2360
  %v2392 = vadd.f32 %v2391, %v2361
  %v2393 = vadd.f32 %v2392, %v2362
  %v2394 = vadd.f32 %v2393, %v2363
  %v2395 = vrot.slane %v2394, 4
  %v2396 = vadd.f32 %v2394, %v2395
  %v2397 = vrot.slane %v2396, 2
  %v2398 = vadd.f32 %v2396, %v2397
  %v2399 = vrot.slane %v2398, 1
  %v2400 = vadd.f32 %v2398, %v2399
  %v2401 = vmul.f32 %v2400, 0.00390625
  %s2402 = scalar_lea.vmem %s0, 768
  %v2403 = vld [vmem:[%s2402] sm:$0xf]
  %v2404 = vld [vmem:[%s2402 + $0x4] sm:$0xf]
  %v2405 = vld [vmem:[%s2402 + $0x8] sm:$0xf]
  %v2406 = vld [vmem:[%s2402 + $0xc] sm:$0xf]
  %v2407 = vld [vmem:[%s2402 + $0x10] sm:$0xf]
  %v2408 = vld [vmem:[%s2402 + $0x14] sm:$0xf]
  %v2409 = vld [vmem:[%s2402 + $0x18] sm:$0xf]
  %v2410 = vld [vmem:[%s2402 + $0x1c] sm:$0xf]
  %v2411 = vld [vmem:[%s2402 + $0x20] sm:$0xf]
  %v2412 = vld [vmem:[%s2402 + $0x24] sm:$0xf]
  %v2413 = vld [vmem:[%s2402 + $0x28] sm:$0xf]
  %v2414 = vld [vmem:[%s2402 + $0x2c] sm:$0xf]
  %v2415 = vld [vmem:[%s2402 + $0x30] sm:$0xf]
  %v2416 = vld [vmem:[%s2402 + $0x34] sm:$0xf]
  %v2417 = vld [vmem:[%s2402 + $0x38] sm:$0xf]
  %v2418 = vld [vmem:[%s2402 + $0x3c] sm:$0xf]
  %v2419 = vld [vmem:[%s2402 + $0x40] sm:$0xf]
  %v2420 = vld [vmem:[%s2402 + $0x44] sm:$0xf]
  %v2421 = vld [vmem:[%s2402 + $0x48] sm:$0xf]
  %v2422 = vld [vmem:[%s2402 + $0x4c] sm:$0xf]
  %v2423 = vld [vmem:[%s2402 + $0x50] sm:$0xf]
  %v2424 = vld [vmem:[%s2402 + $0x54] sm:$0xf]
  %v2425 = vld [vmem:[%s2402 + $0x58] sm:$0xf]
  %v2426 = vld [vmem:[%s2402 + $0x5c] sm:$0xf]
  %v2427 = vld [vmem:[%s2402 + $0x60] sm:$0xf]
  %v2428 = vld [vmem:[%s2402 + $0x64] sm:$0xf]
  %v2429 = vld [vmem:[%s2402 + $0x68] sm:$0xf]
  %v2430 = vld [vmem:[%s2402 + $0x6c] sm:$0xf]
  %v2431 = vld [vmem:[%s2402 + $0x70] sm:$0xf]
  %v2432 = vld [vmem:[%s2402 + $0x74] sm:$0xf]
  %v2433 = vld [vmem:[%s2402 + $0x78] sm:$0xf]
  %v2434 = vld [vmem:[%s2402 + $0x7c] sm:$0xf]
  %v2467 = vunpack.c.l.b16 %v2403
  %v2468 = vunpack.c.l.b16 %v2404
  %v2469 = vunpack.c.l.b16 %v2405
  %v2470 = vunpack.c.l.b16 %v2406
  %v2471 = vunpack.c.l.b16 %v2407
  %v2472 = vunpack.c.l.b16 %v2408
  %v2473 = vunpack.c.l.b16 %v2409
  %v2474 = vunpack.c.l.b16 %v2410
  %v2475 = vunpack.c.l.b16 %v2411
  %v2476 = vunpack.c.l.b16 %v2412
  %v2477 = vunpack.c.l.b16 %v2413
  %v2478 = vunpack.c.l.b16 %v2414
  %v2479 = vunpack.c.l.b16 %v2415
  %v2480 = vunpack.c.l.b16 %v2416
  %v2481 = vunpack.c.l.b16 %v2417
  %v2482 = vunpack.c.l.b16 %v2418
  %v2483 = vunpack.c.l.b16 %v2419
  %v2484 = vunpack.c.l.b16 %v2420
  %v2485 = vunpack.c.l.b16 %v2421
  %v2486 = vunpack.c.l.b16 %v2422
  %v2487 = vunpack.c.l.b16 %v2423
  %v2488 = vunpack.c.l.b16 %v2424
  %v2489 = vunpack.c.l.b16 %v2425
  %v2490 = vunpack.c.l.b16 %v2426
  %v2491 = vunpack.c.l.b16 %v2427
  %v2492 = vunpack.c.l.b16 %v2428
  %v2493 = vunpack.c.l.b16 %v2429
  %v2494 = vunpack.c.l.b16 %v2430
  %v2495 = vunpack.c.l.b16 %v2431
  %v2496 = vunpack.c.l.b16 %v2432
  %v2497 = vunpack.c.l.b16 %v2433
  %v2498 = vunpack.c.l.b16 %v2434
  %v2499 = vpack.c.b16 %v2468, %v2467
  %v2500 = vpack.c.b16 %v2470, %v2469
  %v2501 = vpack.c.b16 %v2472, %v2471
  %v2502 = vpack.c.b16 %v2474, %v2473
  %v2503 = vpack.c.b16 %v2476, %v2475
  %v2504 = vpack.c.b16 %v2478, %v2477
  %v2505 = vpack.c.b16 %v2480, %v2479
  %v2506 = vpack.c.b16 %v2482, %v2481
  %v2507 = vpack.c.b16 %v2484, %v2483
  %v2508 = vpack.c.b16 %v2486, %v2485
  %v2509 = vpack.c.b16 %v2488, %v2487
  %v2510 = vpack.c.b16 %v2490, %v2489
  %v2511 = vpack.c.b16 %v2492, %v2491
  %v2512 = vpack.c.b16 %v2494, %v2493
  %v2513 = vpack.c.b16 %v2496, %v2495
  %v2514 = vpack.c.b16 %v2498, %v2497
  %v2516 = vsel %vm162, %v2499, 0
  %v2519 = vsel %vm162, %v2500, 0
  %v2522 = vsel %vm162, %v2501, 0
  %v2525 = vsel %vm162, %v2502, 0
  %v2528 = vsel %vm162, %v2503, 0
  %v2531 = vsel %vm162, %v2504, 0
  %v2534 = vsel %vm162, %v2505, 0
  %v2537 = vsel %vm162, %v2506, 0
  %v2540 = vsel %vm162, %v2507, 0
  %v2543 = vsel %vm162, %v2508, 0
  %v2546 = vsel %vm162, %v2509, 0
  %v2549 = vsel %vm162, %v2510, 0
  %v2552 = vsel %vm162, %v2511, 0
  %v2555 = vsel %vm162, %v2512, 0
  %v2558 = vsel %vm162, %v2513, 0
  %v2561 = vsel %vm162, %v2514, 0
  %2563 = vmatprep.subr.bf16.mxu0 0
  %2564 = vmatpush1.bf16.msra.mxu0 0
  %2565 = vmatprep.subr.bf16.mxu0 0
  %2566 = vmatpush1.bf16.msra.mxu0 0
  %2567 = vmatprep.subr.bf16.mxu0 0
  %2568 = vmatpush1.bf16.msra.mxu0 0
  %2569 = vmatprep.subr.bf16.mxu0 0
  %2570 = vmatpush1.bf16.msra.mxu0 0
  %2571 = vmatprep.subr.bf16.mxu0 0
  %2572 = vmatpush1.bf16.msra.mxu0 0
  %2573 = vmatprep.subr.bf16.mxu0 0
  %2574 = vmatpush1.bf16.msra.mxu0 0
  %2575 = vmatprep.subr.bf16.mxu0 0
  %2576 = vmatpush1.bf16.msra.mxu0 %v159
  %2577 = vmatprep.subr.bf16.mxu0 0
  %2578 = vmatpush1.bf16.msra.mxu0 %v158
  %2579 = vmatprep.subr.bf16.mxu0 0
  %2580 = vmatpush2.bf16.msra.mxu0 0
  %2581 = vmatprep.subr.bf16.mxu0 0
  %2582 = vmatpush2.bf16.msra.mxu0 0
  %2583 = vmatprep.subr.bf16.mxu0 0
  %2584 = vmatpush2.bf16.msra.mxu0 0
  %2585 = vmatprep.subr.bf16.mxu0 0
  %2586 = vmatpush2.bf16.msra.mxu0 0
  %2587 = vmatprep.subr.bf16.mxu0 0
  %2588 = vmatpush2.bf16.msra.mxu0 0
  %2589 = vmatprep.subr.bf16.mxu0 0
  %2590 = vmatpush2.bf16.msra.mxu0 0
  %2591 = vmatprep.subr.bf16.mxu0 0
  %2592 = vmatpush2.bf16.msra.mxu0 0
  %2593 = vmatprep.subr.bf16.mxu0 0
  %2594 = vmatpush2.bf16.msra.mxu0 0
  %2595 = vmatprep.mubr.bf16.mxu0 0
  %2596 = vmatmul.mubr.bf16.gmra.mxu0 %v2516
  %v2597 = vpop.f32.mrf.mxu0
  %v2598 = vadd.f32 %v68, %v2597
  %v2599 = vpop.f32.mrf.mxu0
  %v2600 = vpop.f32.mrf.mxu0
  %v2601 = vadd.f32 %v68, %v2600
  %v2602 = vpop.f32.mrf.mxu0
  %2603 = vmatprep.mubr.bf16.mxu0 0
  %2604 = vmatmul.mubr.bf16.gmra.mxu0 %v2519
  %v2605 = vpop.f32.mrf.mxu0
  %v2606 = vadd.f32 %v68, %v2605
  %v2607 = vpop.f32.mrf.mxu0
  %v2608 = vpop.f32.mrf.mxu0
  %v2609 = vadd.f32 %v68, %v2608
  %v2610 = vpop.f32.mrf.mxu0
  %2611 = vmatprep.mubr.bf16.mxu0 0
  %2612 = vmatmul.mubr.bf16.gmra.mxu0 %v2522
  %v2613 = vpop.f32.mrf.mxu0
  %v2614 = vadd.f32 %v68, %v2613
  %v2615 = vpop.f32.mrf.mxu0
  %v2616 = vpop.f32.mrf.mxu0
  %v2617 = vadd.f32 %v68, %v2616
  %v2618 = vpop.f32.mrf.mxu0
  %2619 = vmatprep.mubr.bf16.mxu0 0
  %2620 = vmatmul.mubr.bf16.gmra.mxu0 %v2525
  %v2621 = vpop.f32.mrf.mxu0
  %v2622 = vadd.f32 %v68, %v2621
  %v2623 = vpop.f32.mrf.mxu0
  %v2624 = vpop.f32.mrf.mxu0
  %v2625 = vadd.f32 %v68, %v2624
  %v2626 = vpop.f32.mrf.mxu0
  %2627 = vmatprep.mubr.bf16.mxu0 0
  %2628 = vmatmul.mubr.bf16.gmra.mxu0 %v2528
  %v2629 = vpop.f32.mrf.mxu0
  %v2630 = vadd.f32 %v68, %v2629
  %v2631 = vpop.f32.mrf.mxu0
  %v2632 = vpop.f32.mrf.mxu0
  %v2633 = vadd.f32 %v68, %v2632
  %v2634 = vpop.f32.mrf.mxu0
  %2635 = vmatprep.mubr.bf16.mxu0 0
  %2636 = vmatmul.mubr.bf16.gmra.mxu0 %v2531
  %v2637 = vpop.f32.mrf.mxu0
  %v2638 = vadd.f32 %v68, %v2637
  %v2639 = vpop.f32.mrf.mxu0
  %v2640 = vpop.f32.mrf.mxu0
  %v2641 = vadd.f32 %v68, %v2640
  %v2642 = vpop.f32.mrf.mxu0
  %2643 = vmatprep.mubr.bf16.mxu0 0
  %2644 = vmatmul.mubr.bf16.gmra.mxu0 %v2534
  %v2645 = vpop.f32.mrf.mxu0
  %v2646 = vadd.f32 %v68, %v2645
  %v2647 = vpop.f32.mrf.mxu0
  %v2648 = vpop.f32.mrf.mxu0
  %v2649 = vadd.f32 %v68, %v2648
  %v2650 = vpop.f32.mrf.mxu0
  %2651 = vmatprep.mubr.bf16.mxu0 0
  %2652 = vmatmul.mubr.bf16.gmra.mxu0 %v2537
  %v2653 = vpop.f32.mrf.mxu0
  %v2654 = vadd.f32 %v68, %v2653
  %v2655 = vpop.f32.mrf.mxu0
  %v2656 = vpop.f32.mrf.mxu0
  %v2657 = vadd.f32 %v68, %v2656
  %v2658 = vpop.f32.mrf.mxu0
  %2659 = vmatprep.mubr.bf16.mxu0 0
  %2660 = vmatmul.mubr.bf16.gmra.mxu0 %v2540
  %v2661 = vpop.f32.mrf.mxu0
  %v2662 = vadd.f32 %v68, %v2661
  %v2663 = vpop.f32.mrf.mxu0
  %v2664 = vpop.f32.mrf.mxu0
  %v2665 = vadd.f32 %v68, %v2664
  %v2666 = vpop.f32.mrf.mxu0
  %2667 = vmatprep.mubr.bf16.mxu0 0
  %2668 = vmatmul.mubr.bf16.gmra.mxu0 %v2543
  %v2669 = vpop.f32.mrf.mxu0
  %v2670 = vadd.f32 %v68, %v2669
  %v2671 = vpop.f32.mrf.mxu0
  %v2672 = vpop.f32.mrf.mxu0
  %v2673 = vadd.f32 %v68, %v2672
  %v2674 = vpop.f32.mrf.mxu0
  %2675 = vmatprep.mubr.bf16.mxu0 0
  %2676 = vmatmul.mubr.bf16.gmra.mxu0 %v2546
  %v2677 = vpop.f32.mrf.mxu0
  %v2678 = vadd.f32 %v68, %v2677
  %v2679 = vpop.f32.mrf.mxu0
  %v2680 = vpop.f32.mrf.mxu0
  %v2681 = vadd.f32 %v68, %v2680
  %v2682 = vpop.f32.mrf.mxu0
  %2683 = vmatprep.mubr.bf16.mxu0 0
  %2684 = vmatmul.mubr.bf16.gmra.mxu0 %v2549
  %v2685 = vpop.f32.mrf.mxu0
  %v2686 = vadd.f32 %v68, %v2685
  %v2687 = vpop.f32.mrf.mxu0
  %v2688 = vpop.f32.mrf.mxu0
  %v2689 = vadd.f32 %v68, %v2688
  %v2690 = vpop.f32.mrf.mxu0
  %2691 = vmatprep.mubr.bf16.mxu0 0
  %2692 = vmatmul.mubr.bf16.gmra.mxu0 %v2552
  %v2693 = vpop.f32.mrf.mxu0
  %v2694 = vadd.f32 %v68, %v2693
  %v2695 = vpop.f32.mrf.mxu0
  %v2696 = vpop.f32.mrf.mxu0
  %v2697 = vadd.f32 %v68, %v2696
  %v2698 = vpop.f32.mrf.mxu0
  %2699 = vmatprep.mubr.bf16.mxu0 0
  %2700 = vmatmul.mubr.bf16.gmra.mxu0 %v2555
  %v2701 = vpop.f32.mrf.mxu0
  %v2702 = vadd.f32 %v68, %v2701
  %v2703 = vpop.f32.mrf.mxu0
  %v2704 = vpop.f32.mrf.mxu0
  %v2705 = vadd.f32 %v68, %v2704
  %v2706 = vpop.f32.mrf.mxu0
  %2707 = vmatprep.mubr.bf16.mxu0 0
  %2708 = vmatmul.mubr.bf16.gmra.mxu0 %v2558
  %v2709 = vpop.f32.mrf.mxu0
  %v2710 = vadd.f32 %v68, %v2709
  %v2711 = vpop.f32.mrf.mxu0
  %v2712 = vpop.f32.mrf.mxu0
  %v2713 = vadd.f32 %v68, %v2712
  %v2714 = vpop.f32.mrf.mxu0
  %2715 = vmatprep.mubr.bf16.mxu0 0
  %2716 = vmatmul.mubr.bf16.gmra.mxu0 %v2561
  %v2717 = vpop.f32.mrf.mxu0
  %v2718 = vadd.f32 %v68, %v2717
  %v2719 = vpop.f32.mrf.mxu0
  %v2720 = vpop.f32.mrf.mxu0
  %v2721 = vadd.f32 %v68, %v2720
  %v2722 = vpop.f32.mrf.mxu0
  %2723 = vdwg.mxu0
  %v2724 = vmax.f32 %v2598, 0.0
  %v2725 = vmax.f32 %v2601, 0.0
  %v2726 = vmax.f32 %v2606, 0.0
  %v2727 = vmax.f32 %v2609, 0.0
  %v2728 = vmax.f32 %v2614, 0.0
  %v2729 = vmax.f32 %v2617, 0.0
  %v2730 = vmax.f32 %v2622, 0.0
  %v2731 = vmax.f32 %v2625, 0.0
  %v2732 = vmax.f32 %v2630, 0.0
  %v2733 = vmax.f32 %v2633, 0.0
  %v2734 = vmax.f32 %v2638, 0.0
  %v2735 = vmax.f32 %v2641, 0.0
  %v2736 = vmax.f32 %v2646, 0.0
  %v2737 = vmax.f32 %v2649, 0.0
  %v2738 = vmax.f32 %v2654, 0.0
  %v2739 = vmax.f32 %v2657, 0.0
  %v2740 = vmax.f32 %v2662, 0.0
  %v2741 = vmax.f32 %v2665, 0.0
  %v2742 = vmax.f32 %v2670, 0.0
  %v2743 = vmax.f32 %v2673, 0.0
  %v2744 = vmax.f32 %v2678, 0.0
  %v2745 = vmax.f32 %v2681, 0.0
  %v2746 = vmax.f32 %v2686, 0.0
  %v2747 = vmax.f32 %v2689, 0.0
  %v2748 = vmax.f32 %v2694, 0.0
  %v2749 = vmax.f32 %v2697, 0.0
  %v2750 = vmax.f32 %v2702, 0.0
  %v2751 = vmax.f32 %v2705, 0.0
  %v2752 = vmax.f32 %v2710, 0.0
  %v2753 = vmax.f32 %v2713, 0.0
  %v2754 = vmax.f32 %v2718, 0.0
  %v2755 = vmax.f32 %v2721, 0.0
  %v2756 = vadd.f32 %v2724, %v2725
  %v2757 = vadd.f32 %v2756, %v2726
  %v2758 = vadd.f32 %v2757, %v2727
  %v2759 = vadd.f32 %v2758, %v2728
  %v2760 = vadd.f32 %v2759, %v2729
  %v2761 = vadd.f32 %v2760, %v2730
  %v2762 = vadd.f32 %v2761, %v2731
  %v2763 = vadd.f32 %v2762, %v2732
  %v2764 = vadd.f32 %v2763, %v2733
  %v2765 = vadd.f32 %v2764, %v2734
  %v2766 = vadd.f32 %v2765, %v2735
  %v2767 = vadd.f32 %v2766, %v2736
  %v2768 = vadd.f32 %v2767, %v2737
  %v2769 = vadd.f32 %v2768, %v2738
  %v2770 = vadd.f32 %v2769, %v2739
  %v2771 = vadd.f32 %v2770, %v2740
  %v2772 = vadd.f32 %v2771, %v2741
  %v2773 = vadd.f32 %v2772, %v2742
  %v2774 = vadd.f32 %v2773, %v2743
  %v2775 = vadd.f32 %v2774, %v2744
  %v2776 = vadd.f32 %v2775, %v2745
  %v2777 = vadd.f32 %v2776, %v2746
  %v2778 = vadd.f32 %v2777, %v2747
  %v2779 = vadd.f32 %v2778, %v2748
  %v2780 = vadd.f32 %v2779, %v2749
  %v2781 = vadd.f32 %v2780, %v2750
  %v2782 = vadd.f32 %v2781, %v2751
  %v2783 = vadd.f32 %v2782, %v2752
  %v2784 = vadd.f32 %v2783, %v2753
  %v2785 = vadd.f32 %v2784, %v2754
  %v2786 = vadd.f32 %v2785, %v2755
  %v2787 = vrot.slane %v2786, 4
  %v2788 = vadd.f32 %v2786, %v2787
  %v2789 = vrot.slane %v2788, 2
  %v2790 = vadd.f32 %v2788, %v2789
  %v2791 = vrot.slane %v2790, 1
  %v2792 = vadd.f32 %v2790, %v2791
  %v2793 = vmul.f32 %v2792, 0.00390625
  %s2794 = scalar_lea.vmem %s0, 896
  %v2795 = vld [vmem:[%s2794] sm:$0xf]
  %v2796 = vld [vmem:[%s2794 + $0x4] sm:$0xf]
  %v2797 = vld [vmem:[%s2794 + $0x8] sm:$0xf]
  %v2798 = vld [vmem:[%s2794 + $0xc] sm:$0xf]
  %v2799 = vld [vmem:[%s2794 + $0x10] sm:$0xf]
  %v2800 = vld [vmem:[%s2794 + $0x14] sm:$0xf]
  %v2801 = vld [vmem:[%s2794 + $0x18] sm:$0xf]
  %v2802 = vld [vmem:[%s2794 + $0x1c] sm:$0xf]
  %v2803 = vld [vmem:[%s2794 + $0x20] sm:$0xf]
  %v2804 = vld [vmem:[%s2794 + $0x24] sm:$0xf]
  %v2805 = vld [vmem:[%s2794 + $0x28] sm:$0xf]
  %v2806 = vld [vmem:[%s2794 + $0x2c] sm:$0xf]
  %v2807 = vld [vmem:[%s2794 + $0x30] sm:$0xf]
  %v2808 = vld [vmem:[%s2794 + $0x34] sm:$0xf]
  %v2809 = vld [vmem:[%s2794 + $0x38] sm:$0xf]
  %v2810 = vld [vmem:[%s2794 + $0x3c] sm:$0xf]
  %v2811 = vld [vmem:[%s2794 + $0x40] sm:$0xf]
  %v2812 = vld [vmem:[%s2794 + $0x44] sm:$0xf]
  %v2813 = vld [vmem:[%s2794 + $0x48] sm:$0xf]
  %v2814 = vld [vmem:[%s2794 + $0x4c] sm:$0xf]
  %v2815 = vld [vmem:[%s2794 + $0x50] sm:$0xf]
  %v2816 = vld [vmem:[%s2794 + $0x54] sm:$0xf]
  %v2817 = vld [vmem:[%s2794 + $0x58] sm:$0xf]
  %v2818 = vld [vmem:[%s2794 + $0x5c] sm:$0xf]
  %v2819 = vld [vmem:[%s2794 + $0x60] sm:$0xf]
  %v2820 = vld [vmem:[%s2794 + $0x64] sm:$0xf]
  %v2821 = vld [vmem:[%s2794 + $0x68] sm:$0xf]
  %v2822 = vld [vmem:[%s2794 + $0x6c] sm:$0xf]
  %v2823 = vld [vmem:[%s2794 + $0x70] sm:$0xf]
  %v2824 = vld [vmem:[%s2794 + $0x74] sm:$0xf]
  %v2825 = vld [vmem:[%s2794 + $0x78] sm:$0xf]
  %v2826 = vld [vmem:[%s2794 + $0x7c] sm:$0xf]
  %v2859 = vunpack.c.l.b16 %v2795
  %v2860 = vunpack.c.l.b16 %v2796
  %v2861 = vunpack.c.l.b16 %v2797
  %v2862 = vunpack.c.l.b16 %v2798
  %v2863 = vunpack.c.l.b16 %v2799
  %v2864 = vunpack.c.l.b16 %v2800
  %v2865 = vunpack.c.l.b16 %v2801
  %v2866 = vunpack.c.l.b16 %v2802
  %v2867 = vunpack.c.l.b16 %v2803
  %v2868 = vunpack.c.l.b16 %v2804
  %v2869 = vunpack.c.l.b16 %v2805
  %v2870 = vunpack.c.l.b16 %v2806
  %v2871 = vunpack.c.l.b16 %v2807
  %v2872 = vunpack.c.l.b16 %v2808
  %v2873 = vunpack.c.l.b16 %v2809
  %v2874 = vunpack.c.l.b16 %v2810
  %v2875 = vunpack.c.l.b16 %v2811
  %v2876 = vunpack.c.l.b16 %v2812
  %v2877 = vunpack.c.l.b16 %v2813
  %v2878 = vunpack.c.l.b16 %v2814
  %v2879 = vunpack.c.l.b16 %v2815
  %v2880 = vunpack.c.l.b16 %v2816
  %v2881 = vunpack.c.l.b16 %v2817
  %v2882 = vunpack.c.l.b16 %v2818
  %v2883 = vunpack.c.l.b16 %v2819
  %v2884 = vunpack.c.l.b16 %v2820
  %v2885 = vunpack.c.l.b16 %v2821
  %v2886 = vunpack.c.l.b16 %v2822
  %v2887 = vunpack.c.l.b16 %v2823
  %v2888 = vunpack.c.l.b16 %v2824
  %v2889 = vunpack.c.l.b16 %v2825
  %v2890 = vunpack.c.l.b16 %v2826
  %v2891 = vpack.c.b16 %v2860, %v2859
  %v2892 = vpack.c.b16 %v2862, %v2861
  %v2893 = vpack.c.b16 %v2864, %v2863
  %v2894 = vpack.c.b16 %v2866, %v2865
  %v2895 = vpack.c.b16 %v2868, %v2867
  %v2896 = vpack.c.b16 %v2870, %v2869
  %v2897 = vpack.c.b16 %v2872, %v2871
  %v2898 = vpack.c.b16 %v2874, %v2873
  %v2899 = vpack.c.b16 %v2876, %v2875
  %v2900 = vpack.c.b16 %v2878, %v2877
  %v2901 = vpack.c.b16 %v2880, %v2879
  %v2902 = vpack.c.b16 %v2882, %v2881
  %v2903 = vpack.c.b16 %v2884, %v2883
  %v2904 = vpack.c.b16 %v2886, %v2885
  %v2905 = vpack.c.b16 %v2888, %v2887
  %v2906 = vpack.c.b16 %v2890, %v2889
  %v2908 = vsel %vm162, %v2891, 0
  %v2911 = vsel %vm162, %v2892, 0
  %v2914 = vsel %vm162, %v2893, 0
  %v2917 = vsel %vm162, %v2894, 0
  %v2920 = vsel %vm162, %v2895, 0
  %v2923 = vsel %vm162, %v2896, 0
  %v2926 = vsel %vm162, %v2897, 0
  %v2929 = vsel %vm162, %v2898, 0
  %v2932 = vsel %vm162, %v2899, 0
  %v2935 = vsel %vm162, %v2900, 0
  %v2938 = vsel %vm162, %v2901, 0
  %v2941 = vsel %vm162, %v2902, 0
  %v2944 = vsel %vm162, %v2903, 0
  %v2947 = vsel %vm162, %v2904, 0
  %v2950 = vsel %vm162, %v2905, 0
  %v2953 = vsel %vm162, %v2906, 0
  %2955 = vmatprep.subr.bf16.mxu0 0
  %2956 = vmatpush1.bf16.msra.mxu0 0
  %2957 = vmatprep.subr.bf16.mxu0 0
  %2958 = vmatpush1.bf16.msra.mxu0 0
  %2959 = vmatprep.subr.bf16.mxu0 0
  %2960 = vmatpush1.bf16.msra.mxu0 0
  %2961 = vmatprep.subr.bf16.mxu0 0
  %2962 = vmatpush1.bf16.msra.mxu0 0
  %2963 = vmatprep.subr.bf16.mxu0 0
  %2964 = vmatpush1.bf16.msra.mxu0 0
  %2965 = vmatprep.subr.bf16.mxu0 0
  %2966 = vmatpush1.bf16.msra.mxu0 0
  %2967 = vmatprep.subr.bf16.mxu0 0
  %2968 = vmatpush1.bf16.msra.mxu0 %v159
  %2969 = vmatprep.subr.bf16.mxu0 0
  %2970 = vmatpush1.bf16.msra.mxu0 %v158
  %2971 = vmatprep.subr.bf16.mxu0 0
  %2972 = vmatpush2.bf16.msra.mxu0 0
  %2973 = vmatprep.subr.bf16.mxu0 0
  %2974 = vmatpush2.bf16.msra.mxu0 0
  %2975 = vmatprep.subr.bf16.mxu0 0
  %2976 = vmatpush2.bf16.msra.mxu0 0
  %2977 = vmatprep.subr.bf16.mxu0 0
  %2978 = vmatpush2.bf16.msra.mxu0 0
  %2979 = vmatprep.subr.bf16.mxu0 0
  %2980 = vmatpush2.bf16.msra.mxu0 0
  %2981 = vmatprep.subr.bf16.mxu0 0
  %2982 = vmatpush2.bf16.msra.mxu0 0
  %2983 = vmatprep.subr.bf16.mxu0 0
  %2984 = vmatpush2.bf16.msra.mxu0 0
  %2985 = vmatprep.subr.bf16.mxu0 0
  %2986 = vmatpush2.bf16.msra.mxu0 0
  %2987 = vmatprep.mubr.bf16.mxu0 0
  %2988 = vmatmul.mubr.bf16.gmra.mxu0 %v2908
  %v2989 = vpop.f32.mrf.mxu0
  %v2990 = vadd.f32 %v68, %v2989
  %v2991 = vpop.f32.mrf.mxu0
  %v2992 = vpop.f32.mrf.mxu0
  %v2993 = vadd.f32 %v68, %v2992
  %v2994 = vpop.f32.mrf.mxu0
  %2995 = vmatprep.mubr.bf16.mxu0 0
  %2996 = vmatmul.mubr.bf16.gmra.mxu0 %v2911
  %v2997 = vpop.f32.mrf.mxu0
  %v2998 = vadd.f32 %v68, %v2997
  %v2999 = vpop.f32.mrf.mxu0
  %v3000 = vpop.f32.mrf.mxu0
  %v3001 = vadd.f32 %v68, %v3000
  %v3002 = vpop.f32.mrf.mxu0
  %3003 = vmatprep.mubr.bf16.mxu0 0
  %3004 = vmatmul.mubr.bf16.gmra.mxu0 %v2914
  %v3005 = vpop.f32.mrf.mxu0
  %v3006 = vadd.f32 %v68, %v3005
  %v3007 = vpop.f32.mrf.mxu0
  %v3008 = vpop.f32.mrf.mxu0
  %v3009 = vadd.f32 %v68, %v3008
  %v3010 = vpop.f32.mrf.mxu0
  %3011 = vmatprep.mubr.bf16.mxu0 0
  %3012 = vmatmul.mubr.bf16.gmra.mxu0 %v2917
  %v3013 = vpop.f32.mrf.mxu0
  %v3014 = vadd.f32 %v68, %v3013
  %v3015 = vpop.f32.mrf.mxu0
  %v3016 = vpop.f32.mrf.mxu0
  %v3017 = vadd.f32 %v68, %v3016
  %v3018 = vpop.f32.mrf.mxu0
  %3019 = vmatprep.mubr.bf16.mxu0 0
  %3020 = vmatmul.mubr.bf16.gmra.mxu0 %v2920
  %v3021 = vpop.f32.mrf.mxu0
  %v3022 = vadd.f32 %v68, %v3021
  %v3023 = vpop.f32.mrf.mxu0
  %v3024 = vpop.f32.mrf.mxu0
  %v3025 = vadd.f32 %v68, %v3024
  %v3026 = vpop.f32.mrf.mxu0
  %3027 = vmatprep.mubr.bf16.mxu0 0
  %3028 = vmatmul.mubr.bf16.gmra.mxu0 %v2923
  %v3029 = vpop.f32.mrf.mxu0
  %v3030 = vadd.f32 %v68, %v3029
  %v3031 = vpop.f32.mrf.mxu0
  %v3032 = vpop.f32.mrf.mxu0
  %v3033 = vadd.f32 %v68, %v3032
  %v3034 = vpop.f32.mrf.mxu0
  %3035 = vmatprep.mubr.bf16.mxu0 0
  %3036 = vmatmul.mubr.bf16.gmra.mxu0 %v2926
  %v3037 = vpop.f32.mrf.mxu0
  %v3038 = vadd.f32 %v68, %v3037
  %v3039 = vpop.f32.mrf.mxu0
  %v3040 = vpop.f32.mrf.mxu0
  %v3041 = vadd.f32 %v68, %v3040
  %v3042 = vpop.f32.mrf.mxu0
  %3043 = vmatprep.mubr.bf16.mxu0 0
  %3044 = vmatmul.mubr.bf16.gmra.mxu0 %v2929
  %v3045 = vpop.f32.mrf.mxu0
  %v3046 = vadd.f32 %v68, %v3045
  %v3047 = vpop.f32.mrf.mxu0
  %v3048 = vpop.f32.mrf.mxu0
  %v3049 = vadd.f32 %v68, %v3048
  %v3050 = vpop.f32.mrf.mxu0
  %3051 = vmatprep.mubr.bf16.mxu0 0
  %3052 = vmatmul.mubr.bf16.gmra.mxu0 %v2932
  %v3053 = vpop.f32.mrf.mxu0
  %v3054 = vadd.f32 %v68, %v3053
  %v3055 = vpop.f32.mrf.mxu0
  %v3056 = vpop.f32.mrf.mxu0
  %v3057 = vadd.f32 %v68, %v3056
  %v3058 = vpop.f32.mrf.mxu0
  %3059 = vmatprep.mubr.bf16.mxu0 0
  %3060 = vmatmul.mubr.bf16.gmra.mxu0 %v2935
  %v3061 = vpop.f32.mrf.mxu0
  %v3062 = vadd.f32 %v68, %v3061
  %v3063 = vpop.f32.mrf.mxu0
  %v3064 = vpop.f32.mrf.mxu0
  %v3065 = vadd.f32 %v68, %v3064
  %v3066 = vpop.f32.mrf.mxu0
  %3067 = vmatprep.mubr.bf16.mxu0 0
  %3068 = vmatmul.mubr.bf16.gmra.mxu0 %v2938
  %v3069 = vpop.f32.mrf.mxu0
  %v3070 = vadd.f32 %v68, %v3069
  %v3071 = vpop.f32.mrf.mxu0
  %v3072 = vpop.f32.mrf.mxu0
  %v3073 = vadd.f32 %v68, %v3072
  %v3074 = vpop.f32.mrf.mxu0
  %3075 = vmatprep.mubr.bf16.mxu0 0
  %3076 = vmatmul.mubr.bf16.gmra.mxu0 %v2941
  %v3077 = vpop.f32.mrf.mxu0
  %v3078 = vadd.f32 %v68, %v3077
  %v3079 = vpop.f32.mrf.mxu0
  %v3080 = vpop.f32.mrf.mxu0
  %v3081 = vadd.f32 %v68, %v3080
  %v3082 = vpop.f32.mrf.mxu0
  %3083 = vmatprep.mubr.bf16.mxu0 0
  %3084 = vmatmul.mubr.bf16.gmra.mxu0 %v2944
  %v3085 = vpop.f32.mrf.mxu0
  %v3086 = vadd.f32 %v68, %v3085
  %v3087 = vpop.f32.mrf.mxu0
  %v3088 = vpop.f32.mrf.mxu0
  %v3089 = vadd.f32 %v68, %v3088
  %v3090 = vpop.f32.mrf.mxu0
  %3091 = vmatprep.mubr.bf16.mxu0 0
  %3092 = vmatmul.mubr.bf16.gmra.mxu0 %v2947
  %v3093 = vpop.f32.mrf.mxu0
  %v3094 = vadd.f32 %v68, %v3093
  %v3095 = vpop.f32.mrf.mxu0
  %v3096 = vpop.f32.mrf.mxu0
  %v3097 = vadd.f32 %v68, %v3096
  %v3098 = vpop.f32.mrf.mxu0
  %3099 = vmatprep.mubr.bf16.mxu0 0
  %3100 = vmatmul.mubr.bf16.gmra.mxu0 %v2950
  %v3101 = vpop.f32.mrf.mxu0
  %v3102 = vadd.f32 %v68, %v3101
  %v3103 = vpop.f32.mrf.mxu0
  %v3104 = vpop.f32.mrf.mxu0
  %v3105 = vadd.f32 %v68, %v3104
  %v3106 = vpop.f32.mrf.mxu0
  %3107 = vmatprep.mubr.bf16.mxu0 0
  %3108 = vmatmul.mubr.bf16.gmra.mxu0 %v2953
  %v3109 = vpop.f32.mrf.mxu0
  %v3110 = vadd.f32 %v68, %v3109
  %v3111 = vpop.f32.mrf.mxu0
  %v3112 = vpop.f32.mrf.mxu0
  %v3113 = vadd.f32 %v68, %v3112
  %v3114 = vpop.f32.mrf.mxu0
  %3115 = vdwg.mxu0
  %v3116 = vmax.f32 %v2990, 0.0
  %v3117 = vmax.f32 %v2993, 0.0
  %v3118 = vmax.f32 %v2998, 0.0
  %v3119 = vmax.f32 %v3001, 0.0
  %v3120 = vmax.f32 %v3006, 0.0
  %v3121 = vmax.f32 %v3009, 0.0
  %v3122 = vmax.f32 %v3014, 0.0
  %v3123 = vmax.f32 %v3017, 0.0
  %v3124 = vmax.f32 %v3022, 0.0
  %v3125 = vmax.f32 %v3025, 0.0
  %v3126 = vmax.f32 %v3030, 0.0
  %v3127 = vmax.f32 %v3033, 0.0
  %v3128 = vmax.f32 %v3038, 0.0
  %v3129 = vmax.f32 %v3041, 0.0
  %v3130 = vmax.f32 %v3046, 0.0
  %v3131 = vmax.f32 %v3049, 0.0
  %v3132 = vmax.f32 %v3054, 0.0
  %v3133 = vmax.f32 %v3057, 0.0
  %v3134 = vmax.f32 %v3062, 0.0
  %v3135 = vmax.f32 %v3065, 0.0
  %v3136 = vmax.f32 %v3070, 0.0
  %v3137 = vmax.f32 %v3073, 0.0
  %v3138 = vmax.f32 %v3078, 0.0
  %v3139 = vmax.f32 %v3081, 0.0
  %v3140 = vmax.f32 %v3086, 0.0
  %v3141 = vmax.f32 %v3089, 0.0
  %v3142 = vmax.f32 %v3094, 0.0
  %v3143 = vmax.f32 %v3097, 0.0
  %v3144 = vmax.f32 %v3102, 0.0
  %v3145 = vmax.f32 %v3105, 0.0
  %v3146 = vmax.f32 %v3110, 0.0
  %v3147 = vmax.f32 %v3113, 0.0
  %v3148 = vadd.f32 %v3116, %v3117
  %v3149 = vadd.f32 %v3148, %v3118
  %v3150 = vadd.f32 %v3149, %v3119
  %v3151 = vadd.f32 %v3150, %v3120
  %v3152 = vadd.f32 %v3151, %v3121
  %v3153 = vadd.f32 %v3152, %v3122
  %v3154 = vadd.f32 %v3153, %v3123
  %v3155 = vadd.f32 %v3154, %v3124
  %v3156 = vadd.f32 %v3155, %v3125
  %v3157 = vadd.f32 %v3156, %v3126
  %v3158 = vadd.f32 %v3157, %v3127
  %v3159 = vadd.f32 %v3158, %v3128
  %v3160 = vadd.f32 %v3159, %v3129
  %v3161 = vadd.f32 %v3160, %v3130
  %v3162 = vadd.f32 %v3161, %v3131
  %v3163 = vadd.f32 %v3162, %v3132
  %v3164 = vadd.f32 %v3163, %v3133
  %v3165 = vadd.f32 %v3164, %v3134
  %v3166 = vadd.f32 %v3165, %v3135
  %v3167 = vadd.f32 %v3166, %v3136
  %v3168 = vadd.f32 %v3167, %v3137
  %v3169 = vadd.f32 %v3168, %v3138
  %v3170 = vadd.f32 %v3169, %v3139
  %v3171 = vadd.f32 %v3170, %v3140
  %v3172 = vadd.f32 %v3171, %v3141
  %v3173 = vadd.f32 %v3172, %v3142
  %v3174 = vadd.f32 %v3173, %v3143
  %v3175 = vadd.f32 %v3174, %v3144
  %v3176 = vadd.f32 %v3175, %v3145
  %v3177 = vadd.f32 %v3176, %v3146
  %v3178 = vadd.f32 %v3177, %v3147
  %v3179 = vrot.slane %v3178, 4
  %v3180 = vadd.f32 %v3178, %v3179
  %v3181 = vrot.slane %v3180, 2
  %v3182 = vadd.f32 %v3180, %v3181
  %v3183 = vrot.slane %v3182, 1
  %v3184 = vadd.f32 %v3182, %v3183
  %v3185 = vmul.f32 %v3184, 0.00390625
  %vm3186 = vcmask 1040384
  %v3187 = vsel %vm3186, %v441, %v833
  %vm3188 = vcmask 1041408
  %v3189 = vsel %vm3188, %v3187, %v1225
  %vm3190 = vcmask 1042432
  %v3191 = vsel %vm3190, %v3189, %v1617
  %vm3192 = vcmask 1043456
  %v3193 = vsel %vm3192, %v3191, %v2009
  %vm3194 = vcmask 1044480
  %v3195 = vsel %vm3194, %v3193, %v2401
  %vm3196 = vcmask 1045504
  %v3197 = vsel %vm3196, %v3195, %v2793
  %vm3198 = vcmask 1046528
  %v3199 = vsel %vm3198, %v3197, %v3185
  %v3200 = vpack.c.bf16 %v3199, %v3199
  %v3201 = vld [vmem:[%s3] sm:$0xf]
  %v3202 = vld [vmem:[%s3 + $0x4] sm:$0xf]
  %v3203 = vld [vmem:[%s3 + $0x8] sm:$0xf]
  %v3204 = vld [vmem:[%s3 + $0xc] sm:$0xf]
  %v3205 = vld [vmem:[%s3 + $0x10] sm:$0xf]
  %v3206 = vld [vmem:[%s3 + $0x14] sm:$0xf]
  %v3207 = vld [vmem:[%s3 + $0x18] sm:$0xf]
  %v3208 = vld [vmem:[%s3 + $0x1c] sm:$0xf]
  %v3209 = vld [vmem:[%s3 + $0x20] sm:$0xf]
  %v3210 = vld [vmem:[%s3 + $0x24] sm:$0xf]
  %v3211 = vld [vmem:[%s3 + $0x28] sm:$0xf]
  %v3212 = vld [vmem:[%s3 + $0x2c] sm:$0xf]
  %v3213 = vld [vmem:[%s3 + $0x30] sm:$0xf]
  %v3214 = vld [vmem:[%s3 + $0x34] sm:$0xf]
  %v3215 = vld [vmem:[%s3 + $0x38] sm:$0xf]
  %v3216 = vld [vmem:[%s3 + $0x3c] sm:$0xf]
  %v3217 = vld [vmem:[%s4] sm:$0x1]
  %v3219 = vlaneseq
  %v3220 = vshrl.u32 %v3219, 7
  %v3221 = vsub.s32 0, %v3220
  %v3222 = vrot.slane %v3217, %v3221
  %v3240 = vunpack.c.l.b16 %v3201
  %v3241 = vunpack.c.l.b16 %v3202
  %v3242 = vunpack.c.l.b16 %v3203
  %v3243 = vunpack.c.l.b16 %v3204
  %v3244 = vunpack.c.l.b16 %v3205
  %v3245 = vunpack.c.l.b16 %v3206
  %v3246 = vunpack.c.l.b16 %v3207
  %v3247 = vunpack.c.l.b16 %v3208
  %v3248 = vunpack.c.l.b16 %v3209
  %v3249 = vunpack.c.l.b16 %v3210
  %v3250 = vunpack.c.l.b16 %v3211
  %v3251 = vunpack.c.l.b16 %v3212
  %v3252 = vunpack.c.l.b16 %v3213
  %v3253 = vunpack.c.l.b16 %v3214
  %v3254 = vunpack.c.l.b16 %v3215
  %v3255 = vunpack.c.l.b16 %v3216
  %v3256 = vpack.c.b16 %v3241, %v3240
  %v3257 = vpack.c.b16 %v3243, %v3242
  %v3258 = vpack.c.b16 %v3245, %v3244
  %v3259 = vpack.c.b16 %v3247, %v3246
  %v3260 = vpack.c.b16 %v3249, %v3248
  %v3261 = vpack.c.b16 %v3251, %v3250
  %v3262 = vpack.c.b16 %v3253, %v3252
  %v3263 = vpack.c.b16 %v3255, %v3254
  %3272 = vmatprep.subr.bf16.mxu0 0
  %3273 = vmatpush1.bf16.msra.mxu0 %v3263
  %3274 = vmatprep.subr.bf16.mxu0 0
  %3275 = vmatpush1.bf16.msra.mxu0 %v3262
  %3276 = vmatprep.subr.bf16.mxu0 0
  %3277 = vmatpush1.bf16.msra.mxu0 %v3261
  %3278 = vmatprep.subr.bf16.mxu0 0
  %3279 = vmatpush1.bf16.msra.mxu0 %v3260
  %3280 = vmatprep.subr.bf16.mxu0 0
  %3281 = vmatpush1.bf16.msra.mxu0 %v3259
  %3282 = vmatprep.subr.bf16.mxu0 0
  %3283 = vmatpush1.bf16.msra.mxu0 %v3258
  %3284 = vmatprep.subr.bf16.mxu0 0
  %3285 = vmatpush1.bf16.msra.mxu0 %v3257
  %3286 = vmatprep.subr.bf16.mxu0 0
  %3287 = vmatpush1.bf16.msra.mxu0 %v3256
  %3288 = vmatprep.subr.bf16.mxu0 0
  %3289 = vmatpush2.bf16.msra.mxu0 0
  %3290 = vmatprep.subr.bf16.mxu0 0
  %3291 = vmatpush2.bf16.msra.mxu0 0
  %3292 = vmatprep.subr.bf16.mxu0 0
  %3293 = vmatpush2.bf16.msra.mxu0 0
  %3294 = vmatprep.subr.bf16.mxu0 0
  %3295 = vmatpush2.bf16.msra.mxu0 0
  %3296 = vmatprep.subr.bf16.mxu0 0
  %3297 = vmatpush2.bf16.msra.mxu0 0
  %3298 = vmatprep.subr.bf16.mxu0 0
  %3299 = vmatpush2.bf16.msra.mxu0 0
  %3300 = vmatprep.subr.bf16.mxu0 0
  %3301 = vmatpush2.bf16.msra.mxu0 0
  %3302 = vmatprep.subr.bf16.mxu0 0
  %3303 = vmatpush2.bf16.msra.mxu0 0
  %3304 = vmatprep.mubr.bf16.mxu0 0
  %3305 = vmatmul.mubr.bf16.gmra.mxu0 %v3200
  %v3306 = vpop.f32.mrf.mxu0
  %v3307 = vadd.f32 %v3222, %v3306
  %v3308 = vpop.f32.mrf.mxu0
  %v3309 = vpop.f32.mrf.mxu0
  %v3310 = vpop.f32.mrf.mxu0
  %3311 = vdwg.mxu0
  %v3312 = vmax.f32 %v3307, 0.0
  %v3313 = vpack.c.bf16 %v3312, %v3312
  %v3314 = vld [vmem:[%s5] sm:$0xf]
  %v3315 = vld [vmem:[%s5 + $0x4] sm:$0xf]
  %v3316 = vld [vmem:[%s5 + $0x8] sm:$0xf]
  %v3317 = vld [vmem:[%s5 + $0xc] sm:$0xf]
  %v3318 = vld [vmem:[%s5 + $0x10] sm:$0xf]
  %v3319 = vld [vmem:[%s5 + $0x14] sm:$0xf]
  %v3320 = vld [vmem:[%s5 + $0x18] sm:$0xf]
  %v3321 = vld [vmem:[%s5 + $0x1c] sm:$0xf]
  %v3322 = vld [vmem:[%s5 + $0x20] sm:$0xf]
  %v3323 = vld [vmem:[%s5 + $0x24] sm:$0xf]
  %v3324 = vld [vmem:[%s5 + $0x28] sm:$0xf]
  %v3325 = vld [vmem:[%s5 + $0x2c] sm:$0xf]
  %v3326 = vld [vmem:[%s5 + $0x30] sm:$0xf]
  %v3327 = vld [vmem:[%s5 + $0x34] sm:$0xf]
  %v3328 = vld [vmem:[%s5 + $0x38] sm:$0xf]
  %v3329 = vld [vmem:[%s5 + $0x3c] sm:$0xf]
  %v3330 = vld [vmem:[%s6] sm:$0x1]
  %v3332 = vlaneseq
  %v3333 = vshrl.u32 %v3332, 7
  %v3334 = vsub.s32 0, %v3333
  %v3335 = vrot.slane %v3330, %v3334
  %v3353 = vunpack.c.l.b16 %v3314
  %v3354 = vunpack.c.l.b16 %v3315
  %v3355 = vunpack.c.l.b16 %v3316
  %v3356 = vunpack.c.l.b16 %v3317
  %v3357 = vunpack.c.l.b16 %v3318
  %v3358 = vunpack.c.l.b16 %v3319
  %v3359 = vunpack.c.l.b16 %v3320
  %v3360 = vunpack.c.l.b16 %v3321
  %v3361 = vunpack.c.l.b16 %v3322
  %v3362 = vunpack.c.l.b16 %v3323
  %v3363 = vunpack.c.l.b16 %v3324
  %v3364 = vunpack.c.l.b16 %v3325
  %v3365 = vunpack.c.l.b16 %v3326
  %v3366 = vunpack.c.l.b16 %v3327
  %v3367 = vunpack.c.l.b16 %v3328
  %v3368 = vunpack.c.l.b16 %v3329
  %v3369 = vpack.c.b16 %v3354, %v3353
  %v3370 = vpack.c.b16 %v3356, %v3355
  %v3371 = vpack.c.b16 %v3358, %v3357
  %v3372 = vpack.c.b16 %v3360, %v3359
  %v3373 = vpack.c.b16 %v3362, %v3361
  %v3374 = vpack.c.b16 %v3364, %v3363
  %v3375 = vpack.c.b16 %v3366, %v3365
  %v3376 = vpack.c.b16 %v3368, %v3367
  %3385 = vmatprep.subr.bf16.mxu0 0
  %3386 = vmatpush1.bf16.msra.mxu0 %v3376
  %3387 = vmatprep.subr.bf16.mxu0 0
  %3388 = vmatpush1.bf16.msra.mxu0 %v3375
  %3389 = vmatprep.subr.bf16.mxu0 0
  %3390 = vmatpush1.bf16.msra.mxu0 %v3374
  %3391 = vmatprep.subr.bf16.mxu0 0
  %3392 = vmatpush1.bf16.msra.mxu0 %v3373
  %3393 = vmatprep.subr.bf16.mxu0 0
  %3394 = vmatpush1.bf16.msra.mxu0 %v3372
  %3395 = vmatprep.subr.bf16.mxu0 0
  %3396 = vmatpush1.bf16.msra.mxu0 %v3371
  %3397 = vmatprep.subr.bf16.mxu0 0
  %3398 = vmatpush1.bf16.msra.mxu0 %v3370
  %3399 = vmatprep.subr.bf16.mxu0 0
  %3400 = vmatpush1.bf16.msra.mxu0 %v3369
  %3401 = vmatprep.subr.bf16.mxu0 0
  %3402 = vmatpush2.bf16.msra.mxu0 0
  %3403 = vmatprep.subr.bf16.mxu0 0
  %3404 = vmatpush2.bf16.msra.mxu0 0
  %3405 = vmatprep.subr.bf16.mxu0 0
  %3406 = vmatpush2.bf16.msra.mxu0 0
  %3407 = vmatprep.subr.bf16.mxu0 0
  %3408 = vmatpush2.bf16.msra.mxu0 0
  %3409 = vmatprep.subr.bf16.mxu0 0
  %3410 = vmatpush2.bf16.msra.mxu0 0
  %3411 = vmatprep.subr.bf16.mxu0 0
  %3412 = vmatpush2.bf16.msra.mxu0 0
  %3413 = vmatprep.subr.bf16.mxu0 0
  %3414 = vmatpush2.bf16.msra.mxu0 0
  %3415 = vmatprep.subr.bf16.mxu0 0
  %3416 = vmatpush2.bf16.msra.mxu0 0
  %3417 = vmatprep.mubr.bf16.mxu0 0
  %3418 = vmatmul.mubr.bf16.gmra.mxu0 %v3313
  %v3419 = vpop.f32.mrf.mxu0
  %v3420 = vadd.f32 %v3335, %v3419
  %v3421 = vpop.f32.mrf.mxu0
  %v3422 = vpop.f32.mrf.mxu0
  %v3423 = vpop.f32.mrf.mxu0
  %3424 = vdwg.mxu0
  %v3425 = vlaneseq
  %v3426 = vand.u32 %v3425, 127
  %vm3427 = vcmp.lt.s32.totalorder %v3426, 5
  %v3428 = vtanh.pop %v3420
  %vm3429 = vcmp.eq.s32.totalorder %v3426, 5
  %v3430 = vxor.u32 %v3420, 2147483648
  %v3431 = vmul.f32 %v3430, 1.442695
  %v3432 = vpow.pop %v3431
  %v3433 = vadd.f32 %v3432, 1.0
  %v3434 = vrcp.pop %v3433
  %v3435 = vmul.f32 1.0, %v3434
  %v3436 = vsel %vm3429, %v3435, 0.0
  %v3437 = vsel %vm3427, %v3428, %v3436
  %3438 = vst [vmem:[%s7] sm:$0xff] %v3437
  // Predicated region
  $region30: #{gaze_static_multi_sincos_forward.1} parent=0 // pred_check
    _
  $region31: #{gaze_static_multi_sincos_forward.1} parent=0 // pred_check_branch
    %3440 = sbr.rel (0) target = $region33
  $region32: #{gaze_static_multi_sincos_forward.1} parent=0 // pred_region
    _
  $region33: #{gaze_static_multi_sincos_forward.1} parent=0 // pred_fallthru
    _
  // Predicated region
  $region34: #{gaze_static_multi_sincos_forward.1} parent=0 // pred_check
    _
  $region35: #{gaze_static_multi_sincos_forward.1} parent=0 // pred_check_branch
    %3442 = sbr.rel (0) target = $region37
  $region36: #{gaze_static_multi_sincos_forward.1} parent=0 // pred_region
    _
  $region37: #{gaze_static_multi_sincos_forward.1} parent=0 // pred_fallthru
    _

</llo_original>
